<compile_context>
chip_gen: v7x
topology: tpu7x:2x2x1
jax: 0.10.0
libtpu: 0.0.40
codegen_flags: <defaults>
</compile_context>

<pallas_src>
import functools

import jax
import jax.numpy as jnp
import numpy as np
from jax import lax
from jax.experimental import pallas as pl
from jax.experimental.pallas import tpu as pltpu


def _padrnn_lstm_kernel(len_smem, x_ref, len_ref, wih_ref, whh_ref, b_ref,
                        hn_ref, gx_sc, h_sc, c_sc, *, unroll):
    """Grid = (n_batch_blocks, n_time_blocks); time axis is innermost and serial.

    len_smem : (B,) int32 scalar-prefetched lengths (sorted descending).
    x_ref    : (T_BLK, B_BLK, I) time-major input block.
    len_ref  : (B_BLK, 1) int32 lengths for the per-row update mask.
    wih_ref  : (I, 4H) input weight, constant index (VMEM resident, Buffered(1)).
    whh_ref  : (H, 4H) recurrent weight, constant index (VMEM resident, Buffered(1)).
    b_ref    : (1, 4H) f32 combined bias.
    hn_ref   : (B_BLK, H) final hidden state output (written at last time block only).
    gx_sc    : (T_BLK, B_BLK, 4H) scratch for the per-block input projection.
    h_sc/c_sc: (B_BLK, H) f32 LSTM state, carried across time blocks.

    NOTE: correctness relies on the time axis being the innermost ("arbitrary") grid
    axis with a constant output block index; do not reorder the grid.
    """
    b_blk = pl.program_id(0)
    t_blk = pl.program_id(1)
    T_BLK, B_BLK, G = gx_sc.shape
    H = G // 4

    @pl.when(t_blk == 0)
    def _():
        h_sc[...] = jnp.zeros_like(h_sc)
        c_sc[...] = jnp.zeros_like(c_sc)

    # Lengths are sorted descending (pack_padded_sequence, enforce_sorted=True), so the
    # first / last rows of this batch shard carry its max / min lengths.
    max_len = len_smem[b_blk * B_BLK]
    min_len = len_smem[b_blk * B_BLK + B_BLK - 1]
    t0 = t_blk * T_BLK

    @pl.when(t0 < max_len)          # skip time blocks that are entirely padding
    def _():
        # (a) Input projection for the whole block -- off the serial h-dependency chain.
        w_ih = wih_ref[...]          # (I, 4H)
        bias = b_ref[...]            # (1, 4H) f32

        @pl.loop(0, T_BLK)
        def _(s):
            gx_sc[s] = (jnp.dot(x_ref[s], w_ih, preferred_element_type=jnp.float32)
                        + bias).astype(gx_sc.dtype)

        # (b) Serial recurrence: only h @ W_hh^T remains per timestep.
        w_hh = whh_ref[...]          # (H, 4H)
        lengths = len_ref[...]       # (B_BLK, 1) int32, hoisted out of the loop

        def cell(gx_s, h, c):
            gates = gx_s.astype(jnp.float32) + jnp.dot(
                h.astype(w_hh.dtype), w_hh, preferred_element_type=jnp.float32)
            # PyTorch gate order: i, f, g, o.
            i_g = jax.nn.sigmoid(gates[:, 0 * H:1 * H])
            f_g = jax.nn.sigmoid(gates[:, 1 * H:2 * H])
            g_g = jnp.tanh(gates[:, 2 * H:3 * H])
            o_g = jax.nn.sigmoid(gates[:, 3 * H:4 * H])
            c_new = f_g * c + i_g * g_g
            h_new = o_g * jnp.tanh(c_new)
            return h_new, c_new

        def step_fast(s, carry):     # every row of this shard is still active
            h, c = carry
            return cell(gx_sc[s], h, c)

        def step_masked(s, carry):   # packed-sequence tail: finished rows keep state
            h, c = carry
            h_new, c_new = cell(gx_sc[s], h, c)
            upd = lengths > (t0 + s)
            return jnp.where(upd, h_new, h), jnp.where(upd, c_new, c)

        @pl.when(t0 + T_BLK <= min_len)
        def _():
            h, c = lax.fori_loop(0, T_BLK, step_fast, (h_sc[...], c_sc[...]),
                                 unroll=unroll)
            h_sc[...] = h
            c_sc[...] = c

        @pl.when(t0 + T_BLK > min_len)
        def _():
            h, c = lax.fori_loop(0, T_BLK, step_masked, (h_sc[...], c_sc[...]),
                                 unroll=unroll)
            h_sc[...] = h
            c_sc[...] = c

    @pl.when(t_blk == pl.num_programs(1) - 1)
    def _():
        hn_ref[...] = h_sc[...].astype(hn_ref.dtype)


def padrnn_forward(x, lengths, params, *, b_block=None, t_block=None,
                   compute_dtype=jnp.float32, unroll=8,
                   vmem_budget_bytes=40 * 1024 * 1024):
    """x: (B, T, I) float32, lengths: (B,) int sorted descending (as required by
    pack_padded_sequence). Returns (B, output_size) float32."""
    B, T, I = x.shape
    H = params["w_hh_t"].shape[0]
    G = 4 * H

    # pack_padded_sequence(enforce_sorted=True) semantics: lengths sorted descending.
    # The whole-block skip relies on it, so check when the value is concrete.
    try:
        l_host = np.asarray(lengths)
    except Exception:
        l_host = None
    if l_host is not None and l_host.size > 1 and np.any(l_host[:-1] < l_host[1:]):
        raise ValueError("x_lengths must be sorted in descending order "
                         "(pack_padded_sequence with enforce_sorted=True)")

    w_ih_t = params["w_ih_t"].astype(compute_dtype)      # (I, 4H)
    w_hh_t = params["w_hh_t"].astype(compute_dtype)      # (H, 4H)
    bias = params["b"].astype(jnp.float32).reshape(1, G)  # (1, 4H)

    # Batch sharding: on v7x pass b_block=B//2 (B >= 256) so the two TensorCores each
    # run an independent shard of the serial recurrence; on v5e/v6e keep None so the
    # per-step MXU matmul keeps M = B.
    B_BLK = B if b_block is None else min(int(b_block), B)
    assert B % B_BLK == 0, "b_block must divide B"
    assert B_BLK == B or B_BLK % 8 == 0, "b_block must be a multiple of 8"
    n_b = B // B_BLK

    # VMEM-budget-derived time block: x stream double-buffered, gx scratch single,
    # weights single-buffered (Buffered(1)).
    itemsize = jnp.dtype(compute_dtype).itemsize
    weights_bytes = (I * G + H * G) * itemsize + G * 4
    state_bytes = 2 * B_BLK * 4 + 4 * B_BLK * H * 4      # lengths + h/c scratch + out
    per_t_bytes = B_BLK * (2 * I * itemsize + G * itemsize)
    if t_block is None:
        t_block = max(1, (vmem_budget_bytes - weights_bytes - state_bytes)
                      // per_t_bytes)
    T_BLK = int(min(T, int(t_block), 128))
    n_t = int(pl.cdiv(T, T_BLK))
    T_pad = n_t * T_BLK

    x_tbi = jnp.transpose(x, (1, 0, 2)).astype(compute_dtype)    # time-major (T, B, I)
    if T_pad != T:
        x_tbi = jnp.pad(x_tbi, ((0, T_pad - T), (0, 0), (0, 0)))

    lengths_i32 = lengths.astype(jnp.int32).reshape(B)
    len2d = lengths_i32.reshape(B, 1)

    def x_map(b, t, lens):
        # Clamp the time-block index so fully-padded blocks (compute-skipped by
        # pl.when) reuse the previous block instead of being re-DMA'd from HBM.
        last = lax.div(jnp.maximum(lens[b * B_BLK] - 1, 0), jnp.int32(T_BLK))
        return (jnp.minimum(t, last), b, 0)

    cost = pl.CostEstimate(
        flops=int(2 * T * B * H * G + 2 * T * B * I * G),
        transcendentals=int(5 * T * B * H),
        bytes_accessed=int(T_pad * B * I * itemsize + weights_bytes + B * H * 4),
    )
    kernel = functools.partial(_padrnn_lstm_kernel, unroll=int(min(unroll, T_BLK)))

    def run(single_buffer_weights):
        pm = {"pipeline_mode": pl.Buffered(1)} if single_buffer_weights else {}
        grid_spec = pltpu.PrefetchScalarGridSpec(
            num_scalar_prefetch=1,                       # lengths -> SMEM
            grid=(n_b, n_t),
            in_specs=[
                pl.BlockSpec((T_BLK, B_BLK, I), x_map),                          # x
                pl.BlockSpec((B_BLK, 1), lambda b, t, lens: (b, 0)),             # lengths
                pl.BlockSpec((I, G), lambda b, t, lens: (0, 0), **pm),           # W_ih^T
                pl.BlockSpec((H, G), lambda b, t, lens: (0, 0), **pm),           # W_hh^T
                pl.BlockSpec((1, G), lambda b, t, lens: (0, 0), **pm),           # bias
            ],
            out_specs=pl.BlockSpec((B_BLK, H), lambda b, t, lens: (b, 0)),       # h_n
            scratch_shapes=[
                pltpu.VMEM((T_BLK, B_BLK, G), compute_dtype),   # gx block scratch
                pltpu.VMEM((B_BLK, H), jnp.float32),            # h state (f32)
                pltpu.VMEM((B_BLK, H), jnp.float32),            # c state (f32)
            ],
        )
        wbuf = 1 if single_buffer_weights else 2
        used = wbuf * weights_bytes + state_bytes + T_BLK * per_t_bytes
        vmem_limit = int(max(32 << 20, min(used + (16 << 20), 64 << 20)))
        return pl.pallas_call(
            kernel,
            out_shape=jax.ShapeDtypeStruct((B, H), jnp.float32),
            grid_spec=grid_spec,
            compiler_params=pltpu.CompilerParams(
                dimension_semantics=("parallel", "arbitrary"),   # batch ||, time serial
                vmem_limit_bytes=vmem_limit),
            cost_estimate=cost,
        )(lengths_i32, x_tbi, len2d, w_ih_t, w_hh_t, bias)

    try:
        h_n = run(True)
    except Exception:
        # pipeline_mode=pl.Buffered(1) unsupported on this jax version: fall back to
        # default double-buffered weights (identical results, slightly more VMEM).
        h_n = run(False)

    # fc runs once on (B, H) in the wrapper (lane-sparse output, not worth a kernel).
    return h_n @ params["w_fc_t"].astype(jnp.float32) + params["b_fc"].astype(jnp.float32)


def init_params(key, input_size, hidden_size, output_size):
    """Deterministic synthetic init (uniform +-1/sqrt(H), like nn.LSTM / nn.Linear)."""
    ks = jax.random.split(key, 6)
    bound = 1.0 / jnp.sqrt(jnp.float32(hidden_size))
    u = lambda k, shape: jax.random.uniform(k, shape, jnp.float32, -bound, bound)
    w_ih = u(ks[0], (4 * hidden_size, input_size))   # like lstm.weight_ih_l0
    w_hh = u(ks[1], (4 * hidden_size, hidden_size))  # like lstm.weight_hh_l0
    b_ih = u(ks[2], (4 * hidden_size,))
    b_hh = u(ks[3], (4 * hidden_size,))
    w_fc = u(ks[4], (output_size, hidden_size))      # like fc.weight
    b_fc = u(ks[5], (output_size,))
    return {
        "w_ih_t": w_ih.T,                                   # (I, 4H)
        "w_hh_t": w_hh.T,                                   # (H, 4H)
        "b": (b_ih + b_hh).reshape(1, 4 * hidden_size),     # (1, 4H)
        "w_fc_t": w_fc.T,                                   # (H, O)
        "b_fc": b_fc.reshape(1, output_size),               # (1, O)
    }


def _reference(x, lengths, params):
    """Pure-JAX f32 reference (same masked LSTM recurrence + fc)."""
    B, T, I = x.shape
    H = params["w_hh_t"].shape[0]
    h = jnp.zeros((B, H), jnp.float32)
    c = jnp.zeros((B, H), jnp.float32)
    for t in range(T):
        gates = x[:, t, :] @ params["w_ih_t"] + h @ params["w_hh_t"] + params["b"]
        i_g = jax.nn.sigmoid(gates[:, 0 * H:1 * H])
        f_g = jax.nn.sigmoid(gates[:, 1 * H:2 * H])
        g_g = jnp.tanh(gates[:, 2 * H:3 * H])
        o_g = jax.nn.sigmoid(gates[:, 3 * H:4 * H])
        c_new = f_g * c + i_g * g_g
        h_new = o_g * jnp.tanh(c_new)
        m = lengths.reshape(B, 1) > t
        c = jnp.where(m, c_new, c)
        h = jnp.where(m, h_new, h)
    return h @ params["w_fc_t"] + params["b_fc"]


if __name__ == "__main__":
    B, T, INPUT, HIDDEN, OUT = 2, 8, 16, 32, 8
    key = jax.random.PRNGKey(0)
    k_x, k_p = jax.random.split(key)

    x = jax.random.normal(k_x, (B, T, INPUT), jnp.float32)
    lengths = jnp.array([8, 5], dtype=jnp.int32)   # sorted descending
    params = init_params(k_p, INPUT, HIDDEN, OUT)

    ref = _reference(x, lengths, params)

    # f32 path, single (budget-derived) time block.
    out = jax.block_until_ready(padrnn_forward(x, lengths, params))
    assert out.shape == (B, OUT)
    assert jnp.allclose(out, ref, atol=1e-3, rtol=1e-3), "f32 mismatch vs reference"

    # f32 path, forced multi time-block: exercises the fast/masked step branches,
    # padded-block skip + index_map clamping, and the h/c carry across time blocks.
    out_blk = jax.block_until_ready(padrnn_forward(x, lengths, params, t_block=4))
    assert jnp.allclose(out_blk, ref, atol=1e-3, rtol=1e-3), "multi-block mismatch"

    # bf16 weights / x stream / gx scratch (f32 accumulation + f32 state).
    out_bf16 = jax.block_until_ready(
        padrnn_forward(x, lengths, params, compute_dtype=jnp.bfloat16))
    assert jnp.allclose(out_bf16, ref, atol=1e-1, rtol=1e-1), "bf16 mismatch vs reference"

    print("KERNEL_OK")
</pallas_src>

<mosaic_0001>
module attributes {stable_mosaic.version = 11 : i64} {
  func.func @_padrnn_lstm_kernel(%arg0: i32, %arg1: i32, %arg2: memref<2xi32, #tpu.memory_space<smem>>, %arg3: memref<8x2x16xf32, #tpu.memory_space<vmem>>, %arg4: memref<2x1xi32, #tpu.memory_space<vmem>>, %arg5: memref<16x128xf32, #tpu.memory_space<vmem>>, %arg6: memref<32x128xf32, #tpu.memory_space<vmem>>, %arg7: memref<1x128xf32, #tpu.memory_space<vmem>>, %arg8: memref<2x32xf32, #tpu.memory_space<vmem>>, %arg9: memref<8x2x128xf32, #tpu.memory_space<vmem>>, %arg10: memref<2x32xf32, #tpu.memory_space<vmem>>, %arg11: memref<2x32xf32, #tpu.memory_space<vmem>>) attributes {dimension_semantics = [#tpu.dimension_semantics<parallel>, #tpu.dimension_semantics<arbitrary>], iteration_bounds = array<i64: 1, 1>, scalar_prefetch = 1 : i64, scratch_operands = 3 : i64, tpu.core_type = #tpu.core_type<tc>, window_params = [{transform_indices = @transform_0, window_bounds = array<i64: 8, 2, 16>}, {transform_indices = @transform_1, window_bounds = array<i64: 2, 1>}, {pipeline_mode = #tpu.pipeline_mode<synchronous>, transform_indices = @transform_2, window_bounds = array<i64: 16, 128>}, {pipeline_mode = #tpu.pipeline_mode<synchronous>, transform_indices = @transform_3, window_bounds = array<i64: 32, 128>}, {pipeline_mode = #tpu.pipeline_mode<synchronous>, transform_indices = @transform_4, window_bounds = array<i64: 1, 128>}, {transform_indices = @transform_5, window_bounds = array<i64: 2, 32>}]} {
    %c0_i32 = arith.constant 0 : i32
    %0 = arith.cmpi eq, %arg1, %c0_i32 : i32
    %1 = arith.extui %0 : i1 to i32
    %c0_i32_0 = arith.constant 0 : i32
    %2 = arith.cmpi ne, %1, %c0_i32_0 : i32
    scf.if %2 {
      %cst = arith.constant 0.000000e+00 : f32
      %18 = vector.broadcast %cst : f32 to vector<2x32xf32>
      %c0 = arith.constant 0 : index
      %c0_6 = arith.constant 0 : index
      %19 = vector.load %arg10[%c0, %c0_6] : memref<2x32xf32, #tpu.memory_space<vmem>>, vector<2x32xf32>
      tpu.vector_store %arg10[%c0, %c0_6], %18 {strides = array<i32>} : memref<2x32xf32, #tpu.memory_space<vmem>>, vector<2x32xf32>,
      %cst_7 = arith.constant 0.000000e+00 : f32
      %20 = vector.broadcast %cst_7 : f32 to vector<2x32xf32>
      %c0_8 = arith.constant 0 : index
      %c0_9 = arith.constant 0 : index
      %21 = vector.load %arg11[%c0_8, %c0_9] : memref<2x32xf32, #tpu.memory_space<vmem>>, vector<2x32xf32>
      tpu.vector_store %arg11[%c0_8, %c0_9], %20 {strides = array<i32>} : memref<2x32xf32, #tpu.memory_space<vmem>>, vector<2x32xf32>,
    } else {
    }
    %c2_i32 = arith.constant 2 : i32
    %3 = arith.muli %arg0, %c2_i32 : i32
    %4 = arith.index_cast %3 : i32 to index
    %5 = memref.load %arg2[%4] : memref<2xi32, #tpu.memory_space<smem>>
    %c2_i32_1 = arith.constant 2 : i32
    %6 = arith.muli %arg0, %c2_i32_1 : i32
    %c2_i32_2 = arith.constant 2 : i32
    %7 = arith.addi %6, %c2_i32_2 : i32
    %c1_i32 = arith.constant 1 : i32
    %8 = arith.subi %7, %c1_i32 : i32
    %9 = arith.index_cast %8 : i32 to index
    %10 = memref.load %arg2[%9] : memref<2xi32, #tpu.memory_space<smem>>
    %c8_i32 = arith.constant 8 : i32
    %11 = arith.muli %arg1, %c8_i32 : i32
    %12 = arith.cmpi slt, %11, %5 : i32
    %13 = arith.extui %12 : i1 to i32
    %c0_i32_3 = arith.constant 0 : i32
    %14 = arith.cmpi ne, %13, %c0_i32_3 : i32
    scf.if %14 {
      %c0 = arith.constant 0 : index
      %c0_6 = arith.constant 0 : index
      %18 = vector.load %arg5[%c0, %c0_6] : memref<16x128xf32, #tpu.memory_space<vmem>>, vector<16x128xf32>
      %c0_7 = arith.constant 0 : index
      %c0_8 = arith.constant 0 : index
      %19 = vector.load %arg7[%c0_7, %c0_8] : memref<1x128xf32, #tpu.memory_space<vmem>>, vector<1x128xf32>
      %c0_i32_9 = arith.constant 0 : i32
      %c8_i32_10 = arith.constant 8 : i32
      %20 = arith.addi %c0_i32_9, %c8_i32_10 : i32
      %c1_i32_11 = arith.constant 1 : i32
      scf.for %arg12 = %c0_i32_9 to %20 step %c1_i32_11  : i32 {
        %c1_i32_21 = arith.constant 1 : i32
        %31 = arith.muli %arg12, %c1_i32_21 : i32
        %c0_i32_22 = arith.constant 0 : i32
        %32 = arith.addi %c0_i32_22, %31 : i32
        %33 = arith.index_cast %32 : i32 to index
        %c0_23 = arith.constant 0 : index
        %c0_24 = arith.constant 0 : index
        %34 = vector.load %arg3[%33, %c0_23, %c0_24] : memref<8x2x16xf32, #tpu.memory_space<vmem>>, vector<1x2x16xf32>
        %35 = vector.shape_cast %34 : vector<1x2x16xf32> to vector<2x16xf32>
        %cst = arith.constant dense<0.000000e+00> : vector<2x128xf32>
        %36 = tpu.matmul %35, %18, %cst {dimension_numbers = #tpu.dot_dimension_numbers<[1], [0], [0], [1], [0, 0, 1, 1], [], []>} : vector<2x16xf32>, vector<16x128xf32>, vector<2x128xf32> -> vector<2x128xf32>
        %37 = vector.broadcast %19 : vector<1x128xf32> to vector<2x128xf32>
        %38 = arith.addf %36, %37 : vector<2x128xf32>
        %39 = arith.index_cast %32 : i32 to index
        %c0_25 = arith.constant 0 : index
        %c0_26 = arith.constant 0 : index
        %40 = vector.load %arg9[%39, %c0_25, %c0_26] : memref<8x2x128xf32, #tpu.memory_space<vmem>>, vector<1x2x128xf32>
        %41 = vector.shape_cast %40 : vector<1x2x128xf32> to vector<2x128xf32>
        %42 = vector.shape_cast %38 : vector<2x128xf32> to vector<1x2x128xf32>
        tpu.vector_store %arg9[%39, %c0_25, %c0_26], %42 {strides = array<i32>} : memref<8x2x128xf32, #tpu.memory_space<vmem>>, vector<1x2x128xf32>,
      }
      %c8_i32_12 = arith.constant 8 : i32
      %c0_13 = arith.constant 0 : index
      %c0_14 = arith.constant 0 : index
      %21 = vector.load %arg6[%c0_13, %c0_14] : memref<32x128xf32, #tpu.memory_space<vmem>>, vector<32x128xf32>
      %c0_15 = arith.constant 0 : index
      %c0_16 = arith.constant 0 : index
      %22 = vector.load %arg4[%c0_15, %c0_16] : memref<2x1xi32, #tpu.memory_space<vmem>>, vector<2x1xi32>
      %c8_i32_17 = arith.constant 8 : i32
      %23 = arith.addi %11, %c8_i32_17 : i32
      %24 = arith.cmpi sle, %23, %10 : i32
      %25 = arith.extui %24 : i1 to i32
      %c0_i32_18 = arith.constant 0 : i32
      %26 = arith.cmpi ne, %25, %c0_i32_18 : i32
      scf.if %26 {
        %c0_21 = arith.constant 0 : index
        %c0_22 = arith.constant 0 : index
        %31 = vector.load %arg10[%c0_21, %c0_22] : memref<2x32xf32, #tpu.memory_space<vmem>>, vector<2x32xf32>
        %c0_23 = arith.constant 0 : index
        %c0_24 = arith.constant 0 : index
        %32 = vector.load %arg11[%c0_23, %c0_24] : memref<2x32xf32, #tpu.memory_space<vmem>>, vector<2x32xf32>
        %c0_i32_25 = arith.constant 0 : i32
        %33 = arith.index_cast %c0_i32_25 : i32 to index
        %c0_26 = arith.constant 0 : index
        %c0_27 = arith.constant 0 : index
        %34 = vector.load %arg9[%33, %c0_26, %c0_27] : memref<8x2x128xf32, #tpu.memory_space<vmem>>, vector<1x2x128xf32>
        %35 = vector.shape_cast %34 : vector<1x2x128xf32> to vector<2x128xf32>
        %cst = arith.constant dense<0.000000e+00> : vector<2x128xf32>
        %36 = tpu.matmul %31, %21, %cst {dimension_numbers = #tpu.dot_dimension_numbers<[1], [0], [0], [1], [0, 0, 1, 1], [], []>} : vector<2x32xf32>, vector<32x128xf32>, vector<2x128xf32> -> vector<2x128xf32>
        %37 = arith.addf %35, %36 : vector<2x128xf32>
        %38 = vector.extract_strided_slice %37 {offsets = [0, 0], sizes = [2, 32], strides = [1, 1]} : vector<2x128xf32> to vector<2x32xf32>
        %39 = arith.negf %38 : vector<2x32xf32>
        %40 = math.exp %39 : vector<2x32xf32>
        %cst_28 = arith.constant 1.000000e+00 : f32
        %41 = vector.broadcast %cst_28 : f32 to vector<2x32xf32>
        %42 = arith.addf %41, %40 : vector<2x32xf32>
        %43 = arith.divf %41, %42 : vector<2x32xf32>
        %44 = vector.extract_strided_slice %37 {offsets = [0, 32], sizes = [2, 32], strides = [1, 1]} : vector<2x128xf32> to vector<2x32xf32>
        %45 = arith.negf %44 : vector<2x32xf32>
        %46 = math.exp %45 : vector<2x32xf32>
        %cst_29 = arith.constant 1.000000e+00 : f32
        %47 = vector.broadcast %cst_29 : f32 to vector<2x32xf32>
        %48 = arith.addf %47, %46 : vector<2x32xf32>
        %49 = arith.divf %47, %48 : vector<2x32xf32>
        %50 = vector.extract_strided_slice %37 {offsets = [0, 64], sizes = [2, 32], strides = [1, 1]} : vector<2x128xf32> to vector<2x32xf32>
        %51 = math.tanh %50 : vector<2x32xf32>
        %52 = vector.extract_strided_slice %37 {offsets = [0, 96], sizes = [2, 32], strides = [1, 1]} : vector<2x128xf32> to vector<2x32xf32>
        %53 = arith.negf %52 : vector<2x32xf32>
        %54 = math.exp %53 : vector<2x32xf32>
        %cst_30 = arith.constant 1.000000e+00 : f32
        %55 = vector.broadcast %cst_30 : f32 to vector<2x32xf32>
        %56 = arith.addf %55, %54 : vector<2x32xf32>
        %57 = arith.divf %55, %56 : vector<2x32xf32>
        %58 = arith.mulf %49, %32 : vector<2x32xf32>
        %59 = arith.mulf %43, %51 : vector<2x32xf32>
        %60 = arith.addf %58, %59 : vector<2x32xf32>
        %61 = math.tanh %60 : vector<2x32xf32>
        %62 = arith.mulf %57, %61 : vector<2x32xf32>
        %c1_i32_31 = arith.constant 1 : i32
        %63 = arith.index_cast %c1_i32_31 : i32 to index
        %c0_32 = arith.constant 0 : index
        %c0_33 = arith.constant 0 : index
        %64 = vector.load %arg9[%63, %c0_32, %c0_33] : memref<8x2x128xf32, #tpu.memory_space<vmem>>, vector<1x2x128xf32>
        %65 = vector.shape_cast %64 : vector<1x2x128xf32> to vector<2x128xf32>
        %cst_34 = arith.constant dense<0.000000e+00> : vector<2x128xf32>
        %66 = tpu.matmul %62, %21, %cst_34 {dimension_numbers = #tpu.dot_dimension_numbers<[1], [0], [0], [1], [0, 0, 1, 1], [], []>} : vector<2x32xf32>, vector<32x128xf32>, vector<2x128xf32> -> vector<2x128xf32>
        %67 = arith.addf %65, %66 : vector<2x128xf32>
        %68 = vector.extract_strided_slice %67 {offsets = [0, 0], sizes = [2, 32], strides = [1, 1]} : vector<2x128xf32> to vector<2x32xf32>
        %69 = arith.negf %68 : vector<2x32xf32>
        %70 = math.exp %69 : vector<2x32xf32>
        %cst_35 = arith.constant 1.000000e+00 : f32
        %71 = vector.broadcast %cst_35 : f32 to vector<2x32xf32>
        %72 = arith.addf %71, %70 : vector<2x32xf32>
        %73 = arith.divf %71, %72 : vector<2x32xf32>
        %74 = vector.extract_strided_slice %67 {offsets = [0, 32], sizes = [2, 32], strides = [1, 1]} : vector<2x128xf32> to vector<2x32xf32>
        %75 = arith.negf %74 : vector<2x32xf32>
        %76 = math.exp %75 : vector<2x32xf32>
        %cst_36 = arith.constant 1.000000e+00 : f32
        %77 = vector.broadcast %cst_36 : f32 to vector<2x32xf32>
        %78 = arith.addf %77, %76 : vector<2x32xf32>
        %79 = arith.divf %77, %78 : vector<2x32xf32>
        %80 = vector.extract_strided_slice %67 {offsets = [0, 64], sizes = [2, 32], strides = [1, 1]} : vector<2x128xf32> to vector<2x32xf32>
        %81 = math.tanh %80 : vector<2x32xf32>
        %82 = vector.extract_strided_slice %67 {offsets = [0, 96], sizes = [2, 32], strides = [1, 1]} : vector<2x128xf32> to vector<2x32xf32>
        %83 = arith.negf %82 : vector<2x32xf32>
        %84 = math.exp %83 : vector<2x32xf32>
        %cst_37 = arith.constant 1.000000e+00 : f32
        %85 = vector.broadcast %cst_37 : f32 to vector<2x32xf32>
        %86 = arith.addf %85, %84 : vector<2x32xf32>
        %87 = arith.divf %85, %86 : vector<2x32xf32>
        %88 = arith.mulf %79, %60 : vector<2x32xf32>
        %89 = arith.mulf %73, %81 : vector<2x32xf32>
        %90 = arith.addf %88, %89 : vector<2x32xf32>
        %91 = math.tanh %90 : vector<2x32xf32>
        %92 = arith.mulf %87, %91 : vector<2x32xf32>
        %c2_i32_38 = arith.constant 2 : i32
        %93 = arith.index_cast %c2_i32_38 : i32 to index
        %c0_39 = arith.constant 0 : index
        %c0_40 = arith.constant 0 : index
        %94 = vector.load %arg9[%93, %c0_39, %c0_40] : memref<8x2x128xf32, #tpu.memory_space<vmem>>, vector<1x2x128xf32>
        %95 = vector.shape_cast %94 : vector<1x2x128xf32> to vector<2x128xf32>
        %cst_41 = arith.constant dense<0.000000e+00> : vector<2x128xf32>
        %96 = tpu.matmul %92, %21, %cst_41 {dimension_numbers = #tpu.dot_dimension_numbers<[1], [0], [0], [1], [0, 0, 1, 1], [], []>} : vector<2x32xf32>, vector<32x128xf32>, vector<2x128xf32> -> vector<2x128xf32>
        %97 = arith.addf %95, %96 : vector<2x128xf32>
        %98 = vector.extract_strided_slice %97 {offsets = [0, 0], sizes = [2, 32], strides = [1, 1]} : vector<2x128xf32> to vector<2x32xf32>
        %99 = arith.negf %98 : vector<2x32xf32>
        %100 = math.exp %99 : vector<2x32xf32>
        %cst_42 = arith.constant 1.000000e+00 : f32
        %101 = vector.broadcast %cst_42 : f32 to vector<2x32xf32>
        %102 = arith.addf %101, %100 : vector<2x32xf32>
        %103 = arith.divf %101, %102 : vector<2x32xf32>
        %104 = vector.extract_strided_slice %97 {offsets = [0, 32], sizes = [2, 32], strides = [1, 1]} : vector<2x128xf32> to vector<2x32xf32>
        %105 = arith.negf %104 : vector<2x32xf32>
        %106 = math.exp %105 : vector<2x32xf32>
        %cst_43 = arith.constant 1.000000e+00 : f32
        %107 = vector.broadcast %cst_43 : f32 to vector<2x32xf32>
        %108 = arith.addf %107, %106 : vector<2x32xf32>
        %109 = arith.divf %107, %108 : vector<2x32xf32>
        %110 = vector.extract_strided_slice %97 {offsets = [0, 64], sizes = [2, 32], strides = [1, 1]} : vector<2x128xf32> to vector<2x32xf32>
        %111 = math.tanh %110 : vector<2x32xf32>
        %112 = vector.extract_strided_slice %97 {offsets = [0, 96], sizes = [2, 32], strides = [1, 1]} : vector<2x128xf32> to vector<2x32xf32>
        %113 = arith.negf %112 : vector<2x32xf32>
        %114 = math.exp %113 : vector<2x32xf32>
        %cst_44 = arith.constant 1.000000e+00 : f32
        %115 = vector.broadcast %cst_44 : f32 to vector<2x32xf32>
        %116 = arith.addf %115, %114 : vector<2x32xf32>
        %117 = arith.divf %115, %116 : vector<2x32xf32>
        %118 = arith.mulf %109, %90 : vector<2x32xf32>
        %119 = arith.mulf %103, %111 : vector<2x32xf32>
        %120 = arith.addf %118, %119 : vector<2x32xf32>
        %121 = math.tanh %120 : vector<2x32xf32>
        %122 = arith.mulf %117, %121 : vector<2x32xf32>
        %c3_i32 = arith.constant 3 : i32
        %123 = arith.index_cast %c3_i32 : i32 to index
        %c0_45 = arith.constant 0 : index
        %c0_46 = arith.constant 0 : index
        %124 = vector.load %arg9[%123, %c0_45, %c0_46] : memref<8x2x128xf32, #tpu.memory_space<vmem>>, vector<1x2x128xf32>
        %125 = vector.shape_cast %124 : vector<1x2x128xf32> to vector<2x128xf32>
        %cst_47 = arith.constant dense<0.000000e+00> : vector<2x128xf32>
        %126 = tpu.matmul %122, %21, %cst_47 {dimension_numbers = #tpu.dot_dimension_numbers<[1], [0], [0], [1], [0, 0, 1, 1], [], []>} : vector<2x32xf32>, vector<32x128xf32>, vector<2x128xf32> -> vector<2x128xf32>
        %127 = arith.addf %125, %126 : vector<2x128xf32>
        %128 = vector.extract_strided_slice %127 {offsets = [0, 0], sizes = [2, 32], strides = [1, 1]} : vector<2x128xf32> to vector<2x32xf32>
        %129 = arith.negf %128 : vector<2x32xf32>
        %130 = math.exp %129 : vector<2x32xf32>
        %cst_48 = arith.constant 1.000000e+00 : f32
        %131 = vector.broadcast %cst_48 : f32 to vector<2x32xf32>
        %132 = arith.addf %131, %130 : vector<2x32xf32>
        %133 = arith.divf %131, %132 : vector<2x32xf32>
        %134 = vector.extract_strided_slice %127 {offsets = [0, 32], sizes = [2, 32], strides = [1, 1]} : vector<2x128xf32> to vector<2x32xf32>
        %135 = arith.negf %134 : vector<2x32xf32>
        %136 = math.exp %135 : vector<2x32xf32>
        %cst_49 = arith.constant 1.000000e+00 : f32
        %137 = vector.broadcast %cst_49 : f32 to vector<2x32xf32>
        %138 = arith.addf %137, %136 : vector<2x32xf32>
        %139 = arith.divf %137, %138 : vector<2x32xf32>
        %140 = vector.extract_strided_slice %127 {offsets = [0, 64], sizes = [2, 32], strides = [1, 1]} : vector<2x128xf32> to vector<2x32xf32>
        %141 = math.tanh %140 : vector<2x32xf32>
        %142 = vector.extract_strided_slice %127 {offsets = [0, 96], sizes = [2, 32], strides = [1, 1]} : vector<2x128xf32> to vector<2x32xf32>
        %143 = arith.negf %142 : vector<2x32xf32>
        %144 = math.exp %143 : vector<2x32xf32>
        %cst_50 = arith.constant 1.000000e+00 : f32
        %145 = vector.broadcast %cst_50 : f32 to vector<2x32xf32>
        %146 = arith.addf %145, %144 : vector<2x32xf32>
        %147 = arith.divf %145, %146 : vector<2x32xf32>
        %148 = arith.mulf %139, %120 : vector<2x32xf32>
        %149 = arith.mulf %133, %141 : vector<2x32xf32>
        %150 = arith.addf %148, %149 : vector<2x32xf32>
        %151 = math.tanh %150 : vector<2x32xf32>
        %152 = arith.mulf %147, %151 : vector<2x32xf32>
        %c4_i32 = arith.constant 4 : i32
        %153 = arith.index_cast %c4_i32 : i32 to index
        %c0_51 = arith.constant 0 : index
        %c0_52 = arith.constant 0 : index
        %154 = vector.load %arg9[%153, %c0_51, %c0_52] : memref<8x2x128xf32, #tpu.memory_space<vmem>>, vector<1x2x128xf32>
        %155 = vector.shape_cast %154 : vector<1x2x128xf32> to vector<2x128xf32>
        %cst_53 = arith.constant dense<0.000000e+00> : vector<2x128xf32>
        %156 = tpu.matmul %152, %21, %cst_53 {dimension_numbers = #tpu.dot_dimension_numbers<[1], [0], [0], [1], [0, 0, 1, 1], [], []>} : vector<2x32xf32>, vector<32x128xf32>, vector<2x128xf32> -> vector<2x128xf32>
        %157 = arith.addf %155, %156 : vector<2x128xf32>
        %158 = vector.extract_strided_slice %157 {offsets = [0, 0], sizes = [2, 32], strides = [1, 1]} : vector<2x128xf32> to vector<2x32xf32>
        %159 = arith.negf %158 : vector<2x32xf32>
        %160 = math.exp %159 : vector<2x32xf32>
        %cst_54 = arith.constant 1.000000e+00 : f32
        %161 = vector.broadcast %cst_54 : f32 to vector<2x32xf32>
        %162 = arith.addf %161, %160 : vector<2x32xf32>
        %163 = arith.divf %161, %162 : vector<2x32xf32>
        %164 = vector.extract_strided_slice %157 {offsets = [0, 32], sizes = [2, 32], strides = [1, 1]} : vector<2x128xf32> to vector<2x32xf32>
        %165 = arith.negf %164 : vector<2x32xf32>
        %166 = math.exp %165 : vector<2x32xf32>
        %cst_55 = arith.constant 1.000000e+00 : f32
        %167 = vector.broadcast %cst_55 : f32 to vector<2x32xf32>
        %168 = arith.addf %167, %166 : vector<2x32xf32>
        %169 = arith.divf %167, %168 : vector<2x32xf32>
        %170 = vector.extract_strided_slice %157 {offsets = [0, 64], sizes = [2, 32], strides = [1, 1]} : vector<2x128xf32> to vector<2x32xf32>
        %171 = math.tanh %170 : vector<2x32xf32>
        %172 = vector.extract_strided_slice %157 {offsets = [0, 96], sizes = [2, 32], strides = [1, 1]} : vector<2x128xf32> to vector<2x32xf32>
        %173 = arith.negf %172 : vector<2x32xf32>
        %174 = math.exp %173 : vector<2x32xf32>
        %cst_56 = arith.constant 1.000000e+00 : f32
        %175 = vector.broadcast %cst_56 : f32 to vector<2x32xf32>
        %176 = arith.addf %175, %174 : vector<2x32xf32>
        %177 = arith.divf %175, %176 : vector<2x32xf32>
        %178 = arith.mulf %169, %150 : vector<2x32xf32>
        %179 = arith.mulf %163, %171 : vector<2x32xf32>
        %180 = arith.addf %178, %179 : vector<2x32xf32>
        %181 = math.tanh %180 : vector<2x32xf32>
        %182 = arith.mulf %177, %181 : vector<2x32xf32>
        %c5_i32 = arith.constant 5 : i32
        %183 = arith.index_cast %c5_i32 : i32 to index
        %c0_57 = arith.constant 0 : index
        %c0_58 = arith.constant 0 : index
        %184 = vector.load %arg9[%183, %c0_57, %c0_58] : memref<8x2x128xf32, #tpu.memory_space<vmem>>, vector<1x2x128xf32>
        %185 = vector.shape_cast %184 : vector<1x2x128xf32> to vector<2x128xf32>
        %cst_59 = arith.constant dense<0.000000e+00> : vector<2x128xf32>
        %186 = tpu.matmul %182, %21, %cst_59 {dimension_numbers = #tpu.dot_dimension_numbers<[1], [0], [0], [1], [0, 0, 1, 1], [], []>} : vector<2x32xf32>, vector<32x128xf32>, vector<2x128xf32> -> vector<2x128xf32>
        %187 = arith.addf %185, %186 : vector<2x128xf32>
        %188 = vector.extract_strided_slice %187 {offsets = [0, 0], sizes = [2, 32], strides = [1, 1]} : vector<2x128xf32> to vector<2x32xf32>
        %189 = arith.negf %188 : vector<2x32xf32>
        %190 = math.exp %189 : vector<2x32xf32>
        %cst_60 = arith.constant 1.000000e+00 : f32
        %191 = vector.broadcast %cst_60 : f32 to vector<2x32xf32>
        %192 = arith.addf %191, %190 : vector<2x32xf32>
        %193 = arith.divf %191, %192 : vector<2x32xf32>
        %194 = vector.extract_strided_slice %187 {offsets = [0, 32], sizes = [2, 32], strides = [1, 1]} : vector<2x128xf32> to vector<2x32xf32>
        %195 = arith.negf %194 : vector<2x32xf32>
        %196 = math.exp %195 : vector<2x32xf32>
        %cst_61 = arith.constant 1.000000e+00 : f32
        %197 = vector.broadcast %cst_61 : f32 to vector<2x32xf32>
        %198 = arith.addf %197, %196 : vector<2x32xf32>
        %199 = arith.divf %197, %198 : vector<2x32xf32>
        %200 = vector.extract_strided_slice %187 {offsets = [0, 64], sizes = [2, 32], strides = [1, 1]} : vector<2x128xf32> to vector<2x32xf32>
        %201 = math.tanh %200 : vector<2x32xf32>
        %202 = vector.extract_strided_slice %187 {offsets = [0, 96], sizes = [2, 32], strides = [1, 1]} : vector<2x128xf32> to vector<2x32xf32>
        %203 = arith.negf %202 : vector<2x32xf32>
        %204 = math.exp %203 : vector<2x32xf32>
        %cst_62 = arith.constant 1.000000e+00 : f32
        %205 = vector.broadcast %cst_62 : f32 to vector<2x32xf32>
        %206 = arith.addf %205, %204 : vector<2x32xf32>
        %207 = arith.divf %205, %206 : vector<2x32xf32>
        %208 = arith.mulf %199, %180 : vector<2x32xf32>
        %209 = arith.mulf %193, %201 : vector<2x32xf32>
        %210 = arith.addf %208, %209 : vector<2x32xf32>
        %211 = math.tanh %210 : vector<2x32xf32>
        %212 = arith.mulf %207, %211 : vector<2x32xf32>
        %c6_i32 = arith.constant 6 : i32
        %213 = arith.index_cast %c6_i32 : i32 to index
        %c0_63 = arith.constant 0 : index
        %c0_64 = arith.constant 0 : index
        %214 = vector.load %arg9[%213, %c0_63, %c0_64] : memref<8x2x128xf32, #tpu.memory_space<vmem>>, vector<1x2x128xf32>
        %215 = vector.shape_cast %214 : vector<1x2x128xf32> to vector<2x128xf32>
        %cst_65 = arith.constant dense<0.000000e+00> : vector<2x128xf32>
        %216 = tpu.matmul %212, %21, %cst_65 {dimension_numbers = #tpu.dot_dimension_numbers<[1], [0], [0], [1], [0, 0, 1, 1], [], []>} : vector<2x32xf32>, vector<32x128xf32>, vector<2x128xf32> -> vector<2x128xf32>
        %217 = arith.addf %215, %216 : vector<2x128xf32>
        %218 = vector.extract_strided_slice %217 {offsets = [0, 0], sizes = [2, 32], strides = [1, 1]} : vector<2x128xf32> to vector<2x32xf32>
        %219 = arith.negf %218 : vector<2x32xf32>
        %220 = math.exp %219 : vector<2x32xf32>
        %cst_66 = arith.constant 1.000000e+00 : f32
        %221 = vector.broadcast %cst_66 : f32 to vector<2x32xf32>
        %222 = arith.addf %221, %220 : vector<2x32xf32>
        %223 = arith.divf %221, %222 : vector<2x32xf32>
        %224 = vector.extract_strided_slice %217 {offsets = [0, 32], sizes = [2, 32], strides = [1, 1]} : vector<2x128xf32> to vector<2x32xf32>
        %225 = arith.negf %224 : vector<2x32xf32>
        %226 = math.exp %225 : vector<2x32xf32>
        %cst_67 = arith.constant 1.000000e+00 : f32
        %227 = vector.broadcast %cst_67 : f32 to vector<2x32xf32>
        %228 = arith.addf %227, %226 : vector<2x32xf32>
        %229 = arith.divf %227, %228 : vector<2x32xf32>
        %230 = vector.extract_strided_slice %217 {offsets = [0, 64], sizes = [2, 32], strides = [1, 1]} : vector<2x128xf32> to vector<2x32xf32>
        %231 = math.tanh %230 : vector<2x32xf32>
        %232 = vector.extract_strided_slice %217 {offsets = [0, 96], sizes = [2, 32], strides = [1, 1]} : vector<2x128xf32> to vector<2x32xf32>
        %233 = arith.negf %232 : vector<2x32xf32>
        %234 = math.exp %233 : vector<2x32xf32>
        %cst_68 = arith.constant 1.000000e+00 : f32
        %235 = vector.broadcast %cst_68 : f32 to vector<2x32xf32>
        %236 = arith.addf %235, %234 : vector<2x32xf32>
        %237 = arith.divf %235, %236 : vector<2x32xf32>
        %238 = arith.mulf %229, %210 : vector<2x32xf32>
        %239 = arith.mulf %223, %231 : vector<2x32xf32>
        %240 = arith.addf %238, %239 : vector<2x32xf32>
        %241 = math.tanh %240 : vector<2x32xf32>
        %242 = arith.mulf %237, %241 : vector<2x32xf32>
        %c7_i32 = arith.constant 7 : i32
        %243 = arith.index_cast %c7_i32 : i32 to index
        %c0_69 = arith.constant 0 : index
        %c0_70 = arith.constant 0 : index
        %244 = vector.load %arg9[%243, %c0_69, %c0_70] : memref<8x2x128xf32, #tpu.memory_space<vmem>>, vector<1x2x128xf32>
        %245 = vector.shape_cast %244 : vector<1x2x128xf32> to vector<2x128xf32>
        %cst_71 = arith.constant dense<0.000000e+00> : vector<2x128xf32>
        %246 = tpu.matmul %242, %21, %cst_71 {dimension_numbers = #tpu.dot_dimension_numbers<[1], [0], [0], [1], [0, 0, 1, 1], [], []>} : vector<2x32xf32>, vector<32x128xf32>, vector<2x128xf32> -> vector<2x128xf32>
        %247 = arith.addf %245, %246 : vector<2x128xf32>
        %248 = vector.extract_strided_slice %247 {offsets = [0, 0], sizes = [2, 32], strides = [1, 1]} : vector<2x128xf32> to vector<2x32xf32>
        %249 = arith.negf %248 : vector<2x32xf32>
        %250 = math.exp %249 : vector<2x32xf32>
        %cst_72 = arith.constant 1.000000e+00 : f32
        %251 = vector.broadcast %cst_72 : f32 to vector<2x32xf32>
        %252 = arith.addf %251, %250 : vector<2x32xf32>
        %253 = arith.divf %251, %252 : vector<2x32xf32>
        %254 = vector.extract_strided_slice %247 {offsets = [0, 32], sizes = [2, 32], strides = [1, 1]} : vector<2x128xf32> to vector<2x32xf32>
        %255 = arith.negf %254 : vector<2x32xf32>
        %256 = math.exp %255 : vector<2x32xf32>
        %cst_73 = arith.constant 1.000000e+00 : f32
        %257 = vector.broadcast %cst_73 : f32 to vector<2x32xf32>
        %258 = arith.addf %257, %256 : vector<2x32xf32>
        %259 = arith.divf %257, %258 : vector<2x32xf32>
        %260 = vector.extract_strided_slice %247 {offsets = [0, 64], sizes = [2, 32], strides = [1, 1]} : vector<2x128xf32> to vector<2x32xf32>
        %261 = math.tanh %260 : vector<2x32xf32>
        %262 = vector.extract_strided_slice %247 {offsets = [0, 96], sizes = [2, 32], strides = [1, 1]} : vector<2x128xf32> to vector<2x32xf32>
        %263 = arith.negf %262 : vector<2x32xf32>
        %264 = math.exp %263 : vector<2x32xf32>
        %cst_74 = arith.constant 1.000000e+00 : f32
        %265 = vector.broadcast %cst_74 : f32 to vector<2x32xf32>
        %266 = arith.addf %265, %264 : vector<2x32xf32>
        %267 = arith.divf %265, %266 : vector<2x32xf32>
        %268 = arith.mulf %259, %240 : vector<2x32xf32>
        %269 = arith.mulf %253, %261 : vector<2x32xf32>
        %270 = arith.addf %268, %269 : vector<2x32xf32>
        %271 = math.tanh %270 : vector<2x32xf32>
        %272 = arith.mulf %267, %271 : vector<2x32xf32>
        %c8_i32_75 = arith.constant 8 : i32
        %c0_76 = arith.constant 0 : index
        %c0_77 = arith.constant 0 : index
        %273 = vector.load %arg10[%c0_76, %c0_77] : memref<2x32xf32, #tpu.memory_space<vmem>>, vector<2x32xf32>
        tpu.vector_store %arg10[%c0_76, %c0_77], %272 {strides = array<i32>} : memref<2x32xf32, #tpu.memory_space<vmem>>, vector<2x32xf32>,
        %c0_78 = arith.constant 0 : index
        %c0_79 = arith.constant 0 : index
        %274 = vector.load %arg11[%c0_78, %c0_79] : memref<2x32xf32, #tpu.memory_space<vmem>>, vector<2x32xf32>
        tpu.vector_store %arg11[%c0_78, %c0_79], %270 {strides = array<i32>} : memref<2x32xf32, #tpu.memory_space<vmem>>, vector<2x32xf32>,
      } else {
      }
      %c8_i32_19 = arith.constant 8 : i32
      %27 = arith.addi %11, %c8_i32_19 : i32
      %28 = arith.cmpi sgt, %27, %10 : i32
      %29 = arith.extui %28 : i1 to i32
      %c0_i32_20 = arith.constant 0 : i32
      %30 = arith.cmpi ne, %29, %c0_i32_20 : i32
      scf.if %30 {
        %c0_21 = arith.constant 0 : index
        %c0_22 = arith.constant 0 : index
        %31 = vector.load %arg10[%c0_21, %c0_22] : memref<2x32xf32, #tpu.memory_space<vmem>>, vector<2x32xf32>
        %c0_23 = arith.constant 0 : index
        %c0_24 = arith.constant 0 : index
        %32 = vector.load %arg11[%c0_23, %c0_24] : memref<2x32xf32, #tpu.memory_space<vmem>>, vector<2x32xf32>
        %c0_i32_25 = arith.constant 0 : i32
        %33 = arith.index_cast %c0_i32_25 : i32 to index
        %c0_26 = arith.constant 0 : index
        %c0_27 = arith.constant 0 : index
        %34 = vector.load %arg9[%33, %c0_26, %c0_27] : memref<8x2x128xf32, #tpu.memory_space<vmem>>, vector<1x2x128xf32>
        %35 = vector.shape_cast %34 : vector<1x2x128xf32> to vector<2x128xf32>
        %cst = arith.constant dense<0.000000e+00> : vector<2x128xf32>
        %36 = tpu.matmul %31, %21, %cst {dimension_numbers = #tpu.dot_dimension_numbers<[1], [0], [0], [1], [0, 0, 1, 1], [], []>} : vector<2x32xf32>, vector<32x128xf32>, vector<2x128xf32> -> vector<2x128xf32>
        %37 = arith.addf %35, %36 : vector<2x128xf32>
        %38 = vector.extract_strided_slice %37 {offsets = [0, 0], sizes = [2, 32], strides = [1, 1]} : vector<2x128xf32> to vector<2x32xf32>
        %39 = arith.negf %38 : vector<2x32xf32>
        %40 = math.exp %39 : vector<2x32xf32>
        %cst_28 = arith.constant 1.000000e+00 : f32
        %41 = vector.broadcast %cst_28 : f32 to vector<2x32xf32>
        %42 = arith.addf %41, %40 : vector<2x32xf32>
        %43 = arith.divf %41, %42 : vector<2x32xf32>
        %44 = vector.extract_strided_slice %37 {offsets = [0, 32], sizes = [2, 32], strides = [1, 1]} : vector<2x128xf32> to vector<2x32xf32>
        %45 = arith.negf %44 : vector<2x32xf32>
        %46 = math.exp %45 : vector<2x32xf32>
        %cst_29 = arith.constant 1.000000e+00 : f32
        %47 = vector.broadcast %cst_29 : f32 to vector<2x32xf32>
        %48 = arith.addf %47, %46 : vector<2x32xf32>
        %49 = arith.divf %47, %48 : vector<2x32xf32>
        %50 = vector.extract_strided_slice %37 {offsets = [0, 64], sizes = [2, 32], strides = [1, 1]} : vector<2x128xf32> to vector<2x32xf32>
        %51 = math.tanh %50 : vector<2x32xf32>
        %52 = vector.extract_strided_slice %37 {offsets = [0, 96], sizes = [2, 32], strides = [1, 1]} : vector<2x128xf32> to vector<2x32xf32>
        %53 = arith.negf %52 : vector<2x32xf32>
        %54 = math.exp %53 : vector<2x32xf32>
        %cst_30 = arith.constant 1.000000e+00 : f32
        %55 = vector.broadcast %cst_30 : f32 to vector<2x32xf32>
        %56 = arith.addf %55, %54 : vector<2x32xf32>
        %57 = arith.divf %55, %56 : vector<2x32xf32>
        %58 = arith.mulf %49, %32 : vector<2x32xf32>
        %59 = arith.mulf %43, %51 : vector<2x32xf32>
        %60 = arith.addf %58, %59 : vector<2x32xf32>
        %61 = math.tanh %60 : vector<2x32xf32>
        %62 = arith.mulf %57, %61 : vector<2x32xf32>
        %63 = arith.addi %11, %c0_i32_25 : i32
        %64 = vector.broadcast %63 : i32 to vector<2x1xi32>
        %65 = arith.cmpi sgt, %22, %64 : vector<2x1xi32>
        %66 = vector.shape_cast %65 : vector<2x1xi1> to vector<2x1xi1>
        %67 = vector.broadcast %66 : vector<2x1xi1> to vector<2x32xi1>
        %68 = arith.select %67, %62, %31 : vector<2x32xi1>, vector<2x32xf32>
        %69 = vector.shape_cast %65 : vector<2x1xi1> to vector<2x1xi1>
        %70 = vector.broadcast %69 : vector<2x1xi1> to vector<2x32xi1>
        %71 = arith.select %70, %60, %32 : vector<2x32xi1>, vector<2x32xf32>
        %c1_i32_31 = arith.constant 1 : i32
        %72 = arith.index_cast %c1_i32_31 : i32 to index
        %c0_32 = arith.constant 0 : index
        %c0_33 = arith.constant 0 : index
        %73 = vector.load %arg9[%72, %c0_32, %c0_33] : memref<8x2x128xf32, #tpu.memory_space<vmem>>, vector<1x2x128xf32>
        %74 = vector.shape_cast %73 : vector<1x2x128xf32> to vector<2x128xf32>
        %cst_34 = arith.constant dense<0.000000e+00> : vector<2x128xf32>
        %75 = tpu.matmul %68, %21, %cst_34 {dimension_numbers = #tpu.dot_dimension_numbers<[1], [0], [0], [1], [0, 0, 1, 1], [], []>} : vector<2x32xf32>, vector<32x128xf32>, vector<2x128xf32> -> vector<2x128xf32>
        %76 = arith.addf %74, %75 : vector<2x128xf32>
        %77 = vector.extract_strided_slice %76 {offsets = [0, 0], sizes = [2, 32], strides = [1, 1]} : vector<2x128xf32> to vector<2x32xf32>
        %78 = arith.negf %77 : vector<2x32xf32>
        %79 = math.exp %78 : vector<2x32xf32>
        %cst_35 = arith.constant 1.000000e+00 : f32
        %80 = vector.broadcast %cst_35 : f32 to vector<2x32xf32>
        %81 = arith.addf %80, %79 : vector<2x32xf32>
        %82 = arith.divf %80, %81 : vector<2x32xf32>
        %83 = vector.extract_strided_slice %76 {offsets = [0, 32], sizes = [2, 32], strides = [1, 1]} : vector<2x128xf32> to vector<2x32xf32>
        %84 = arith.negf %83 : vector<2x32xf32>
        %85 = math.exp %84 : vector<2x32xf32>
        %cst_36 = arith.constant 1.000000e+00 : f32
        %86 = vector.broadcast %cst_36 : f32 to vector<2x32xf32>
        %87 = arith.addf %86, %85 : vector<2x32xf32>
        %88 = arith.divf %86, %87 : vector<2x32xf32>
        %89 = vector.extract_strided_slice %76 {offsets = [0, 64], sizes = [2, 32], strides = [1, 1]} : vector<2x128xf32> to vector<2x32xf32>
        %90 = math.tanh %89 : vector<2x32xf32>
        %91 = vector.extract_strided_slice %76 {offsets = [0, 96], sizes = [2, 32], strides = [1, 1]} : vector<2x128xf32> to vector<2x32xf32>
        %92 = arith.negf %91 : vector<2x32xf32>
        %93 = math.exp %92 : vector<2x32xf32>
        %cst_37 = arith.constant 1.000000e+00 : f32
        %94 = vector.broadcast %cst_37 : f32 to vector<2x32xf32>
        %95 = arith.addf %94, %93 : vector<2x32xf32>
        %96 = arith.divf %94, %95 : vector<2x32xf32>
        %97 = arith.mulf %88, %71 : vector<2x32xf32>
        %98 = arith.mulf %82, %90 : vector<2x32xf32>
        %99 = arith.addf %97, %98 : vector<2x32xf32>
        %100 = math.tanh %99 : vector<2x32xf32>
        %101 = arith.mulf %96, %100 : vector<2x32xf32>
        %102 = arith.addi %11, %c1_i32_31 : i32
        %103 = vector.broadcast %102 : i32 to vector<2x1xi32>
        %104 = arith.cmpi sgt, %22, %103 : vector<2x1xi32>
        %105 = vector.shape_cast %104 : vector<2x1xi1> to vector<2x1xi1>
        %106 = vector.broadcast %105 : vector<2x1xi1> to vector<2x32xi1>
        %107 = arith.select %106, %101, %68 : vector<2x32xi1>, vector<2x32xf32>
        %108 = vector.shape_cast %104 : vector<2x1xi1> to vector<2x1xi1>
        %109 = vector.broadcast %108 : vector<2x1xi1> to vector<2x32xi1>
        %110 = arith.select %109, %99, %71 : vector<2x32xi1>, vector<2x32xf32>
        %c2_i32_38 = arith.constant 2 : i32
        %111 = arith.index_cast %c2_i32_38 : i32 to index
        %c0_39 = arith.constant 0 : index
        %c0_40 = arith.constant 0 : index
        %112 = vector.load %arg9[%111, %c0_39, %c0_40] : memref<8x2x128xf32, #tpu.memory_space<vmem>>, vector<1x2x128xf32>
        %113 = vector.shape_cast %112 : vector<1x2x128xf32> to vector<2x128xf32>
        %cst_41 = arith.constant dense<0.000000e+00> : vector<2x128xf32>
        %114 = tpu.matmul %107, %21, %cst_41 {dimension_numbers = #tpu.dot_dimension_numbers<[1], [0], [0], [1], [0, 0, 1, 1], [], []>} : vector<2x32xf32>, vector<32x128xf32>, vector<2x128xf32> -> vector<2x128xf32>
        %115 = arith.addf %113, %114 : vector<2x128xf32>
        %116 = vector.extract_strided_slice %115 {offsets = [0, 0], sizes = [2, 32], strides = [1, 1]} : vector<2x128xf32> to vector<2x32xf32>
        %117 = arith.negf %116 : vector<2x32xf32>
        %118 = math.exp %117 : vector<2x32xf32>
        %cst_42 = arith.constant 1.000000e+00 : f32
        %119 = vector.broadcast %cst_42 : f32 to vector<2x32xf32>
        %120 = arith.addf %119, %118 : vector<2x32xf32>
        %121 = arith.divf %119, %120 : vector<2x32xf32>
        %122 = vector.extract_strided_slice %115 {offsets = [0, 32], sizes = [2, 32], strides = [1, 1]} : vector<2x128xf32> to vector<2x32xf32>
        %123 = arith.negf %122 : vector<2x32xf32>
        %124 = math.exp %123 : vector<2x32xf32>
        %cst_43 = arith.constant 1.000000e+00 : f32
        %125 = vector.broadcast %cst_43 : f32 to vector<2x32xf32>
        %126 = arith.addf %125, %124 : vector<2x32xf32>
        %127 = arith.divf %125, %126 : vector<2x32xf32>
        %128 = vector.extract_strided_slice %115 {offsets = [0, 64], sizes = [2, 32], strides = [1, 1]} : vector<2x128xf32> to vector<2x32xf32>
        %129 = math.tanh %128 : vector<2x32xf32>
        %130 = vector.extract_strided_slice %115 {offsets = [0, 96], sizes = [2, 32], strides = [1, 1]} : vector<2x128xf32> to vector<2x32xf32>
        %131 = arith.negf %130 : vector<2x32xf32>
        %132 = math.exp %131 : vector<2x32xf32>
        %cst_44 = arith.constant 1.000000e+00 : f32
        %133 = vector.broadcast %cst_44 : f32 to vector<2x32xf32>
        %134 = arith.addf %133, %132 : vector<2x32xf32>
        %135 = arith.divf %133, %134 : vector<2x32xf32>
        %136 = arith.mulf %127, %110 : vector<2x32xf32>
        %137 = arith.mulf %121, %129 : vector<2x32xf32>
        %138 = arith.addf %136, %137 : vector<2x32xf32>
        %139 = math.tanh %138 : vector<2x32xf32>
        %140 = arith.mulf %135, %139 : vector<2x32xf32>
        %141 = arith.addi %11, %c2_i32_38 : i32
        %142 = vector.broadcast %141 : i32 to vector<2x1xi32>
        %143 = arith.cmpi sgt, %22, %142 : vector<2x1xi32>
        %144 = vector.shape_cast %143 : vector<2x1xi1> to vector<2x1xi1>
        %145 = vector.broadcast %144 : vector<2x1xi1> to vector<2x32xi1>
        %146 = arith.select %145, %140, %107 : vector<2x32xi1>, vector<2x32xf32>
        %147 = vector.shape_cast %143 : vector<2x1xi1> to vector<2x1xi1>
        %148 = vector.broadcast %147 : vector<2x1xi1> to vector<2x32xi1>
        %149 = arith.select %148, %138, %110 : vector<2x32xi1>, vector<2x32xf32>
        %c3_i32 = arith.constant 3 : i32
        %150 = arith.index_cast %c3_i32 : i32 to index
        %c0_45 = arith.constant 0 : index
        %c0_46 = arith.constant 0 : index
        %151 = vector.load %arg9[%150, %c0_45, %c0_46] : memref<8x2x128xf32, #tpu.memory_space<vmem>>, vector<1x2x128xf32>
        %152 = vector.shape_cast %151 : vector<1x2x128xf32> to vector<2x128xf32>
        %cst_47 = arith.constant dense<0.000000e+00> : vector<2x128xf32>
        %153 = tpu.matmul %146, %21, %cst_47 {dimension_numbers = #tpu.dot_dimension_numbers<[1], [0], [0], [1], [0, 0, 1, 1], [], []>} : vector<2x32xf32>, vector<32x128xf32>, vector<2x128xf32> -> vector<2x128xf32>
        %154 = arith.addf %152, %153 : vector<2x128xf32>
        %155 = vector.extract_strided_slice %154 {offsets = [0, 0], sizes = [2, 32], strides = [1, 1]} : vector<2x128xf32> to vector<2x32xf32>
        %156 = arith.negf %155 : vector<2x32xf32>
        %157 = math.exp %156 : vector<2x32xf32>
        %cst_48 = arith.constant 1.000000e+00 : f32
        %158 = vector.broadcast %cst_48 : f32 to vector<2x32xf32>
        %159 = arith.addf %158, %157 : vector<2x32xf32>
        %160 = arith.divf %158, %159 : vector<2x32xf32>
        %161 = vector.extract_strided_slice %154 {offsets = [0, 32], sizes = [2, 32], strides = [1, 1]} : vector<2x128xf32> to vector<2x32xf32>
        %162 = arith.negf %161 : vector<2x32xf32>
        %163 = math.exp %162 : vector<2x32xf32>
        %cst_49 = arith.constant 1.000000e+00 : f32
        %164 = vector.broadcast %cst_49 : f32 to vector<2x32xf32>
        %165 = arith.addf %164, %163 : vector<2x32xf32>
        %166 = arith.divf %164, %165 : vector<2x32xf32>
        %167 = vector.extract_strided_slice %154 {offsets = [0, 64], sizes = [2, 32], strides = [1, 1]} : vector<2x128xf32> to vector<2x32xf32>
        %168 = math.tanh %167 : vector<2x32xf32>
        %169 = vector.extract_strided_slice %154 {offsets = [0, 96], sizes = [2, 32], strides = [1, 1]} : vector<2x128xf32> to vector<2x32xf32>
        %170 = arith.negf %169 : vector<2x32xf32>
        %171 = math.exp %170 : vector<2x32xf32>
        %cst_50 = arith.constant 1.000000e+00 : f32
        %172 = vector.broadcast %cst_50 : f32 to vector<2x32xf32>
        %173 = arith.addf %172, %171 : vector<2x32xf32>
        %174 = arith.divf %172, %173 : vector<2x32xf32>
        %175 = arith.mulf %166, %149 : vector<2x32xf32>
        %176 = arith.mulf %160, %168 : vector<2x32xf32>
        %177 = arith.addf %175, %176 : vector<2x32xf32>
        %178 = math.tanh %177 : vector<2x32xf32>
        %179 = arith.mulf %174, %178 : vector<2x32xf32>
        %180 = arith.addi %11, %c3_i32 : i32
        %181 = vector.broadcast %180 : i32 to vector<2x1xi32>
        %182 = arith.cmpi sgt, %22, %181 : vector<2x1xi32>
        %183 = vector.shape_cast %182 : vector<2x1xi1> to vector<2x1xi1>
        %184 = vector.broadcast %183 : vector<2x1xi1> to vector<2x32xi1>
        %185 = arith.select %184, %179, %146 : vector<2x32xi1>, vector<2x32xf32>
        %186 = vector.shape_cast %182 : vector<2x1xi1> to vector<2x1xi1>
        %187 = vector.broadcast %186 : vector<2x1xi1> to vector<2x32xi1>
        %188 = arith.select %187, %177, %149 : vector<2x32xi1>, vector<2x32xf32>
        %c4_i32 = arith.constant 4 : i32
        %189 = arith.index_cast %c4_i32 : i32 to index
        %c0_51 = arith.constant 0 : index
        %c0_52 = arith.constant 0 : index
        %190 = vector.load %arg9[%189, %c0_51, %c0_52] : memref<8x2x128xf32, #tpu.memory_space<vmem>>, vector<1x2x128xf32>
        %191 = vector.shape_cast %190 : vector<1x2x128xf32> to vector<2x128xf32>
        %cst_53 = arith.constant dense<0.000000e+00> : vector<2x128xf32>
        %192 = tpu.matmul %185, %21, %cst_53 {dimension_numbers = #tpu.dot_dimension_numbers<[1], [0], [0], [1], [0, 0, 1, 1], [], []>} : vector<2x32xf32>, vector<32x128xf32>, vector<2x128xf32> -> vector<2x128xf32>
        %193 = arith.addf %191, %192 : vector<2x128xf32>
        %194 = vector.extract_strided_slice %193 {offsets = [0, 0], sizes = [2, 32], strides = [1, 1]} : vector<2x128xf32> to vector<2x32xf32>
        %195 = arith.negf %194 : vector<2x32xf32>
        %196 = math.exp %195 : vector<2x32xf32>
        %cst_54 = arith.constant 1.000000e+00 : f32
        %197 = vector.broadcast %cst_54 : f32 to vector<2x32xf32>
        %198 = arith.addf %197, %196 : vector<2x32xf32>
        %199 = arith.divf %197, %198 : vector<2x32xf32>
        %200 = vector.extract_strided_slice %193 {offsets = [0, 32], sizes = [2, 32], strides = [1, 1]} : vector<2x128xf32> to vector<2x32xf32>
        %201 = arith.negf %200 : vector<2x32xf32>
        %202 = math.exp %201 : vector<2x32xf32>
        %cst_55 = arith.constant 1.000000e+00 : f32
        %203 = vector.broadcast %cst_55 : f32 to vector<2x32xf32>
        %204 = arith.addf %203, %202 : vector<2x32xf32>
        %205 = arith.divf %203, %204 : vector<2x32xf32>
        %206 = vector.extract_strided_slice %193 {offsets = [0, 64], sizes = [2, 32], strides = [1, 1]} : vector<2x128xf32> to vector<2x32xf32>
        %207 = math.tanh %206 : vector<2x32xf32>
        %208 = vector.extract_strided_slice %193 {offsets = [0, 96], sizes = [2, 32], strides = [1, 1]} : vector<2x128xf32> to vector<2x32xf32>
        %209 = arith.negf %208 : vector<2x32xf32>
        %210 = math.exp %209 : vector<2x32xf32>
        %cst_56 = arith.constant 1.000000e+00 : f32
        %211 = vector.broadcast %cst_56 : f32 to vector<2x32xf32>
        %212 = arith.addf %211, %210 : vector<2x32xf32>
        %213 = arith.divf %211, %212 : vector<2x32xf32>
        %214 = arith.mulf %205, %188 : vector<2x32xf32>
        %215 = arith.mulf %199, %207 : vector<2x32xf32>
        %216 = arith.addf %214, %215 : vector<2x32xf32>
        %217 = math.tanh %216 : vector<2x32xf32>
        %218 = arith.mulf %213, %217 : vector<2x32xf32>
        %219 = arith.addi %11, %c4_i32 : i32
        %220 = vector.broadcast %219 : i32 to vector<2x1xi32>
        %221 = arith.cmpi sgt, %22, %220 : vector<2x1xi32>
        %222 = vector.shape_cast %221 : vector<2x1xi1> to vector<2x1xi1>
        %223 = vector.broadcast %222 : vector<2x1xi1> to vector<2x32xi1>
        %224 = arith.select %223, %218, %185 : vector<2x32xi1>, vector<2x32xf32>
        %225 = vector.shape_cast %221 : vector<2x1xi1> to vector<2x1xi1>
        %226 = vector.broadcast %225 : vector<2x1xi1> to vector<2x32xi1>
        %227 = arith.select %226, %216, %188 : vector<2x32xi1>, vector<2x32xf32>
        %c5_i32 = arith.constant 5 : i32
        %228 = arith.index_cast %c5_i32 : i32 to index
        %c0_57 = arith.constant 0 : index
        %c0_58 = arith.constant 0 : index
        %229 = vector.load %arg9[%228, %c0_57, %c0_58] : memref<8x2x128xf32, #tpu.memory_space<vmem>>, vector<1x2x128xf32>
        %230 = vector.shape_cast %229 : vector<1x2x128xf32> to vector<2x128xf32>
        %cst_59 = arith.constant dense<0.000000e+00> : vector<2x128xf32>
        %231 = tpu.matmul %224, %21, %cst_59 {dimension_numbers = #tpu.dot_dimension_numbers<[1], [0], [0], [1], [0, 0, 1, 1], [], []>} : vector<2x32xf32>, vector<32x128xf32>, vector<2x128xf32> -> vector<2x128xf32>
        %232 = arith.addf %230, %231 : vector<2x128xf32>
        %233 = vector.extract_strided_slice %232 {offsets = [0, 0], sizes = [2, 32], strides = [1, 1]} : vector<2x128xf32> to vector<2x32xf32>
        %234 = arith.negf %233 : vector<2x32xf32>
        %235 = math.exp %234 : vector<2x32xf32>
        %cst_60 = arith.constant 1.000000e+00 : f32
        %236 = vector.broadcast %cst_60 : f32 to vector<2x32xf32>
        %237 = arith.addf %236, %235 : vector<2x32xf32>
        %238 = arith.divf %236, %237 : vector<2x32xf32>
        %239 = vector.extract_strided_slice %232 {offsets = [0, 32], sizes = [2, 32], strides = [1, 1]} : vector<2x128xf32> to vector<2x32xf32>
        %240 = arith.negf %239 : vector<2x32xf32>
        %241 = math.exp %240 : vector<2x32xf32>
        %cst_61 = arith.constant 1.000000e+00 : f32
        %242 = vector.broadcast %cst_61 : f32 to vector<2x32xf32>
        %243 = arith.addf %242, %241 : vector<2x32xf32>
        %244 = arith.divf %242, %243 : vector<2x32xf32>
        %245 = vector.extract_strided_slice %232 {offsets = [0, 64], sizes = [2, 32], strides = [1, 1]} : vector<2x128xf32> to vector<2x32xf32>
        %246 = math.tanh %245 : vector<2x32xf32>
        %247 = vector.extract_strided_slice %232 {offsets = [0, 96], sizes = [2, 32], strides = [1, 1]} : vector<2x128xf32> to vector<2x32xf32>
        %248 = arith.negf %247 : vector<2x32xf32>
        %249 = math.exp %248 : vector<2x32xf32>
        %cst_62 = arith.constant 1.000000e+00 : f32
        %250 = vector.broadcast %cst_62 : f32 to vector<2x32xf32>
        %251 = arith.addf %250, %249 : vector<2x32xf32>
        %252 = arith.divf %250, %251 : vector<2x32xf32>
        %253 = arith.mulf %244, %227 : vector<2x32xf32>
        %254 = arith.mulf %238, %246 : vector<2x32xf32>
        %255 = arith.addf %253, %254 : vector<2x32xf32>
        %256 = math.tanh %255 : vector<2x32xf32>
        %257 = arith.mulf %252, %256 : vector<2x32xf32>
        %258 = arith.addi %11, %c5_i32 : i32
        %259 = vector.broadcast %258 : i32 to vector<2x1xi32>
        %260 = arith.cmpi sgt, %22, %259 : vector<2x1xi32>
        %261 = vector.shape_cast %260 : vector<2x1xi1> to vector<2x1xi1>
        %262 = vector.broadcast %261 : vector<2x1xi1> to vector<2x32xi1>
        %263 = arith.select %262, %257, %224 : vector<2x32xi1>, vector<2x32xf32>
        %264 = vector.shape_cast %260 : vector<2x1xi1> to vector<2x1xi1>
        %265 = vector.broadcast %264 : vector<2x1xi1> to vector<2x32xi1>
        %266 = arith.select %265, %255, %227 : vector<2x32xi1>, vector<2x32xf32>
        %c6_i32 = arith.constant 6 : i32
        %267 = arith.index_cast %c6_i32 : i32 to index
        %c0_63 = arith.constant 0 : index
        %c0_64 = arith.constant 0 : index
        %268 = vector.load %arg9[%267, %c0_63, %c0_64] : memref<8x2x128xf32, #tpu.memory_space<vmem>>, vector<1x2x128xf32>
        %269 = vector.shape_cast %268 : vector<1x2x128xf32> to vector<2x128xf32>
        %cst_65 = arith.constant dense<0.000000e+00> : vector<2x128xf32>
        %270 = tpu.matmul %263, %21, %cst_65 {dimension_numbers = #tpu.dot_dimension_numbers<[1], [0], [0], [1], [0, 0, 1, 1], [], []>} : vector<2x32xf32>, vector<32x128xf32>, vector<2x128xf32> -> vector<2x128xf32>
        %271 = arith.addf %269, %270 : vector<2x128xf32>
        %272 = vector.extract_strided_slice %271 {offsets = [0, 0], sizes = [2, 32], strides = [1, 1]} : vector<2x128xf32> to vector<2x32xf32>
        %273 = arith.negf %272 : vector<2x32xf32>
        %274 = math.exp %273 : vector<2x32xf32>
        %cst_66 = arith.constant 1.000000e+00 : f32
        %275 = vector.broadcast %cst_66 : f32 to vector<2x32xf32>
        %276 = arith.addf %275, %274 : vector<2x32xf32>
        %277 = arith.divf %275, %276 : vector<2x32xf32>
        %278 = vector.extract_strided_slice %271 {offsets = [0, 32], sizes = [2, 32], strides = [1, 1]} : vector<2x128xf32> to vector<2x32xf32>
        %279 = arith.negf %278 : vector<2x32xf32>
        %280 = math.exp %279 : vector<2x32xf32>
        %cst_67 = arith.constant 1.000000e+00 : f32
        %281 = vector.broadcast %cst_67 : f32 to vector<2x32xf32>
        %282 = arith.addf %281, %280 : vector<2x32xf32>
        %283 = arith.divf %281, %282 : vector<2x32xf32>
        %284 = vector.extract_strided_slice %271 {offsets = [0, 64], sizes = [2, 32], strides = [1, 1]} : vector<2x128xf32> to vector<2x32xf32>
        %285 = math.tanh %284 : vector<2x32xf32>
        %286 = vector.extract_strided_slice %271 {offsets = [0, 96], sizes = [2, 32], strides = [1, 1]} : vector<2x128xf32> to vector<2x32xf32>
        %287 = arith.negf %286 : vector<2x32xf32>
        %288 = math.exp %287 : vector<2x32xf32>
        %cst_68 = arith.constant 1.000000e+00 : f32
        %289 = vector.broadcast %cst_68 : f32 to vector<2x32xf32>
        %290 = arith.addf %289, %288 : vector<2x32xf32>
        %291 = arith.divf %289, %290 : vector<2x32xf32>
        %292 = arith.mulf %283, %266 : vector<2x32xf32>
        %293 = arith.mulf %277, %285 : vector<2x32xf32>
        %294 = arith.addf %292, %293 : vector<2x32xf32>
        %295 = math.tanh %294 : vector<2x32xf32>
        %296 = arith.mulf %291, %295 : vector<2x32xf32>
        %297 = arith.addi %11, %c6_i32 : i32
        %298 = vector.broadcast %297 : i32 to vector<2x1xi32>
        %299 = arith.cmpi sgt, %22, %298 : vector<2x1xi32>
        %300 = vector.shape_cast %299 : vector<2x1xi1> to vector<2x1xi1>
        %301 = vector.broadcast %300 : vector<2x1xi1> to vector<2x32xi1>
        %302 = arith.select %301, %296, %263 : vector<2x32xi1>, vector<2x32xf32>
        %303 = vector.shape_cast %299 : vector<2x1xi1> to vector<2x1xi1>
        %304 = vector.broadcast %303 : vector<2x1xi1> to vector<2x32xi1>
        %305 = arith.select %304, %294, %266 : vector<2x32xi1>, vector<2x32xf32>
        %c7_i32 = arith.constant 7 : i32
        %306 = arith.index_cast %c7_i32 : i32 to index
        %c0_69 = arith.constant 0 : index
        %c0_70 = arith.constant 0 : index
        %307 = vector.load %arg9[%306, %c0_69, %c0_70] : memref<8x2x128xf32, #tpu.memory_space<vmem>>, vector<1x2x128xf32>
        %308 = vector.shape_cast %307 : vector<1x2x128xf32> to vector<2x128xf32>
        %cst_71 = arith.constant dense<0.000000e+00> : vector<2x128xf32>
        %309 = tpu.matmul %302, %21, %cst_71 {dimension_numbers = #tpu.dot_dimension_numbers<[1], [0], [0], [1], [0, 0, 1, 1], [], []>} : vector<2x32xf32>, vector<32x128xf32>, vector<2x128xf32> -> vector<2x128xf32>
        %310 = arith.addf %308, %309 : vector<2x128xf32>
        %311 = vector.extract_strided_slice %310 {offsets = [0, 0], sizes = [2, 32], strides = [1, 1]} : vector<2x128xf32> to vector<2x32xf32>
        %312 = arith.negf %311 : vector<2x32xf32>
        %313 = math.exp %312 : vector<2x32xf32>
        %cst_72 = arith.constant 1.000000e+00 : f32
        %314 = vector.broadcast %cst_72 : f32 to vector<2x32xf32>
        %315 = arith.addf %314, %313 : vector<2x32xf32>
        %316 = arith.divf %314, %315 : vector<2x32xf32>
        %317 = vector.extract_strided_slice %310 {offsets = [0, 32], sizes = [2, 32], strides = [1, 1]} : vector<2x128xf32> to vector<2x32xf32>
        %318 = arith.negf %317 : vector<2x32xf32>
        %319 = math.exp %318 : vector<2x32xf32>
        %cst_73 = arith.constant 1.000000e+00 : f32
        %320 = vector.broadcast %cst_73 : f32 to vector<2x32xf32>
        %321 = arith.addf %320, %319 : vector<2x32xf32>
        %322 = arith.divf %320, %321 : vector<2x32xf32>
        %323 = vector.extract_strided_slice %310 {offsets = [0, 64], sizes = [2, 32], strides = [1, 1]} : vector<2x128xf32> to vector<2x32xf32>
        %324 = math.tanh %323 : vector<2x32xf32>
        %325 = vector.extract_strided_slice %310 {offsets = [0, 96], sizes = [2, 32], strides = [1, 1]} : vector<2x128xf32> to vector<2x32xf32>
        %326 = arith.negf %325 : vector<2x32xf32>
        %327 = math.exp %326 : vector<2x32xf32>
        %cst_74 = arith.constant 1.000000e+00 : f32
        %328 = vector.broadcast %cst_74 : f32 to vector<2x32xf32>
        %329 = arith.addf %328, %327 : vector<2x32xf32>
        %330 = arith.divf %328, %329 : vector<2x32xf32>
        %331 = arith.mulf %322, %305 : vector<2x32xf32>
        %332 = arith.mulf %316, %324 : vector<2x32xf32>
        %333 = arith.addf %331, %332 : vector<2x32xf32>
        %334 = math.tanh %333 : vector<2x32xf32>
        %335 = arith.mulf %330, %334 : vector<2x32xf32>
        %336 = arith.addi %11, %c7_i32 : i32
        %337 = vector.broadcast %336 : i32 to vector<2x1xi32>
        %338 = arith.cmpi sgt, %22, %337 : vector<2x1xi32>
        %339 = vector.shape_cast %338 : vector<2x1xi1> to vector<2x1xi1>
        %340 = vector.broadcast %339 : vector<2x1xi1> to vector<2x32xi1>
        %341 = arith.select %340, %335, %302 : vector<2x32xi1>, vector<2x32xf32>
        %342 = vector.shape_cast %338 : vector<2x1xi1> to vector<2x1xi1>
        %343 = vector.broadcast %342 : vector<2x1xi1> to vector<2x32xi1>
        %344 = arith.select %343, %333, %305 : vector<2x32xi1>, vector<2x32xf32>
        %c8_i32_75 = arith.constant 8 : i32
        %c0_76 = arith.constant 0 : index
        %c0_77 = arith.constant 0 : index
        %345 = vector.load %arg10[%c0_76, %c0_77] : memref<2x32xf32, #tpu.memory_space<vmem>>, vector<2x32xf32>
        tpu.vector_store %arg10[%c0_76, %c0_77], %341 {strides = array<i32>} : memref<2x32xf32, #tpu.memory_space<vmem>>, vector<2x32xf32>,
        %c0_78 = arith.constant 0 : index
        %c0_79 = arith.constant 0 : index
        %346 = vector.load %arg11[%c0_78, %c0_79] : memref<2x32xf32, #tpu.memory_space<vmem>>, vector<2x32xf32>
        tpu.vector_store %arg11[%c0_78, %c0_79], %344 {strides = array<i32>} : memref<2x32xf32, #tpu.memory_space<vmem>>, vector<2x32xf32>,
      } else {
      }
    } else {
    }
    %c0_i32_4 = arith.constant 0 : i32
    %15 = arith.cmpi eq, %arg1, %c0_i32_4 : i32
    %16 = arith.extui %15 : i1 to i32
    %c0_i32_5 = arith.constant 0 : i32
    %17 = arith.cmpi ne, %16, %c0_i32_5 : i32
    scf.if %17 {
      %c0 = arith.constant 0 : index
      %c0_6 = arith.constant 0 : index
      %18 = vector.load %arg10[%c0, %c0_6] : memref<2x32xf32, #tpu.memory_space<vmem>>, vector<2x32xf32>
      %c0_7 = arith.constant 0 : index
      %c0_8 = arith.constant 0 : index
      %19 = vector.load %arg8[%c0_7, %c0_8] : memref<2x32xf32, #tpu.memory_space<vmem>>, vector<2x32xf32>
      tpu.vector_store %arg8[%c0_7, %c0_8], %18 {strides = array<i32>} : memref<2x32xf32, #tpu.memory_space<vmem>>, vector<2x32xf32>,
    } else {
    }
    return
  }
  func.func @transform_0(%arg0: i32, %arg1: i32, %arg2: memref<2xi32, #tpu.memory_space<smem>>) -> (i32, i32, i32) {
    %c2_i32 = arith.constant 2 : i32
    %0 = arith.muli %arg0, %c2_i32 : i32
    %1 = arith.index_cast %0 : i32 to index
    %2 = memref.load %arg2[%1] : memref<2xi32, #tpu.memory_space<smem>>
    %c1_i32 = arith.constant 1 : i32
    %3 = arith.subi %2, %c1_i32 : i32
    %c0_i32 = arith.constant 0 : i32
    %4 = arith.maxsi %3, %c0_i32 : i32
    %c8_i32 = arith.constant 8 : i32
    %5 = arith.divsi %4, %c8_i32 : i32
    %6 = arith.minsi %arg1, %5 : i32
    %c0_i32_0 = arith.constant 0 : i32
    %c0_i32_1 = arith.constant 0 : i32
    return %6, %arg0, %c0_i32_0 : i32, i32, i32
  }
  func.func @transform_1(%arg0: i32, %arg1: i32, %arg2: memref<2xi32, #tpu.memory_space<smem>>) -> (i32, i32) {
    %c0_i32 = arith.constant 0 : i32
    %c0_i32_0 = arith.constant 0 : i32
    return %arg0, %c0_i32 : i32, i32
  }
  func.func @transform_2(%arg0: i32, %arg1: i32, %arg2: memref<2xi32, #tpu.memory_space<smem>>) -> (i32, i32) {
    %c0_i32 = arith.constant 0 : i32
    %c0_i32_0 = arith.constant 0 : i32
    %c0_i32_1 = arith.constant 0 : i32
    return %c0_i32, %c0_i32_0 : i32, i32
  }
  func.func @transform_3(%arg0: i32, %arg1: i32, %arg2: memref<2xi32, #tpu.memory_space<smem>>) -> (i32, i32) {
    %c0_i32 = arith.constant 0 : i32
    %c0_i32_0 = arith.constant 0 : i32
    %c0_i32_1 = arith.constant 0 : i32
    return %c0_i32, %c0_i32_0 : i32, i32
  }
  func.func @transform_4(%arg0: i32, %arg1: i32, %arg2: memref<2xi32, #tpu.memory_space<smem>>) -> (i32, i32) {
    %c0_i32 = arith.constant 0 : i32
    %c0_i32_0 = arith.constant 0 : i32
    %c0_i32_1 = arith.constant 0 : i32
    return %c0_i32, %c0_i32_0 : i32, i32
  }
  func.func @transform_5(%arg0: i32, %arg1: i32, %arg2: memref<2xi32, #tpu.memory_space<smem>>) -> (i32, i32) {
    %c0_i32 = arith.constant 0 : i32
    %c0_i32_0 = arith.constant 0 : i32
    return %arg0, %c0_i32 : i32, i32
  }
}

module attributes {stable_mosaic.version = 11 : i64} {
  func.func @_padrnn_lstm_kernel(%arg0: i32, %arg1: i32, %arg2: memref<2xi32, #tpu.memory_space<smem>>, %arg3: memref<8x2x16xf32, #tpu.memory_space<vmem>>, %arg4: memref<2x1xi32, #tpu.memory_space<vmem>>, %arg5: memref<16x128xf32, #tpu.memory_space<vmem>>, %arg6: memref<32x128xf32, #tpu.memory_space<vmem>>, %arg7: memref<1x128xf32, #tpu.memory_space<vmem>>, %arg8: memref<2x32xf32, #tpu.memory_space<vmem>>, %arg9: memref<8x2x128xf32, #tpu.memory_space<vmem>>, %arg10: memref<2x32xf32, #tpu.memory_space<vmem>>, %arg11: memref<2x32xf32, #tpu.memory_space<vmem>>) attributes {dimension_semantics = [#tpu.dimension_semantics<parallel>, #tpu.dimension_semantics<arbitrary>], iteration_bounds = array<i64: 1, 1>, scalar_prefetch = 1 : i64, scratch_operands = 3 : i64, tpu.core_type = #tpu.core_type<tc>, window_params = [{transform_indices = @transform_0, window_bounds = array<i64: 8, 2, 16>}, {transform_indices = @transform_1, window_bounds = array<i64: 2, 1>}, {pipeline_mode = #tpu.pipeline_mode<synchronous>, transform_indices = @transform_2, window_bounds = array<i64: 16, 128>}, {pipeline_mode = #tpu.pipeline_mode<synchronous>, transform_indices = @transform_3, window_bounds = array<i64: 32, 128>}, {pipeline_mode = #tpu.pipeline_mode<synchronous>, transform_indices = @transform_4, window_bounds = array<i64: 1, 128>}, {transform_indices = @transform_5, window_bounds = array<i64: 2, 32>}]} {
    %c0_i32 = arith.constant 0 : i32
    %0 = arith.cmpi eq, %arg1, %c0_i32 : i32
    %1 = arith.extui %0 : i1 to i32
    %c0_i32_0 = arith.constant 0 : i32
    %2 = arith.cmpi ne, %1, %c0_i32_0 : i32
    scf.if %2 {
      %cst = arith.constant 0.000000e+00 : f32
      %18 = vector.broadcast %cst : f32 to vector<2x32xf32>
      %c0 = arith.constant 0 : index
      %c0_6 = arith.constant 0 : index
      %19 = vector.load %arg10[%c0, %c0_6] : memref<2x32xf32, #tpu.memory_space<vmem>>, vector<2x32xf32>
      tpu.vector_store %arg10[%c0, %c0_6], %18 {strides = array<i32>} : memref<2x32xf32, #tpu.memory_space<vmem>>, vector<2x32xf32>,
      %cst_7 = arith.constant 0.000000e+00 : f32
      %20 = vector.broadcast %cst_7 : f32 to vector<2x32xf32>
      %c0_8 = arith.constant 0 : index
      %c0_9 = arith.constant 0 : index
      %21 = vector.load %arg11[%c0_8, %c0_9] : memref<2x32xf32, #tpu.memory_space<vmem>>, vector<2x32xf32>
      tpu.vector_store %arg11[%c0_8, %c0_9], %20 {strides = array<i32>} : memref<2x32xf32, #tpu.memory_space<vmem>>, vector<2x32xf32>,
    } else {
    }
    %c2_i32 = arith.constant 2 : i32
    %3 = arith.muli %arg0, %c2_i32 : i32
    %4 = arith.index_cast %3 : i32 to index
    %5 = memref.load %arg2[%4] : memref<2xi32, #tpu.memory_space<smem>>
    %c2_i32_1 = arith.constant 2 : i32
    %6 = arith.muli %arg0, %c2_i32_1 : i32
    %c2_i32_2 = arith.constant 2 : i32
    %7 = arith.addi %6, %c2_i32_2 : i32
    %c1_i32 = arith.constant 1 : i32
    %8 = arith.subi %7, %c1_i32 : i32
    %9 = arith.index_cast %8 : i32 to index
    %10 = memref.load %arg2[%9] : memref<2xi32, #tpu.memory_space<smem>>
    %c8_i32 = arith.constant 8 : i32
    %11 = arith.muli %arg1, %c8_i32 : i32
    %12 = arith.cmpi slt, %11, %5 : i32
    %13 = arith.extui %12 : i1 to i32
    %c0_i32_3 = arith.constant 0 : i32
    %14 = arith.cmpi ne, %13, %c0_i32_3 : i32
    scf.if %14 {
      %c0 = arith.constant 0 : index
      %c0_6 = arith.constant 0 : index
      %18 = vector.load %arg5[%c0, %c0_6] : memref<16x128xf32, #tpu.memory_space<vmem>>, vector<16x128xf32>
      %c0_7 = arith.constant 0 : index
      %c0_8 = arith.constant 0 : index
      %19 = vector.load %arg7[%c0_7, %c0_8] : memref<1x128xf32, #tpu.memory_space<vmem>>, vector<1x128xf32>
      %c0_i32_9 = arith.constant 0 : i32
      %c8_i32_10 = arith.constant 8 : i32
      %20 = arith.addi %c0_i32_9, %c8_i32_10 : i32
      %c1_i32_11 = arith.constant 1 : i32
      scf.for %arg12 = %c0_i32_9 to %20 step %c1_i32_11  : i32 {
        %c1_i32_21 = arith.constant 1 : i32
        %31 = arith.muli %arg12, %c1_i32_21 : i32
        %c0_i32_22 = arith.constant 0 : i32
        %32 = arith.addi %c0_i32_22, %31 : i32
        %33 = arith.index_cast %32 : i32 to index
        %c0_23 = arith.constant 0 : index
        %c0_24 = arith.constant 0 : index
        %34 = vector.load %arg3[%33, %c0_23, %c0_24] : memref<8x2x16xf32, #tpu.memory_space<vmem>>, vector<1x2x16xf32>
        %35 = vector.shape_cast %34 : vector<1x2x16xf32> to vector<2x16xf32>
        %cst = arith.constant dense<0.000000e+00> : vector<2x128xf32>
        %36 = tpu.matmul %35, %18, %cst {dimension_numbers = #tpu.dot_dimension_numbers<[1], [0], [0], [1], [0, 0, 1, 1], [], []>} : vector<2x16xf32>, vector<16x128xf32>, vector<2x128xf32> -> vector<2x128xf32>
        %37 = vector.broadcast %19 : vector<1x128xf32> to vector<2x128xf32>
        %38 = arith.addf %36, %37 : vector<2x128xf32>
        %39 = arith.index_cast %32 : i32 to index
        %c0_25 = arith.constant 0 : index
        %c0_26 = arith.constant 0 : index
        %40 = vector.load %arg9[%39, %c0_25, %c0_26] : memref<8x2x128xf32, #tpu.memory_space<vmem>>, vector<1x2x128xf32>
        %41 = vector.shape_cast %40 : vector<1x2x128xf32> to vector<2x128xf32>
        %42 = vector.shape_cast %38 : vector<2x128xf32> to vector<1x2x128xf32>
        tpu.vector_store %arg9[%39, %c0_25, %c0_26], %42 {strides = array<i32>} : memref<8x2x128xf32, #tpu.memory_space<vmem>>, vector<1x2x128xf32>,
      }
      %c8_i32_12 = arith.constant 8 : i32
      %c0_13 = arith.constant 0 : index
      %c0_14 = arith.constant 0 : index
      %21 = vector.load %arg6[%c0_13, %c0_14] : memref<32x128xf32, #tpu.memory_space<vmem>>, vector<32x128xf32>
      %c0_15 = arith.constant 0 : index
      %c0_16 = arith.constant 0 : index
      %22 = vector.load %arg4[%c0_15, %c0_16] : memref<2x1xi32, #tpu.memory_space<vmem>>, vector<2x1xi32>
      %c8_i32_17 = arith.constant 8 : i32
      %23 = arith.addi %11, %c8_i32_17 : i32
      %24 = arith.cmpi sle, %23, %10 : i32
      %25 = arith.extui %24 : i1 to i32
      %c0_i32_18 = arith.constant 0 : i32
      %26 = arith.cmpi ne, %25, %c0_i32_18 : i32
      scf.if %26 {
        %c0_21 = arith.constant 0 : index
        %c0_22 = arith.constant 0 : index
        %31 = vector.load %arg10[%c0_21, %c0_22] : memref<2x32xf32, #tpu.memory_space<vmem>>, vector<2x32xf32>
        %c0_23 = arith.constant 0 : index
        %c0_24 = arith.constant 0 : index
        %32 = vector.load %arg11[%c0_23, %c0_24] : memref<2x32xf32, #tpu.memory_space<vmem>>, vector<2x32xf32>
        %c0_i32_25 = arith.constant 0 : i32
        %33 = arith.index_cast %c0_i32_25 : i32 to index
        %c0_26 = arith.constant 0 : index
        %c0_27 = arith.constant 0 : index
        %34 = vector.load %arg9[%33, %c0_26, %c0_27] : memref<8x2x128xf32, #tpu.memory_space<vmem>>, vector<1x2x128xf32>
        %35 = vector.shape_cast %34 : vector<1x2x128xf32> to vector<2x128xf32>
        %cst = arith.constant dense<0.000000e+00> : vector<2x128xf32>
        %36 = tpu.matmul %31, %21, %cst {dimension_numbers = #tpu.dot_dimension_numbers<[1], [0], [0], [1], [0, 0, 1, 1], [], []>} : vector<2x32xf32>, vector<32x128xf32>, vector<2x128xf32> -> vector<2x128xf32>
        %37 = arith.addf %35, %36 : vector<2x128xf32>
        %38 = vector.extract_strided_slice %37 {offsets = [0, 0], sizes = [2, 32], strides = [1, 1]} : vector<2x128xf32> to vector<2x32xf32>
        %39 = arith.negf %38 : vector<2x32xf32>
        %40 = math.exp %39 : vector<2x32xf32>
        %cst_28 = arith.constant 1.000000e+00 : f32
        %41 = vector.broadcast %cst_28 : f32 to vector<2x32xf32>
        %42 = arith.addf %41, %40 : vector<2x32xf32>
        %43 = arith.divf %41, %42 : vector<2x32xf32>
        %44 = vector.extract_strided_slice %37 {offsets = [0, 32], sizes = [2, 32], strides = [1, 1]} : vector<2x128xf32> to vector<2x32xf32>
        %45 = arith.negf %44 : vector<2x32xf32>
        %46 = math.exp %45 : vector<2x32xf32>
        %cst_29 = arith.constant 1.000000e+00 : f32
        %47 = vector.broadcast %cst_29 : f32 to vector<2x32xf32>
        %48 = arith.addf %47, %46 : vector<2x32xf32>
        %49 = arith.divf %47, %48 : vector<2x32xf32>
        %50 = vector.extract_strided_slice %37 {offsets = [0, 64], sizes = [2, 32], strides = [1, 1]} : vector<2x128xf32> to vector<2x32xf32>
        %51 = math.tanh %50 : vector<2x32xf32>
        %52 = vector.extract_strided_slice %37 {offsets = [0, 96], sizes = [2, 32], strides = [1, 1]} : vector<2x128xf32> to vector<2x32xf32>
        %53 = arith.negf %52 : vector<2x32xf32>
        %54 = math.exp %53 : vector<2x32xf32>
        %cst_30 = arith.constant 1.000000e+00 : f32
        %55 = vector.broadcast %cst_30 : f32 to vector<2x32xf32>
        %56 = arith.addf %55, %54 : vector<2x32xf32>
        %57 = arith.divf %55, %56 : vector<2x32xf32>
        %58 = arith.mulf %49, %32 : vector<2x32xf32>
        %59 = arith.mulf %43, %51 : vector<2x32xf32>
        %60 = arith.addf %58, %59 : vector<2x32xf32>
        %61 = math.tanh %60 : vector<2x32xf32>
        %62 = arith.mulf %57, %61 : vector<2x32xf32>
        %c1_i32_31 = arith.constant 1 : i32
        %63 = arith.index_cast %c1_i32_31 : i32 to index
        %c0_32 = arith.constant 0 : index
        %c0_33 = arith.constant 0 : index
        %64 = vector.load %arg9[%63, %c0_32, %c0_33] : memref<8x2x128xf32, #tpu.memory_space<vmem>>, vector<1x2x128xf32>
        %65 = vector.shape_cast %64 : vector<1x2x128xf32> to vector<2x128xf32>
        %cst_34 = arith.constant dense<0.000000e+00> : vector<2x128xf32>
        %66 = tpu.matmul %62, %21, %cst_34 {dimension_numbers = #tpu.dot_dimension_numbers<[1], [0], [0], [1], [0, 0, 1, 1], [], []>} : vector<2x32xf32>, vector<32x128xf32>, vector<2x128xf32> -> vector<2x128xf32>
        %67 = arith.addf %65, %66 : vector<2x128xf32>
        %68 = vector.extract_strided_slice %67 {offsets = [0, 0], sizes = [2, 32], strides = [1, 1]} : vector<2x128xf32> to vector<2x32xf32>
        %69 = arith.negf %68 : vector<2x32xf32>
        %70 = math.exp %69 : vector<2x32xf32>
        %cst_35 = arith.constant 1.000000e+00 : f32
        %71 = vector.broadcast %cst_35 : f32 to vector<2x32xf32>
        %72 = arith.addf %71, %70 : vector<2x32xf32>
        %73 = arith.divf %71, %72 : vector<2x32xf32>
        %74 = vector.extract_strided_slice %67 {offsets = [0, 32], sizes = [2, 32], strides = [1, 1]} : vector<2x128xf32> to vector<2x32xf32>
        %75 = arith.negf %74 : vector<2x32xf32>
        %76 = math.exp %75 : vector<2x32xf32>
        %cst_36 = arith.constant 1.000000e+00 : f32
        %77 = vector.broadcast %cst_36 : f32 to vector<2x32xf32>
        %78 = arith.addf %77, %76 : vector<2x32xf32>
        %79 = arith.divf %77, %78 : vector<2x32xf32>
        %80 = vector.extract_strided_slice %67 {offsets = [0, 64], sizes = [2, 32], strides = [1, 1]} : vector<2x128xf32> to vector<2x32xf32>
        %81 = math.tanh %80 : vector<2x32xf32>
        %82 = vector.extract_strided_slice %67 {offsets = [0, 96], sizes = [2, 32], strides = [1, 1]} : vector<2x128xf32> to vector<2x32xf32>
        %83 = arith.negf %82 : vector<2x32xf32>
        %84 = math.exp %83 : vector<2x32xf32>
        %cst_37 = arith.constant 1.000000e+00 : f32
        %85 = vector.broadcast %cst_37 : f32 to vector<2x32xf32>
        %86 = arith.addf %85, %84 : vector<2x32xf32>
        %87 = arith.divf %85, %86 : vector<2x32xf32>
        %88 = arith.mulf %79, %60 : vector<2x32xf32>
        %89 = arith.mulf %73, %81 : vector<2x32xf32>
        %90 = arith.addf %88, %89 : vector<2x32xf32>
        %91 = math.tanh %90 : vector<2x32xf32>
        %92 = arith.mulf %87, %91 : vector<2x32xf32>
        %c2_i32_38 = arith.constant 2 : i32
        %93 = arith.index_cast %c2_i32_38 : i32 to index
        %c0_39 = arith.constant 0 : index
        %c0_40 = arith.constant 0 : index
        %94 = vector.load %arg9[%93, %c0_39, %c0_40] : memref<8x2x128xf32, #tpu.memory_space<vmem>>, vector<1x2x128xf32>
        %95 = vector.shape_cast %94 : vector<1x2x128xf32> to vector<2x128xf32>
        %cst_41 = arith.constant dense<0.000000e+00> : vector<2x128xf32>
        %96 = tpu.matmul %92, %21, %cst_41 {dimension_numbers = #tpu.dot_dimension_numbers<[1], [0], [0], [1], [0, 0, 1, 1], [], []>} : vector<2x32xf32>, vector<32x128xf32>, vector<2x128xf32> -> vector<2x128xf32>
        %97 = arith.addf %95, %96 : vector<2x128xf32>
        %98 = vector.extract_strided_slice %97 {offsets = [0, 0], sizes = [2, 32], strides = [1, 1]} : vector<2x128xf32> to vector<2x32xf32>
        %99 = arith.negf %98 : vector<2x32xf32>
        %100 = math.exp %99 : vector<2x32xf32>
        %cst_42 = arith.constant 1.000000e+00 : f32
        %101 = vector.broadcast %cst_42 : f32 to vector<2x32xf32>
        %102 = arith.addf %101, %100 : vector<2x32xf32>
        %103 = arith.divf %101, %102 : vector<2x32xf32>
        %104 = vector.extract_strided_slice %97 {offsets = [0, 32], sizes = [2, 32], strides = [1, 1]} : vector<2x128xf32> to vector<2x32xf32>
        %105 = arith.negf %104 : vector<2x32xf32>
        %106 = math.exp %105 : vector<2x32xf32>
        %cst_43 = arith.constant 1.000000e+00 : f32
        %107 = vector.broadcast %cst_43 : f32 to vector<2x32xf32>
        %108 = arith.addf %107, %106 : vector<2x32xf32>
        %109 = arith.divf %107, %108 : vector<2x32xf32>
        %110 = vector.extract_strided_slice %97 {offsets = [0, 64], sizes = [2, 32], strides = [1, 1]} : vector<2x128xf32> to vector<2x32xf32>
        %111 = math.tanh %110 : vector<2x32xf32>
        %112 = vector.extract_strided_slice %97 {offsets = [0, 96], sizes = [2, 32], strides = [1, 1]} : vector<2x128xf32> to vector<2x32xf32>
        %113 = arith.negf %112 : vector<2x32xf32>
        %114 = math.exp %113 : vector<2x32xf32>
        %cst_44 = arith.constant 1.000000e+00 : f32
        %115 = vector.broadcast %cst_44 : f32 to vector<2x32xf32>
        %116 = arith.addf %115, %114 : vector<2x32xf32>
        %117 = arith.divf %115, %116 : vector<2x32xf32>
        %118 = arith.mulf %109, %90 : vector<2x32xf32>
        %119 = arith.mulf %103, %111 : vector<2x32xf32>
        %120 = arith.addf %118, %119 : vector<2x32xf32>
        %121 = math.tanh %120 : vector<2x32xf32>
        %122 = arith.mulf %117, %121 : vector<2x32xf32>
        %c3_i32 = arith.constant 3 : i32
        %123 = arith.index_cast %c3_i32 : i32 to index
        %c0_45 = arith.constant 0 : index
        %c0_46 = arith.constant 0 : index
        %124 = vector.load %arg9[%123, %c0_45, %c0_46] : memref<8x2x128xf32, #tpu.memory_space<vmem>>, vector<1x2x128xf32>
        %125 = vector.shape_cast %124 : vector<1x2x128xf32> to vector<2x128xf32>
        %cst_47 = arith.constant dense<0.000000e+00> : vector<2x128xf32>
        %126 = tpu.matmul %122, %21, %cst_47 {dimension_numbers = #tpu.dot_dimension_numbers<[1], [0], [0], [1], [0, 0, 1, 1], [], []>} : vector<2x32xf32>, vector<32x128xf32>, vector<2x128xf32> -> vector<2x128xf32>
        %127 = arith.addf %125, %126 : vector<2x128xf32>
        %128 = vector.extract_strided_slice %127 {offsets = [0, 0], sizes = [2, 32], strides = [1, 1]} : vector<2x128xf32> to vector<2x32xf32>
        %129 = arith.negf %128 : vector<2x32xf32>
        %130 = math.exp %129 : vector<2x32xf32>
        %cst_48 = arith.constant 1.000000e+00 : f32
        %131 = vector.broadcast %cst_48 : f32 to vector<2x32xf32>
        %132 = arith.addf %131, %130 : vector<2x32xf32>
        %133 = arith.divf %131, %132 : vector<2x32xf32>
        %134 = vector.extract_strided_slice %127 {offsets = [0, 32], sizes = [2, 32], strides = [1, 1]} : vector<2x128xf32> to vector<2x32xf32>
        %135 = arith.negf %134 : vector<2x32xf32>
        %136 = math.exp %135 : vector<2x32xf32>
        %cst_49 = arith.constant 1.000000e+00 : f32
        %137 = vector.broadcast %cst_49 : f32 to vector<2x32xf32>
        %138 = arith.addf %137, %136 : vector<2x32xf32>
        %139 = arith.divf %137, %138 : vector<2x32xf32>
        %140 = vector.extract_strided_slice %127 {offsets = [0, 64], sizes = [2, 32], strides = [1, 1]} : vector<2x128xf32> to vector<2x32xf32>
        %141 = math.tanh %140 : vector<2x32xf32>
        %142 = vector.extract_strided_slice %127 {offsets = [0, 96], sizes = [2, 32], strides = [1, 1]} : vector<2x128xf32> to vector<2x32xf32>
        %143 = arith.negf %142 : vector<2x32xf32>
        %144 = math.exp %143 : vector<2x32xf32>
        %cst_50 = arith.constant 1.000000e+00 : f32
        %145 = vector.broadcast %cst_50 : f32 to vector<2x32xf32>
        %146 = arith.addf %145, %144 : vector<2x32xf32>
        %147 = arith.divf %145, %146 : vector<2x32xf32>
        %148 = arith.mulf %139, %120 : vector<2x32xf32>
        %149 = arith.mulf %133, %141 : vector<2x32xf32>
        %150 = arith.addf %148, %149 : vector<2x32xf32>
        %151 = math.tanh %150 : vector<2x32xf32>
        %152 = arith.mulf %147, %151 : vector<2x32xf32>
        %c4_i32 = arith.constant 4 : i32
        %153 = arith.index_cast %c4_i32 : i32 to index
        %c0_51 = arith.constant 0 : index
        %c0_52 = arith.constant 0 : index
        %154 = vector.load %arg9[%153, %c0_51, %c0_52] : memref<8x2x128xf32, #tpu.memory_space<vmem>>, vector<1x2x128xf32>
        %155 = vector.shape_cast %154 : vector<1x2x128xf32> to vector<2x128xf32>
        %cst_53 = arith.constant dense<0.000000e+00> : vector<2x128xf32>
        %156 = tpu.matmul %152, %21, %cst_53 {dimension_numbers = #tpu.dot_dimension_numbers<[1], [0], [0], [1], [0, 0, 1, 1], [], []>} : vector<2x32xf32>, vector<32x128xf32>, vector<2x128xf32> -> vector<2x128xf32>
        %157 = arith.addf %155, %156 : vector<2x128xf32>
        %158 = vector.extract_strided_slice %157 {offsets = [0, 0], sizes = [2, 32], strides = [1, 1]} : vector<2x128xf32> to vector<2x32xf32>
        %159 = arith.negf %158 : vector<2x32xf32>
        %160 = math.exp %159 : vector<2x32xf32>
        %cst_54 = arith.constant 1.000000e+00 : f32
        %161 = vector.broadcast %cst_54 : f32 to vector<2x32xf32>
        %162 = arith.addf %161, %160 : vector<2x32xf32>
        %163 = arith.divf %161, %162 : vector<2x32xf32>
        %164 = vector.extract_strided_slice %157 {offsets = [0, 32], sizes = [2, 32], strides = [1, 1]} : vector<2x128xf32> to vector<2x32xf32>
        %165 = arith.negf %164 : vector<2x32xf32>
        %166 = math.exp %165 : vector<2x32xf32>
        %cst_55 = arith.constant 1.000000e+00 : f32
        %167 = vector.broadcast %cst_55 : f32 to vector<2x32xf32>
        %168 = arith.addf %167, %166 : vector<2x32xf32>
        %169 = arith.divf %167, %168 : vector<2x32xf32>
        %170 = vector.extract_strided_slice %157 {offsets = [0, 64], sizes = [2, 32], strides = [1, 1]} : vector<2x128xf32> to vector<2x32xf32>
        %171 = math.tanh %170 : vector<2x32xf32>
        %172 = vector.extract_strided_slice %157 {offsets = [0, 96], sizes = [2, 32], strides = [1, 1]} : vector<2x128xf32> to vector<2x32xf32>
        %173 = arith.negf %172 : vector<2x32xf32>
        %174 = math.exp %173 : vector<2x32xf32>
        %cst_56 = arith.constant 1.000000e+00 : f32
        %175 = vector.broadcast %cst_56 : f32 to vector<2x32xf32>
        %176 = arith.addf %175, %174 : vector<2x32xf32>
        %177 = arith.divf %175, %176 : vector<2x32xf32>
        %178 = arith.mulf %169, %150 : vector<2x32xf32>
        %179 = arith.mulf %163, %171 : vector<2x32xf32>
        %180 = arith.addf %178, %179 : vector<2x32xf32>
        %181 = math.tanh %180 : vector<2x32xf32>
        %182 = arith.mulf %177, %181 : vector<2x32xf32>
        %c5_i32 = arith.constant 5 : i32
        %183 = arith.index_cast %c5_i32 : i32 to index
        %c0_57 = arith.constant 0 : index
        %c0_58 = arith.constant 0 : index
        %184 = vector.load %arg9[%183, %c0_57, %c0_58] : memref<8x2x128xf32, #tpu.memory_space<vmem>>, vector<1x2x128xf32>
        %185 = vector.shape_cast %184 : vector<1x2x128xf32> to vector<2x128xf32>
        %cst_59 = arith.constant dense<0.000000e+00> : vector<2x128xf32>
        %186 = tpu.matmul %182, %21, %cst_59 {dimension_numbers = #tpu.dot_dimension_numbers<[1], [0], [0], [1], [0, 0, 1, 1], [], []>} : vector<2x32xf32>, vector<32x128xf32>, vector<2x128xf32> -> vector<2x128xf32>
        %187 = arith.addf %185, %186 : vector<2x128xf32>
        %188 = vector.extract_strided_slice %187 {offsets = [0, 0], sizes = [2, 32], strides = [1, 1]} : vector<2x128xf32> to vector<2x32xf32>
        %189 = arith.negf %188 : vector<2x32xf32>
        %190 = math.exp %189 : vector<2x32xf32>
        %cst_60 = arith.constant 1.000000e+00 : f32
        %191 = vector.broadcast %cst_60 : f32 to vector<2x32xf32>
        %192 = arith.addf %191, %190 : vector<2x32xf32>
        %193 = arith.divf %191, %192 : vector<2x32xf32>
        %194 = vector.extract_strided_slice %187 {offsets = [0, 32], sizes = [2, 32], strides = [1, 1]} : vector<2x128xf32> to vector<2x32xf32>
        %195 = arith.negf %194 : vector<2x32xf32>
        %196 = math.exp %195 : vector<2x32xf32>
        %cst_61 = arith.constant 1.000000e+00 : f32
        %197 = vector.broadcast %cst_61 : f32 to vector<2x32xf32>
        %198 = arith.addf %197, %196 : vector<2x32xf32>
        %199 = arith.divf %197, %198 : vector<2x32xf32>
        %200 = vector.extract_strided_slice %187 {offsets = [0, 64], sizes = [2, 32], strides = [1, 1]} : vector<2x128xf32> to vector<2x32xf32>
        %201 = math.tanh %200 : vector<2x32xf32>
        %202 = vector.extract_strided_slice %187 {offsets = [0, 96], sizes = [2, 32], strides = [1, 1]} : vector<2x128xf32> to vector<2x32xf32>
        %203 = arith.negf %202 : vector<2x32xf32>
        %204 = math.exp %203 : vector<2x32xf32>
        %cst_62 = arith.constant 1.000000e+00 : f32
        %205 = vector.broadcast %cst_62 : f32 to vector<2x32xf32>
        %206 = arith.addf %205, %204 : vector<2x32xf32>
        %207 = arith.divf %205, %206 : vector<2x32xf32>
        %208 = arith.mulf %199, %180 : vector<2x32xf32>
        %209 = arith.mulf %193, %201 : vector<2x32xf32>
        %210 = arith.addf %208, %209 : vector<2x32xf32>
        %211 = math.tanh %210 : vector<2x32xf32>
        %212 = arith.mulf %207, %211 : vector<2x32xf32>
        %c6_i32 = arith.constant 6 : i32
        %213 = arith.index_cast %c6_i32 : i32 to index
        %c0_63 = arith.constant 0 : index
        %c0_64 = arith.constant 0 : index
        %214 = vector.load %arg9[%213, %c0_63, %c0_64] : memref<8x2x128xf32, #tpu.memory_space<vmem>>, vector<1x2x128xf32>
        %215 = vector.shape_cast %214 : vector<1x2x128xf32> to vector<2x128xf32>
        %cst_65 = arith.constant dense<0.000000e+00> : vector<2x128xf32>
        %216 = tpu.matmul %212, %21, %cst_65 {dimension_numbers = #tpu.dot_dimension_numbers<[1], [0], [0], [1], [0, 0, 1, 1], [], []>} : vector<2x32xf32>, vector<32x128xf32>, vector<2x128xf32> -> vector<2x128xf32>
        %217 = arith.addf %215, %216 : vector<2x128xf32>
        %218 = vector.extract_strided_slice %217 {offsets = [0, 0], sizes = [2, 32], strides = [1, 1]} : vector<2x128xf32> to vector<2x32xf32>
        %219 = arith.negf %218 : vector<2x32xf32>
        %220 = math.exp %219 : vector<2x32xf32>
        %cst_66 = arith.constant 1.000000e+00 : f32
        %221 = vector.broadcast %cst_66 : f32 to vector<2x32xf32>
        %222 = arith.addf %221, %220 : vector<2x32xf32>
        %223 = arith.divf %221, %222 : vector<2x32xf32>
        %224 = vector.extract_strided_slice %217 {offsets = [0, 32], sizes = [2, 32], strides = [1, 1]} : vector<2x128xf32> to vector<2x32xf32>
        %225 = arith.negf %224 : vector<2x32xf32>
        %226 = math.exp %225 : vector<2x32xf32>
        %cst_67 = arith.constant 1.000000e+00 : f32
        %227 = vector.broadcast %cst_67 : f32 to vector<2x32xf32>
        %228 = arith.addf %227, %226 : vector<2x32xf32>
        %229 = arith.divf %227, %228 : vector<2x32xf32>
        %230 = vector.extract_strided_slice %217 {offsets = [0, 64], sizes = [2, 32], strides = [1, 1]} : vector<2x128xf32> to vector<2x32xf32>
        %231 = math.tanh %230 : vector<2x32xf32>
        %232 = vector.extract_strided_slice %217 {offsets = [0, 96], sizes = [2, 32], strides = [1, 1]} : vector<2x128xf32> to vector<2x32xf32>
        %233 = arith.negf %232 : vector<2x32xf32>
        %234 = math.exp %233 : vector<2x32xf32>
        %cst_68 = arith.constant 1.000000e+00 : f32
        %235 = vector.broadcast %cst_68 : f32 to vector<2x32xf32>
        %236 = arith.addf %235, %234 : vector<2x32xf32>
        %237 = arith.divf %235, %236 : vector<2x32xf32>
        %238 = arith.mulf %229, %210 : vector<2x32xf32>
        %239 = arith.mulf %223, %231 : vector<2x32xf32>
        %240 = arith.addf %238, %239 : vector<2x32xf32>
        %241 = math.tanh %240 : vector<2x32xf32>
        %242 = arith.mulf %237, %241 : vector<2x32xf32>
        %c7_i32 = arith.constant 7 : i32
        %243 = arith.index_cast %c7_i32 : i32 to index
        %c0_69 = arith.constant 0 : index
        %c0_70 = arith.constant 0 : index
        %244 = vector.load %arg9[%243, %c0_69, %c0_70] : memref<8x2x128xf32, #tpu.memory_space<vmem>>, vector<1x2x128xf32>
        %245 = vector.shape_cast %244 : vector<1x2x128xf32> to vector<2x128xf32>
        %cst_71 = arith.constant dense<0.000000e+00> : vector<2x128xf32>
        %246 = tpu.matmul %242, %21, %cst_71 {dimension_numbers = #tpu.dot_dimension_numbers<[1], [0], [0], [1], [0, 0, 1, 1], [], []>} : vector<2x32xf32>, vector<32x128xf32>, vector<2x128xf32> -> vector<2x128xf32>
        %247 = arith.addf %245, %246 : vector<2x128xf32>
        %248 = vector.extract_strided_slice %247 {offsets = [0, 0], sizes = [2, 32], strides = [1, 1]} : vector<2x128xf32> to vector<2x32xf32>
        %249 = arith.negf %248 : vector<2x32xf32>
        %250 = math.exp %249 : vector<2x32xf32>
        %cst_72 = arith.constant 1.000000e+00 : f32
        %251 = vector.broadcast %cst_72 : f32 to vector<2x32xf32>
        %252 = arith.addf %251, %250 : vector<2x32xf32>
        %253 = arith.divf %251, %252 : vector<2x32xf32>
        %254 = vector.extract_strided_slice %247 {offsets = [0, 32], sizes = [2, 32], strides = [1, 1]} : vector<2x128xf32> to vector<2x32xf32>
        %255 = arith.negf %254 : vector<2x32xf32>
        %256 = math.exp %255 : vector<2x32xf32>
        %cst_73 = arith.constant 1.000000e+00 : f32
        %257 = vector.broadcast %cst_73 : f32 to vector<2x32xf32>
        %258 = arith.addf %257, %256 : vector<2x32xf32>
        %259 = arith.divf %257, %258 : vector<2x32xf32>
        %260 = vector.extract_strided_slice %247 {offsets = [0, 64], sizes = [2, 32], strides = [1, 1]} : vector<2x128xf32> to vector<2x32xf32>
        %261 = math.tanh %260 : vector<2x32xf32>
        %262 = vector.extract_strided_slice %247 {offsets = [0, 96], sizes = [2, 32], strides = [1, 1]} : vector<2x128xf32> to vector<2x32xf32>
        %263 = arith.negf %262 : vector<2x32xf32>
        %264 = math.exp %263 : vector<2x32xf32>
        %cst_74 = arith.constant 1.000000e+00 : f32
        %265 = vector.broadcast %cst_74 : f32 to vector<2x32xf32>
        %266 = arith.addf %265, %264 : vector<2x32xf32>
        %267 = arith.divf %265, %266 : vector<2x32xf32>
        %268 = arith.mulf %259, %240 : vector<2x32xf32>
        %269 = arith.mulf %253, %261 : vector<2x32xf32>
        %270 = arith.addf %268, %269 : vector<2x32xf32>
        %271 = math.tanh %270 : vector<2x32xf32>
        %272 = arith.mulf %267, %271 : vector<2x32xf32>
        %c8_i32_75 = arith.constant 8 : i32
        %c0_76 = arith.constant 0 : index
        %c0_77 = arith.constant 0 : index
        %273 = vector.load %arg10[%c0_76, %c0_77] : memref<2x32xf32, #tpu.memory_space<vmem>>, vector<2x32xf32>
        tpu.vector_store %arg10[%c0_76, %c0_77], %272 {strides = array<i32>} : memref<2x32xf32, #tpu.memory_space<vmem>>, vector<2x32xf32>,
        %c0_78 = arith.constant 0 : index
        %c0_79 = arith.constant 0 : index
        %274 = vector.load %arg11[%c0_78, %c0_79] : memref<2x32xf32, #tpu.memory_space<vmem>>, vector<2x32xf32>
        tpu.vector_store %arg11[%c0_78, %c0_79], %270 {strides = array<i32>} : memref<2x32xf32, #tpu.memory_space<vmem>>, vector<2x32xf32>,
      } else {
      }
      %c8_i32_19 = arith.constant 8 : i32
      %27 = arith.addi %11, %c8_i32_19 : i32
      %28 = arith.cmpi sgt, %27, %10 : i32
      %29 = arith.extui %28 : i1 to i32
      %c0_i32_20 = arith.constant 0 : i32
      %30 = arith.cmpi ne, %29, %c0_i32_20 : i32
      scf.if %30 {
        %c0_21 = arith.constant 0 : index
        %c0_22 = arith.constant 0 : index
        %31 = vector.load %arg10[%c0_21, %c0_22] : memref<2x32xf32, #tpu.memory_space<vmem>>, vector<2x32xf32>
        %c0_23 = arith.constant 0 : index
        %c0_24 = arith.constant 0 : index
        %32 = vector.load %arg11[%c0_23, %c0_24] : memref<2x32xf32, #tpu.memory_space<vmem>>, vector<2x32xf32>
        %c0_i32_25 = arith.constant 0 : i32
        %33 = arith.index_cast %c0_i32_25 : i32 to index
        %c0_26 = arith.constant 0 : index
        %c0_27 = arith.constant 0 : index
        %34 = vector.load %arg9[%33, %c0_26, %c0_27] : memref<8x2x128xf32, #tpu.memory_space<vmem>>, vector<1x2x128xf32>
        %35 = vector.shape_cast %34 : vector<1x2x128xf32> to vector<2x128xf32>
        %cst = arith.constant dense<0.000000e+00> : vector<2x128xf32>
        %36 = tpu.matmul %31, %21, %cst {dimension_numbers = #tpu.dot_dimension_numbers<[1], [0], [0], [1], [0, 0, 1, 1], [], []>} : vector<2x32xf32>, vector<32x128xf32>, vector<2x128xf32> -> vector<2x128xf32>
        %37 = arith.addf %35, %36 : vector<2x128xf32>
        %38 = vector.extract_strided_slice %37 {offsets = [0, 0], sizes = [2, 32], strides = [1, 1]} : vector<2x128xf32> to vector<2x32xf32>
        %39 = arith.negf %38 : vector<2x32xf32>
        %40 = math.exp %39 : vector<2x32xf32>
        %cst_28 = arith.constant 1.000000e+00 : f32
        %41 = vector.broadcast %cst_28 : f32 to vector<2x32xf32>
        %42 = arith.addf %41, %40 : vector<2x32xf32>
        %43 = arith.divf %41, %42 : vector<2x32xf32>
        %44 = vector.extract_strided_slice %37 {offsets = [0, 32], sizes = [2, 32], strides = [1, 1]} : vector<2x128xf32> to vector<2x32xf32>
        %45 = arith.negf %44 : vector<2x32xf32>
        %46 = math.exp %45 : vector<2x32xf32>
        %cst_29 = arith.constant 1.000000e+00 : f32
        %47 = vector.broadcast %cst_29 : f32 to vector<2x32xf32>
        %48 = arith.addf %47, %46 : vector<2x32xf32>
        %49 = arith.divf %47, %48 : vector<2x32xf32>
        %50 = vector.extract_strided_slice %37 {offsets = [0, 64], sizes = [2, 32], strides = [1, 1]} : vector<2x128xf32> to vector<2x32xf32>
        %51 = math.tanh %50 : vector<2x32xf32>
        %52 = vector.extract_strided_slice %37 {offsets = [0, 96], sizes = [2, 32], strides = [1, 1]} : vector<2x128xf32> to vector<2x32xf32>
        %53 = arith.negf %52 : vector<2x32xf32>
        %54 = math.exp %53 : vector<2x32xf32>
        %cst_30 = arith.constant 1.000000e+00 : f32
        %55 = vector.broadcast %cst_30 : f32 to vector<2x32xf32>
        %56 = arith.addf %55, %54 : vector<2x32xf32>
        %57 = arith.divf %55, %56 : vector<2x32xf32>
        %58 = arith.mulf %49, %32 : vector<2x32xf32>
        %59 = arith.mulf %43, %51 : vector<2x32xf32>
        %60 = arith.addf %58, %59 : vector<2x32xf32>
        %61 = math.tanh %60 : vector<2x32xf32>
        %62 = arith.mulf %57, %61 : vector<2x32xf32>
        %63 = arith.addi %11, %c0_i32_25 : i32
        %64 = vector.broadcast %63 : i32 to vector<2x1xi32>
        %65 = arith.cmpi sgt, %22, %64 : vector<2x1xi32>
        %66 = vector.shape_cast %65 : vector<2x1xi1> to vector<2x1xi1>
        %67 = vector.broadcast %66 : vector<2x1xi1> to vector<2x32xi1>
        %68 = arith.select %67, %62, %31 : vector<2x32xi1>, vector<2x32xf32>
        %69 = vector.shape_cast %65 : vector<2x1xi1> to vector<2x1xi1>
        %70 = vector.broadcast %69 : vector<2x1xi1> to vector<2x32xi1>
        %71 = arith.select %70, %60, %32 : vector<2x32xi1>, vector<2x32xf32>
        %c1_i32_31 = arith.constant 1 : i32
        %72 = arith.index_cast %c1_i32_31 : i32 to index
        %c0_32 = arith.constant 0 : index
        %c0_33 = arith.constant 0 : index
        %73 = vector.load %arg9[%72, %c0_32, %c0_33] : memref<8x2x128xf32, #tpu.memory_space<vmem>>, vector<1x2x128xf32>
        %74 = vector.shape_cast %73 : vector<1x2x128xf32> to vector<2x128xf32>
        %cst_34 = arith.constant dense<0.000000e+00> : vector<2x128xf32>
        %75 = tpu.matmul %68, %21, %cst_34 {dimension_numbers = #tpu.dot_dimension_numbers<[1], [0], [0], [1], [0, 0, 1, 1], [], []>} : vector<2x32xf32>, vector<32x128xf32>, vector<2x128xf32> -> vector<2x128xf32>
        %76 = arith.addf %74, %75 : vector<2x128xf32>
        %77 = vector.extract_strided_slice %76 {offsets = [0, 0], sizes = [2, 32], strides = [1, 1]} : vector<2x128xf32> to vector<2x32xf32>
        %78 = arith.negf %77 : vector<2x32xf32>
        %79 = math.exp %78 : vector<2x32xf32>
        %cst_35 = arith.constant 1.000000e+00 : f32
        %80 = vector.broadcast %cst_35 : f32 to vector<2x32xf32>
        %81 = arith.addf %80, %79 : vector<2x32xf32>
        %82 = arith.divf %80, %81 : vector<2x32xf32>
        %83 = vector.extract_strided_slice %76 {offsets = [0, 32], sizes = [2, 32], strides = [1, 1]} : vector<2x128xf32> to vector<2x32xf32>
        %84 = arith.negf %83 : vector<2x32xf32>
        %85 = math.exp %84 : vector<2x32xf32>
        %cst_36 = arith.constant 1.000000e+00 : f32
        %86 = vector.broadcast %cst_36 : f32 to vector<2x32xf32>
        %87 = arith.addf %86, %85 : vector<2x32xf32>
        %88 = arith.divf %86, %87 : vector<2x32xf32>
        %89 = vector.extract_strided_slice %76 {offsets = [0, 64], sizes = [2, 32], strides = [1, 1]} : vector<2x128xf32> to vector<2x32xf32>
        %90 = math.tanh %89 : vector<2x32xf32>
        %91 = vector.extract_strided_slice %76 {offsets = [0, 96], sizes = [2, 32], strides = [1, 1]} : vector<2x128xf32> to vector<2x32xf32>
        %92 = arith.negf %91 : vector<2x32xf32>
        %93 = math.exp %92 : vector<2x32xf32>
        %cst_37 = arith.constant 1.000000e+00 : f32
        %94 = vector.broadcast %cst_37 : f32 to vector<2x32xf32>
        %95 = arith.addf %94, %93 : vector<2x32xf32>
        %96 = arith.divf %94, %95 : vector<2x32xf32>
        %97 = arith.mulf %88, %71 : vector<2x32xf32>
        %98 = arith.mulf %82, %90 : vector<2x32xf32>
        %99 = arith.addf %97, %98 : vector<2x32xf32>
        %100 = math.tanh %99 : vector<2x32xf32>
        %101 = arith.mulf %96, %100 : vector<2x32xf32>
        %102 = arith.addi %11, %c1_i32_31 : i32
        %103 = vector.broadcast %102 : i32 to vector<2x1xi32>
        %104 = arith.cmpi sgt, %22, %103 : vector<2x1xi32>
        %105 = vector.shape_cast %104 : vector<2x1xi1> to vector<2x1xi1>
        %106 = vector.broadcast %105 : vector<2x1xi1> to vector<2x32xi1>
        %107 = arith.select %106, %101, %68 : vector<2x32xi1>, vector<2x32xf32>
        %108 = vector.shape_cast %104 : vector<2x1xi1> to vector<2x1xi1>
        %109 = vector.broadcast %108 : vector<2x1xi1> to vector<2x32xi1>
        %110 = arith.select %109, %99, %71 : vector<2x32xi1>, vector<2x32xf32>
        %c2_i32_38 = arith.constant 2 : i32
        %111 = arith.index_cast %c2_i32_38 : i32 to index
        %c0_39 = arith.constant 0 : index
        %c0_40 = arith.constant 0 : index
        %112 = vector.load %arg9[%111, %c0_39, %c0_40] : memref<8x2x128xf32, #tpu.memory_space<vmem>>, vector<1x2x128xf32>
        %113 = vector.shape_cast %112 : vector<1x2x128xf32> to vector<2x128xf32>
        %cst_41 = arith.constant dense<0.000000e+00> : vector<2x128xf32>
        %114 = tpu.matmul %107, %21, %cst_41 {dimension_numbers = #tpu.dot_dimension_numbers<[1], [0], [0], [1], [0, 0, 1, 1], [], []>} : vector<2x32xf32>, vector<32x128xf32>, vector<2x128xf32> -> vector<2x128xf32>
        %115 = arith.addf %113, %114 : vector<2x128xf32>
        %116 = vector.extract_strided_slice %115 {offsets = [0, 0], sizes = [2, 32], strides = [1, 1]} : vector<2x128xf32> to vector<2x32xf32>
        %117 = arith.negf %116 : vector<2x32xf32>
        %118 = math.exp %117 : vector<2x32xf32>
        %cst_42 = arith.constant 1.000000e+00 : f32
        %119 = vector.broadcast %cst_42 : f32 to vector<2x32xf32>
        %120 = arith.addf %119, %118 : vector<2x32xf32>
        %121 = arith.divf %119, %120 : vector<2x32xf32>
        %122 = vector.extract_strided_slice %115 {offsets = [0, 32], sizes = [2, 32], strides = [1, 1]} : vector<2x128xf32> to vector<2x32xf32>
        %123 = arith.negf %122 : vector<2x32xf32>
        %124 = math.exp %123 : vector<2x32xf32>
        %cst_43 = arith.constant 1.000000e+00 : f32
        %125 = vector.broadcast %cst_43 : f32 to vector<2x32xf32>
        %126 = arith.addf %125, %124 : vector<2x32xf32>
        %127 = arith.divf %125, %126 : vector<2x32xf32>
        %128 = vector.extract_strided_slice %115 {offsets = [0, 64], sizes = [2, 32], strides = [1, 1]} : vector<2x128xf32> to vector<2x32xf32>
        %129 = math.tanh %128 : vector<2x32xf32>
        %130 = vector.extract_strided_slice %115 {offsets = [0, 96], sizes = [2, 32], strides = [1, 1]} : vector<2x128xf32> to vector<2x32xf32>
        %131 = arith.negf %130 : vector<2x32xf32>
        %132 = math.exp %131 : vector<2x32xf32>
        %cst_44 = arith.constant 1.000000e+00 : f32
        %133 = vector.broadcast %cst_44 : f32 to vector<2x32xf32>
        %134 = arith.addf %133, %132 : vector<2x32xf32>
        %135 = arith.divf %133, %134 : vector<2x32xf32>
        %136 = arith.mulf %127, %110 : vector<2x32xf32>
        %137 = arith.mulf %121, %129 : vector<2x32xf32>
        %138 = arith.addf %136, %137 : vector<2x32xf32>
        %139 = math.tanh %138 : vector<2x32xf32>
        %140 = arith.mulf %135, %139 : vector<2x32xf32>
        %141 = arith.addi %11, %c2_i32_38 : i32
        %142 = vector.broadcast %141 : i32 to vector<2x1xi32>
        %143 = arith.cmpi sgt, %22, %142 : vector<2x1xi32>
        %144 = vector.shape_cast %143 : vector<2x1xi1> to vector<2x1xi1>
        %145 = vector.broadcast %144 : vector<2x1xi1> to vector<2x32xi1>
        %146 = arith.select %145, %140, %107 : vector<2x32xi1>, vector<2x32xf32>
        %147 = vector.shape_cast %143 : vector<2x1xi1> to vector<2x1xi1>
        %148 = vector.broadcast %147 : vector<2x1xi1> to vector<2x32xi1>
        %149 = arith.select %148, %138, %110 : vector<2x32xi1>, vector<2x32xf32>
        %c3_i32 = arith.constant 3 : i32
        %150 = arith.index_cast %c3_i32 : i32 to index
        %c0_45 = arith.constant 0 : index
        %c0_46 = arith.constant 0 : index
        %151 = vector.load %arg9[%150, %c0_45, %c0_46] : memref<8x2x128xf32, #tpu.memory_space<vmem>>, vector<1x2x128xf32>
        %152 = vector.shape_cast %151 : vector<1x2x128xf32> to vector<2x128xf32>
        %cst_47 = arith.constant dense<0.000000e+00> : vector<2x128xf32>
        %153 = tpu.matmul %146, %21, %cst_47 {dimension_numbers = #tpu.dot_dimension_numbers<[1], [0], [0], [1], [0, 0, 1, 1], [], []>} : vector<2x32xf32>, vector<32x128xf32>, vector<2x128xf32> -> vector<2x128xf32>
        %154 = arith.addf %152, %153 : vector<2x128xf32>
        %155 = vector.extract_strided_slice %154 {offsets = [0, 0], sizes = [2, 32], strides = [1, 1]} : vector<2x128xf32> to vector<2x32xf32>
        %156 = arith.negf %155 : vector<2x32xf32>
        %157 = math.exp %156 : vector<2x32xf32>
        %cst_48 = arith.constant 1.000000e+00 : f32
        %158 = vector.broadcast %cst_48 : f32 to vector<2x32xf32>
        %159 = arith.addf %158, %157 : vector<2x32xf32>
        %160 = arith.divf %158, %159 : vector<2x32xf32>
        %161 = vector.extract_strided_slice %154 {offsets = [0, 32], sizes = [2, 32], strides = [1, 1]} : vector<2x128xf32> to vector<2x32xf32>
        %162 = arith.negf %161 : vector<2x32xf32>
        %163 = math.exp %162 : vector<2x32xf32>
        %cst_49 = arith.constant 1.000000e+00 : f32
        %164 = vector.broadcast %cst_49 : f32 to vector<2x32xf32>
        %165 = arith.addf %164, %163 : vector<2x32xf32>
        %166 = arith.divf %164, %165 : vector<2x32xf32>
        %167 = vector.extract_strided_slice %154 {offsets = [0, 64], sizes = [2, 32], strides = [1, 1]} : vector<2x128xf32> to vector<2x32xf32>
        %168 = math.tanh %167 : vector<2x32xf32>
        %169 = vector.extract_strided_slice %154 {offsets = [0, 96], sizes = [2, 32], strides = [1, 1]} : vector<2x128xf32> to vector<2x32xf32>
        %170 = arith.negf %169 : vector<2x32xf32>
        %171 = math.exp %170 : vector<2x32xf32>
        %cst_50 = arith.constant 1.000000e+00 : f32
        %172 = vector.broadcast %cst_50 : f32 to vector<2x32xf32>
        %173 = arith.addf %172, %171 : vector<2x32xf32>
        %174 = arith.divf %172, %173 : vector<2x32xf32>
        %175 = arith.mulf %166, %149 : vector<2x32xf32>
        %176 = arith.mulf %160, %168 : vector<2x32xf32>
        %177 = arith.addf %175, %176 : vector<2x32xf32>
        %178 = math.tanh %177 : vector<2x32xf32>
        %179 = arith.mulf %174, %178 : vector<2x32xf32>
        %180 = arith.addi %11, %c3_i32 : i32
        %181 = vector.broadcast %180 : i32 to vector<2x1xi32>
        %182 = arith.cmpi sgt, %22, %181 : vector<2x1xi32>
        %183 = vector.shape_cast %182 : vector<2x1xi1> to vector<2x1xi1>
        %184 = vector.broadcast %183 : vector<2x1xi1> to vector<2x32xi1>
        %185 = arith.select %184, %179, %146 : vector<2x32xi1>, vector<2x32xf32>
        %186 = vector.shape_cast %182 : vector<2x1xi1> to vector<2x1xi1>
        %187 = vector.broadcast %186 : vector<2x1xi1> to vector<2x32xi1>
        %188 = arith.select %187, %177, %149 : vector<2x32xi1>, vector<2x32xf32>
        %c4_i32 = arith.constant 4 : i32
        %189 = arith.index_cast %c4_i32 : i32 to index
        %c0_51 = arith.constant 0 : index
        %c0_52 = arith.constant 0 : index
        %190 = vector.load %arg9[%189, %c0_51, %c0_52] : memref<8x2x128xf32, #tpu.memory_space<vmem>>, vector<1x2x128xf32>
        %191 = vector.shape_cast %190 : vector<1x2x128xf32> to vector<2x128xf32>
        %cst_53 = arith.constant dense<0.000000e+00> : vector<2x128xf32>
        %192 = tpu.matmul %185, %21, %cst_53 {dimension_numbers = #tpu.dot_dimension_numbers<[1], [0], [0], [1], [0, 0, 1, 1], [], []>} : vector<2x32xf32>, vector<32x128xf32>, vector<2x128xf32> -> vector<2x128xf32>
        %193 = arith.addf %191, %192 : vector<2x128xf32>
        %194 = vector.extract_strided_slice %193 {offsets = [0, 0], sizes = [2, 32], strides = [1, 1]} : vector<2x128xf32> to vector<2x32xf32>
        %195 = arith.negf %194 : vector<2x32xf32>
        %196 = math.exp %195 : vector<2x32xf32>
        %cst_54 = arith.constant 1.000000e+00 : f32
        %197 = vector.broadcast %cst_54 : f32 to vector<2x32xf32>
        %198 = arith.addf %197, %196 : vector<2x32xf32>
        %199 = arith.divf %197, %198 : vector<2x32xf32>
        %200 = vector.extract_strided_slice %193 {offsets = [0, 32], sizes = [2, 32], strides = [1, 1]} : vector<2x128xf32> to vector<2x32xf32>
        %201 = arith.negf %200 : vector<2x32xf32>
        %202 = math.exp %201 : vector<2x32xf32>
        %cst_55 = arith.constant 1.000000e+00 : f32
        %203 = vector.broadcast %cst_55 : f32 to vector<2x32xf32>
        %204 = arith.addf %203, %202 : vector<2x32xf32>
        %205 = arith.divf %203, %204 : vector<2x32xf32>
        %206 = vector.extract_strided_slice %193 {offsets = [0, 64], sizes = [2, 32], strides = [1, 1]} : vector<2x128xf32> to vector<2x32xf32>
        %207 = math.tanh %206 : vector<2x32xf32>
        %208 = vector.extract_strided_slice %193 {offsets = [0, 96], sizes = [2, 32], strides = [1, 1]} : vector<2x128xf32> to vector<2x32xf32>
        %209 = arith.negf %208 : vector<2x32xf32>
        %210 = math.exp %209 : vector<2x32xf32>
        %cst_56 = arith.constant 1.000000e+00 : f32
        %211 = vector.broadcast %cst_56 : f32 to vector<2x32xf32>
        %212 = arith.addf %211, %210 : vector<2x32xf32>
        %213 = arith.divf %211, %212 : vector<2x32xf32>
        %214 = arith.mulf %205, %188 : vector<2x32xf32>
        %215 = arith.mulf %199, %207 : vector<2x32xf32>
        %216 = arith.addf %214, %215 : vector<2x32xf32>
        %217 = math.tanh %216 : vector<2x32xf32>
        %218 = arith.mulf %213, %217 : vector<2x32xf32>
        %219 = arith.addi %11, %c4_i32 : i32
        %220 = vector.broadcast %219 : i32 to vector<2x1xi32>
        %221 = arith.cmpi sgt, %22, %220 : vector<2x1xi32>
        %222 = vector.shape_cast %221 : vector<2x1xi1> to vector<2x1xi1>
        %223 = vector.broadcast %222 : vector<2x1xi1> to vector<2x32xi1>
        %224 = arith.select %223, %218, %185 : vector<2x32xi1>, vector<2x32xf32>
        %225 = vector.shape_cast %221 : vector<2x1xi1> to vector<2x1xi1>
        %226 = vector.broadcast %225 : vector<2x1xi1> to vector<2x32xi1>
        %227 = arith.select %226, %216, %188 : vector<2x32xi1>, vector<2x32xf32>
        %c5_i32 = arith.constant 5 : i32
        %228 = arith.index_cast %c5_i32 : i32 to index
        %c0_57 = arith.constant 0 : index
        %c0_58 = arith.constant 0 : index
        %229 = vector.load %arg9[%228, %c0_57, %c0_58] : memref<8x2x128xf32, #tpu.memory_space<vmem>>, vector<1x2x128xf32>
        %230 = vector.shape_cast %229 : vector<1x2x128xf32> to vector<2x128xf32>
        %cst_59 = arith.constant dense<0.000000e+00> : vector<2x128xf32>
        %231 = tpu.matmul %224, %21, %cst_59 {dimension_numbers = #tpu.dot_dimension_numbers<[1], [0], [0], [1], [0, 0, 1, 1], [], []>} : vector<2x32xf32>, vector<32x128xf32>, vector<2x128xf32> -> vector<2x128xf32>
        %232 = arith.addf %230, %231 : vector<2x128xf32>
        %233 = vector.extract_strided_slice %232 {offsets = [0, 0], sizes = [2, 32], strides = [1, 1]} : vector<2x128xf32> to vector<2x32xf32>
        %234 = arith.negf %233 : vector<2x32xf32>
        %235 = math.exp %234 : vector<2x32xf32>
        %cst_60 = arith.constant 1.000000e+00 : f32
        %236 = vector.broadcast %cst_60 : f32 to vector<2x32xf32>
        %237 = arith.addf %236, %235 : vector<2x32xf32>
        %238 = arith.divf %236, %237 : vector<2x32xf32>
        %239 = vector.extract_strided_slice %232 {offsets = [0, 32], sizes = [2, 32], strides = [1, 1]} : vector<2x128xf32> to vector<2x32xf32>
        %240 = arith.negf %239 : vector<2x32xf32>
        %241 = math.exp %240 : vector<2x32xf32>
        %cst_61 = arith.constant 1.000000e+00 : f32
        %242 = vector.broadcast %cst_61 : f32 to vector<2x32xf32>
        %243 = arith.addf %242, %241 : vector<2x32xf32>
        %244 = arith.divf %242, %243 : vector<2x32xf32>
        %245 = vector.extract_strided_slice %232 {offsets = [0, 64], sizes = [2, 32], strides = [1, 1]} : vector<2x128xf32> to vector<2x32xf32>
        %246 = math.tanh %245 : vector<2x32xf32>
        %247 = vector.extract_strided_slice %232 {offsets = [0, 96], sizes = [2, 32], strides = [1, 1]} : vector<2x128xf32> to vector<2x32xf32>
        %248 = arith.negf %247 : vector<2x32xf32>
        %249 = math.exp %248 : vector<2x32xf32>
        %cst_62 = arith.constant 1.000000e+00 : f32
        %250 = vector.broadcast %cst_62 : f32 to vector<2x32xf32>
        %251 = arith.addf %250, %249 : vector<2x32xf32>
        %252 = arith.divf %250, %251 : vector<2x32xf32>
        %253 = arith.mulf %244, %227 : vector<2x32xf32>
        %254 = arith.mulf %238, %246 : vector<2x32xf32>
        %255 = arith.addf %253, %254 : vector<2x32xf32>
        %256 = math.tanh %255 : vector<2x32xf32>
        %257 = arith.mulf %252, %256 : vector<2x32xf32>
        %258 = arith.addi %11, %c5_i32 : i32
        %259 = vector.broadcast %258 : i32 to vector<2x1xi32>
        %260 = arith.cmpi sgt, %22, %259 : vector<2x1xi32>
        %261 = vector.shape_cast %260 : vector<2x1xi1> to vector<2x1xi1>
        %262 = vector.broadcast %261 : vector<2x1xi1> to vector<2x32xi1>
        %263 = arith.select %262, %257, %224 : vector<2x32xi1>, vector<2x32xf32>
        %264 = vector.shape_cast %260 : vector<2x1xi1> to vector<2x1xi1>
        %265 = vector.broadcast %264 : vector<2x1xi1> to vector<2x32xi1>
        %266 = arith.select %265, %255, %227 : vector<2x32xi1>, vector<2x32xf32>
        %c6_i32 = arith.constant 6 : i32
        %267 = arith.index_cast %c6_i32 : i32 to index
        %c0_63 = arith.constant 0 : index
        %c0_64 = arith.constant 0 : index
        %268 = vector.load %arg9[%267, %c0_63, %c0_64] : memref<8x2x128xf32, #tpu.memory_space<vmem>>, vector<1x2x128xf32>
        %269 = vector.shape_cast %268 : vector<1x2x128xf32> to vector<2x128xf32>
        %cst_65 = arith.constant dense<0.000000e+00> : vector<2x128xf32>
        %270 = tpu.matmul %263, %21, %cst_65 {dimension_numbers = #tpu.dot_dimension_numbers<[1], [0], [0], [1], [0, 0, 1, 1], [], []>} : vector<2x32xf32>, vector<32x128xf32>, vector<2x128xf32> -> vector<2x128xf32>
        %271 = arith.addf %269, %270 : vector<2x128xf32>
        %272 = vector.extract_strided_slice %271 {offsets = [0, 0], sizes = [2, 32], strides = [1, 1]} : vector<2x128xf32> to vector<2x32xf32>
        %273 = arith.negf %272 : vector<2x32xf32>
        %274 = math.exp %273 : vector<2x32xf32>
        %cst_66 = arith.constant 1.000000e+00 : f32
        %275 = vector.broadcast %cst_66 : f32 to vector<2x32xf32>
        %276 = arith.addf %275, %274 : vector<2x32xf32>
        %277 = arith.divf %275, %276 : vector<2x32xf32>
        %278 = vector.extract_strided_slice %271 {offsets = [0, 32], sizes = [2, 32], strides = [1, 1]} : vector<2x128xf32> to vector<2x32xf32>
        %279 = arith.negf %278 : vector<2x32xf32>
        %280 = math.exp %279 : vector<2x32xf32>
        %cst_67 = arith.constant 1.000000e+00 : f32
        %281 = vector.broadcast %cst_67 : f32 to vector<2x32xf32>
        %282 = arith.addf %281, %280 : vector<2x32xf32>
        %283 = arith.divf %281, %282 : vector<2x32xf32>
        %284 = vector.extract_strided_slice %271 {offsets = [0, 64], sizes = [2, 32], strides = [1, 1]} : vector<2x128xf32> to vector<2x32xf32>
        %285 = math.tanh %284 : vector<2x32xf32>
        %286 = vector.extract_strided_slice %271 {offsets = [0, 96], sizes = [2, 32], strides = [1, 1]} : vector<2x128xf32> to vector<2x32xf32>
        %287 = arith.negf %286 : vector<2x32xf32>
        %288 = math.exp %287 : vector<2x32xf32>
        %cst_68 = arith.constant 1.000000e+00 : f32
        %289 = vector.broadcast %cst_68 : f32 to vector<2x32xf32>
        %290 = arith.addf %289, %288 : vector<2x32xf32>
        %291 = arith.divf %289, %290 : vector<2x32xf32>
        %292 = arith.mulf %283, %266 : vector<2x32xf32>
        %293 = arith.mulf %277, %285 : vector<2x32xf32>
        %294 = arith.addf %292, %293 : vector<2x32xf32>
        %295 = math.tanh %294 : vector<2x32xf32>
        %296 = arith.mulf %291, %295 : vector<2x32xf32>
        %297 = arith.addi %11, %c6_i32 : i32
        %298 = vector.broadcast %297 : i32 to vector<2x1xi32>
        %299 = arith.cmpi sgt, %22, %298 : vector<2x1xi32>
        %300 = vector.shape_cast %299 : vector<2x1xi1> to vector<2x1xi1>
        %301 = vector.broadcast %300 : vector<2x1xi1> to vector<2x32xi1>
        %302 = arith.select %301, %296, %263 : vector<2x32xi1>, vector<2x32xf32>
        %303 = vector.shape_cast %299 : vector<2x1xi1> to vector<2x1xi1>
        %304 = vector.broadcast %303 : vector<2x1xi1> to vector<2x32xi1>
        %305 = arith.select %304, %294, %266 : vector<2x32xi1>, vector<2x32xf32>
        %c7_i32 = arith.constant 7 : i32
        %306 = arith.index_cast %c7_i32 : i32 to index
        %c0_69 = arith.constant 0 : index
        %c0_70 = arith.constant 0 : index
        %307 = vector.load %arg9[%306, %c0_69, %c0_70] : memref<8x2x128xf32, #tpu.memory_space<vmem>>, vector<1x2x128xf32>
        %308 = vector.shape_cast %307 : vector<1x2x128xf32> to vector<2x128xf32>
        %cst_71 = arith.constant dense<0.000000e+00> : vector<2x128xf32>
        %309 = tpu.matmul %302, %21, %cst_71 {dimension_numbers = #tpu.dot_dimension_numbers<[1], [0], [0], [1], [0, 0, 1, 1], [], []>} : vector<2x32xf32>, vector<32x128xf32>, vector<2x128xf32> -> vector<2x128xf32>
        %310 = arith.addf %308, %309 : vector<2x128xf32>
        %311 = vector.extract_strided_slice %310 {offsets = [0, 0], sizes = [2, 32], strides = [1, 1]} : vector<2x128xf32> to vector<2x32xf32>
        %312 = arith.negf %311 : vector<2x32xf32>
        %313 = math.exp %312 : vector<2x32xf32>
        %cst_72 = arith.constant 1.000000e+00 : f32
        %314 = vector.broadcast %cst_72 : f32 to vector<2x32xf32>
        %315 = arith.addf %314, %313 : vector<2x32xf32>
        %316 = arith.divf %314, %315 : vector<2x32xf32>
        %317 = vector.extract_strided_slice %310 {offsets = [0, 32], sizes = [2, 32], strides = [1, 1]} : vector<2x128xf32> to vector<2x32xf32>
        %318 = arith.negf %317 : vector<2x32xf32>
        %319 = math.exp %318 : vector<2x32xf32>
        %cst_73 = arith.constant 1.000000e+00 : f32
        %320 = vector.broadcast %cst_73 : f32 to vector<2x32xf32>
        %321 = arith.addf %320, %319 : vector<2x32xf32>
        %322 = arith.divf %320, %321 : vector<2x32xf32>
        %323 = vector.extract_strided_slice %310 {offsets = [0, 64], sizes = [2, 32], strides = [1, 1]} : vector<2x128xf32> to vector<2x32xf32>
        %324 = math.tanh %323 : vector<2x32xf32>
        %325 = vector.extract_strided_slice %310 {offsets = [0, 96], sizes = [2, 32], strides = [1, 1]} : vector<2x128xf32> to vector<2x32xf32>
        %326 = arith.negf %325 : vector<2x32xf32>
        %327 = math.exp %326 : vector<2x32xf32>
        %cst_74 = arith.constant 1.000000e+00 : f32
        %328 = vector.broadcast %cst_74 : f32 to vector<2x32xf32>
        %329 = arith.addf %328, %327 : vector<2x32xf32>
        %330 = arith.divf %328, %329 : vector<2x32xf32>
        %331 = arith.mulf %322, %305 : vector<2x32xf32>
        %332 = arith.mulf %316, %324 : vector<2x32xf32>
        %333 = arith.addf %331, %332 : vector<2x32xf32>
        %334 = math.tanh %333 : vector<2x32xf32>
        %335 = arith.mulf %330, %334 : vector<2x32xf32>
        %336 = arith.addi %11, %c7_i32 : i32
        %337 = vector.broadcast %336 : i32 to vector<2x1xi32>
        %338 = arith.cmpi sgt, %22, %337 : vector<2x1xi32>
        %339 = vector.shape_cast %338 : vector<2x1xi1> to vector<2x1xi1>
        %340 = vector.broadcast %339 : vector<2x1xi1> to vector<2x32xi1>
        %341 = arith.select %340, %335, %302 : vector<2x32xi1>, vector<2x32xf32>
        %342 = vector.shape_cast %338 : vector<2x1xi1> to vector<2x1xi1>
        %343 = vector.broadcast %342 : vector<2x1xi1> to vector<2x32xi1>
        %344 = arith.select %343, %333, %305 : vector<2x32xi1>, vector<2x32xf32>
        %c8_i32_75 = arith.constant 8 : i32
        %c0_76 = arith.constant 0 : index
        %c0_77 = arith.constant 0 : index
        %345 = vector.load %arg10[%c0_76, %c0_77] : memref<2x32xf32, #tpu.memory_space<vmem>>, vector<2x32xf32>
        tpu.vector_store %arg10[%c0_76, %c0_77], %341 {strides = array<i32>} : memref<2x32xf32, #tpu.memory_space<vmem>>, vector<2x32xf32>,
        %c0_78 = arith.constant 0 : index
        %c0_79 = arith.constant 0 : index
        %346 = vector.load %arg11[%c0_78, %c0_79] : memref<2x32xf32, #tpu.memory_space<vmem>>, vector<2x32xf32>
        tpu.vector_store %arg11[%c0_78, %c0_79], %344 {strides = array<i32>} : memref<2x32xf32, #tpu.memory_space<vmem>>, vector<2x32xf32>,
      } else {
      }
    } else {
    }
    %c0_i32_4 = arith.constant 0 : i32
    %15 = arith.cmpi eq, %arg1, %c0_i32_4 : i32
    %16 = arith.extui %15 : i1 to i32
    %c0_i32_5 = arith.constant 0 : i32
    %17 = arith.cmpi ne, %16, %c0_i32_5 : i32
    scf.if %17 {
      %c0 = arith.constant 0 : index
      %c0_6 = arith.constant 0 : index
      %18 = vector.load %arg10[%c0, %c0_6] : memref<2x32xf32, #tpu.memory_space<vmem>>, vector<2x32xf32>
      %c0_7 = arith.constant 0 : index
      %c0_8 = arith.constant 0 : index
      %19 = vector.load %arg8[%c0_7, %c0_8] : memref<2x32xf32, #tpu.memory_space<vmem>>, vector<2x32xf32>
      tpu.vector_store %arg8[%c0_7, %c0_8], %18 {strides = array<i32>} : memref<2x32xf32, #tpu.memory_space<vmem>>, vector<2x32xf32>,
    } else {
    }
    return
  }
  func.func @transform_0(%arg0: i32, %arg1: i32, %arg2: memref<2xi32, #tpu.memory_space<smem>>) -> (i32, i32, i32) {
    %c2_i32 = arith.constant 2 : i32
    %0 = arith.muli %arg0, %c2_i32 : i32
    %1 = arith.index_cast %0 : i32 to index
    %2 = memref.load %arg2[%1] : memref<2xi32, #tpu.memory_space<smem>>
    %c1_i32 = arith.constant 1 : i32
    %3 = arith.subi %2, %c1_i32 : i32
    %c0_i32 = arith.constant 0 : i32
    %4 = arith.maxsi %3, %c0_i32 : i32
    %c8_i32 = arith.constant 8 : i32
    %5 = arith.divsi %4, %c8_i32 : i32
    %6 = arith.minsi %arg1, %5 : i32
    %c0_i32_0 = arith.constant 0 : i32
    %c0_i32_1 = arith.constant 0 : i32
    return %6, %arg0, %c0_i32_0 : i32, i32, i32
  }
  func.func @transform_1(%arg0: i32, %arg1: i32, %arg2: memref<2xi32, #tpu.memory_space<smem>>) -> (i32, i32) {
    %c0_i32 = arith.constant 0 : i32
    %c0_i32_0 = arith.constant 0 : i32
    return %arg0, %c0_i32 : i32, i32
  }
  func.func @transform_2(%arg0: i32, %arg1: i32, %arg2: memref<2xi32, #tpu.memory_space<smem>>) -> (i32, i32) {
    %c0_i32 = arith.constant 0 : i32
    %c0_i32_0 = arith.constant 0 : i32
    %c0_i32_1 = arith.constant 0 : i32
    return %c0_i32, %c0_i32_0 : i32, i32
  }
  func.func @transform_3(%arg0: i32, %arg1: i32, %arg2: memref<2xi32, #tpu.memory_space<smem>>) -> (i32, i32) {
    %c0_i32 = arith.constant 0 : i32
    %c0_i32_0 = arith.constant 0 : i32
    %c0_i32_1 = arith.constant 0 : i32
    return %c0_i32, %c0_i32_0 : i32, i32
  }
  func.func @transform_4(%arg0: i32, %arg1: i32, %arg2: memref<2xi32, #tpu.memory_space<smem>>) -> (i32, i32) {
    %c0_i32 = arith.constant 0 : i32
    %c0_i32_0 = arith.constant 0 : i32
    %c0_i32_1 = arith.constant 0 : i32
    return %c0_i32, %c0_i32_0 : i32, i32
  }
  func.func @transform_5(%arg0: i32, %arg1: i32, %arg2: memref<2xi32, #tpu.memory_space<smem>>) -> (i32, i32) {
    %c0_i32 = arith.constant 0 : i32
    %c0_i32_0 = arith.constant 0 : i32
    return %arg0, %c0_i32 : i32, i32
  }
}

</mosaic_0001>

<llo_original>
// kernel: tpu_custom_call.1
$region0: #{tpu_custom_call.1}
  #allocation0 [shape = 'u32[]', space=smem, size = 0x4, offset = 0x4, fixed_abs, tag = 'smem constant byte address 0x4 - core index']
  #allocation1 [shape = 'u32[144,128]{1,0:T(1,128)}', space=vmem, size = 0x12000, scoped, tag = 'internal scratch']
  #allocation2 [shape = 'f32[8,2,128]{2,1,0:T(2,128)}', space=vmem, size = 0x2000, scoped, tag = 'scratch operand']
  #allocation3 [shape = 'f32[2,32]{1,0:T(2,128)}', space=vmem, size = 0x400, scoped, tag = 'scratch operand']
  #allocation4 [shape = 'f32[2,32]{1,0:T(2,128)}', space=vmem, size = 0x400, scoped, tag = 'scratch operand']
  #allocation5 [shape = 's32[1]{0}', space=sflag, size = 0x4, scoped, tag = 'scoped memory for tpu_custom_call.1']
  #allocation6 [shape = 'u8[512]{0}', space=smem, size = 0x200, scoped, tag = 'prefetched SMEM operand 0']
  %s0 = inlined_call_operand.vmem [shape: s32[2], index: 0, kind: input, shape index: {}]
  %s1 = inlined_call_operand.hbm [shape: f32[8,2,16], index: 1, kind: input, shape index: {}]
  %s2 = inlined_call_operand.vmem [shape: s32[2,1], index: 2, kind: input, shape index: {}]
  %s3 = inlined_call_operand.hbm [shape: f32[16,128], index: 3, kind: input, shape index: {}]
  %s4 = inlined_call_operand.hbm [shape: f32[32,128], index: 4, kind: input, shape index: {}]
  %s5 = inlined_call_operand.vmem [shape: f32[1,128], index: 5, kind: input, shape index: {}]
  %s6 = inlined_call_operand.hbm [shape: f32[2,32], index: 6, kind: output, shape index: {}]
  %s7 = sld [smem:[#allocation0]]
  $region69: #{tpu_custom_call.1} parent=0
    _
  %s9 = ssub.s32 1, %s7
  %s10 = scalar_select 0, %s9, %s7
  %s11 = sshll.u32 %s0, 4
  %s12 = int_to_ptr.vmem [resolvable:$true] %s11
  %14 = dma.vmem_to_smem %s12, 16, [#allocation6], [#allocation5]
  %15 = dma.done [#allocation5], 16
  %16 = sfence
  $region1: #{tpu_custom_call.1} parent=0
    #allocation7 [shape = 'u8[8192]{0}', space=vmem, size = 0x2000, scoped, tag = 'input window, operand 1, single buffered']
    #allocation8 [shape = 's32[1]{0}', space=sflag, size = 0x4, scoped, tag = 'scoped memory for tpu_custom_call.1']
    #allocation9 [shape = 's32[1]{0}', space=sflag, size = 0x4, scoped, tag = 'scoped memory for tpu_custom_call.1']
    #allocation10 [shape = 'u8[8192]{0}', space=vmem, size = 0x2000, scoped, tag = 'input window, operand 3, single buffered']
    #allocation11 [shape = 's32[1]{0}', space=sflag, size = 0x4, scoped, tag = 'scoped memory for tpu_custom_call.1']
    #allocation12 [shape = 'u8[16384]{0}', space=vmem, size = 0x4000, scoped, tag = 'input window, operand 4, single buffered']
    #allocation13 [shape = 'u8[1024]{0}', space=vmem, size = 0x400, scoped, tag = 'output window, operand 0, single buffered']
    %17 = vsyncpa [#allocation8], 0
    %18 = vsyncpa [#allocation11], 0
    %19 = vsyncpa [#allocation9], 0
    // Predicated region
    $region2: #{tpu_custom_call.1} parent=1 // pred_check
      _
    $region3: #{tpu_custom_call.1} parent=1 // pred_check_branch
      %21 = sbr.rel (0) target = $region5
    $region4: #{tpu_custom_call.1} parent=1 // pred_region
      %s22 = smul.u32 0, 2
      %s23 = sld [smem:[#allocation6 + %s22]]
      %s24 = ssub.s32 %s23, 1
      %p25 = scmp.gt.s32.totalorder %s24, 0
      %s26 = scalar_select %p25, %s24, 0
      %p27 = scmp.lt.s32.totalorder %s26, 0
      %s28 = ssub.s32 0, %s26
      %s29 = scalar_select %p27, %s28, %s26
      %s30 = sshrl.u32 %s29, 3
      %s31 = ssub.s32 0, %s30
      %s32 = scalar_select %p27, %s31, %s30
      %p33 = scmp.lt.s32.totalorder 0, %s32
      %s34 = scalar_select %p33, 0, %s32
      %s35 = smul.u32 8, %s34
      %s37 = ssub.s32 256, 256
      %38 = vsyncadd [#allocation8], %s37
      %s39 = smul.addr %s35, 32
      %s40 = scalar_lea.hbm %s1, %s39
      %s41 = sshll.u32 [#allocation7], 4
      %s42 = int_to_ptr.vmem [resolvable:$true] %s41
      %47 = dma.hbm_to_vmem [thread:$0]  %s40, 256, %s42, [#allocation8], 32, 32, 2
    $region5: #{tpu_custom_call.1} parent=1 // pred_fallthru
      _
    // Predicated region
    $region6: #{tpu_custom_call.1} parent=1 // pred_check
      _
    $region7: #{tpu_custom_call.1} parent=1 // pred_check_branch
      %49 = sbr.rel (0) target = $region9
    $region8: #{tpu_custom_call.1} parent=1 // pred_region
      _
    $region9: #{tpu_custom_call.1} parent=1 // pred_fallthru
      _
    // Predicated region
    $region10: #{tpu_custom_call.1} parent=1 // pred_check
      _
    $region11: #{tpu_custom_call.1} parent=1 // pred_check_branch
      %51 = sbr.rel (0) target = $region13
    $region12: #{tpu_custom_call.1} parent=1 // pred_region
      %s53 = ssub.s32 256, 256
      %54 = vsyncadd [#allocation11], %s53
      %s55 = sshll.u32 [#allocation10], 4
      %s56 = int_to_ptr.vmem [resolvable:$true] %s55
      %61 = dma.hbm_to_vmem [thread:$0]  %s3, 256, %s56, [#allocation11], 128, 128, 8
    $region13: #{tpu_custom_call.1} parent=1 // pred_fallthru
      _
    // Predicated region
    $region14: #{tpu_custom_call.1} parent=1 // pred_check
      _
    $region15: #{tpu_custom_call.1} parent=1 // pred_check_branch
      %63 = sbr.rel (0) target = $region17
    $region16: #{tpu_custom_call.1} parent=1 // pred_region
      %s65 = ssub.s32 512, 512
      %66 = vsyncadd [#allocation11], %s65
      %s67 = sshll.u32 [#allocation12], 4
      %s68 = int_to_ptr.vmem [resolvable:$true] %s67
      %73 = dma.hbm_to_vmem [thread:$0]  %s4, 512, %s68, [#allocation11], 128, 128, 8
    $region17: #{tpu_custom_call.1} parent=1 // pred_fallthru
      _
    // Predicated region
    $region18: #{tpu_custom_call.1} parent=1 // pred_check
      _
    $region19: #{tpu_custom_call.1} parent=1 // pred_check_branch
      %75 = sbr.rel (0) target = $region21
    $region20: #{tpu_custom_call.1} parent=1 // pred_region
      _
    $region21: #{tpu_custom_call.1} parent=1 // pred_fallthru
      _
    // Predicated region
    $region22: #{tpu_custom_call.1} parent=1 // pred_check
      _
    $region23: #{tpu_custom_call.1} parent=1 // pred_check_branch
      %77 = sbr.rel (0) target = $region25
    $region24: #{tpu_custom_call.1} parent=1 // pred_region
      %78 = dma.done [#allocation8], 256
    $region25: #{tpu_custom_call.1} parent=1 // pred_fallthru
      _
    // Predicated region
    $region26: #{tpu_custom_call.1} parent=1 // pred_check
      _
    $region27: #{tpu_custom_call.1} parent=1 // pred_check_branch
      %80 = sbr.rel (0) target = $region29
    $region28: #{tpu_custom_call.1} parent=1 // pred_region
      %81 = dma.done [#allocation11], 256
    $region29: #{tpu_custom_call.1} parent=1 // pred_fallthru
      _
    // Predicated region
    $region30: #{tpu_custom_call.1} parent=1 // pred_check
      _
    $region31: #{tpu_custom_call.1} parent=1 // pred_check_branch
      %83 = sbr.rel (0) target = $region33
    $region32: #{tpu_custom_call.1} parent=1 // pred_region
      %84 = dma.done [#allocation11], 512
    $region33: #{tpu_custom_call.1} parent=1 // pred_fallthru
      _
    %s85 = smul.u32 0, 2
    %s86 = sld [smem:[#allocation6 + %s85]]
    %s87 = ssub.s32 %s86, 1
    %p88 = scmp.gt.s32.totalorder %s87, 0
    %s89 = scalar_select %p88, %s87, 0
    %p90 = scmp.lt.s32.totalorder %s89, 0
    %s91 = ssub.s32 0, %s89
    %s92 = scalar_select %p90, %s91, %s89
    %s93 = sshrl.u32 %s92, 3
    %s94 = ssub.s32 0, %s93
    %s95 = scalar_select %p90, %s94, %s93
    %p96 = scmp.lt.s32.totalorder 0, %s95
    %s97 = scalar_select %p96, 0, %s95
    %s98 = smul.u32 8, %s97
    %p99 = scmp.eq.s32.totalorder 0, 0
    // Predicated region
    $region34: #{tpu_custom_call.1} parent=1 // pred_check
      %p100 = pneg %p99
    $region35: #{tpu_custom_call.1} parent=1 // pred_check_branch
      %102 = sbr.rel (%p100) target = $region37
    $region36: #{tpu_custom_call.1} parent=1 // pred_region
      %vm103 = vcmask 254976
      %104 = vst.msk [vmem:[#allocation3] sm:$0x3] %vm103, 0.0
      %105 = vst.msk [vmem:[#allocation4] sm:$0x3] %vm103, 0.0
    $region37: #{tpu_custom_call.1} parent=1 // pred_fallthru
      _
    %s106 = smul.u32 0, 2
    %s107 = sld [smem:[#allocation6 + %s106]]
    %s108 = sadd.s32 %s106, 1
    %s109 = sld [smem:[#allocation6 + %s108]]
    %s110 = smul.u32 0, 8
    %p111 = scmp.lt.s32.totalorder %s110, %s107
    // Predicated region
    $region38: #{tpu_custom_call.1} parent=1 // pred_check
      %p112 = pneg %p111
    $region39: #{tpu_custom_call.1} parent=1 // pred_check_branch
      %114 = sbr.rel (%p112) target = $region41
    $region40: #{tpu_custom_call.1} parent=1 // pred_region
      %v115 = vld [vmem:[#allocation10] sm:$0xff]
      %v116 = vld [vmem:[#allocation10 + $0x8] sm:$0xff]
      %v117 = vld [vmem:[%s5] sm:$0x1]
      loop: start=0, step=1, limit=8
      $region42: #{tpu_custom_call.1} parent=40 // loop_pre_header
        _
      $region43: #{tpu_custom_call.1} parent=40 // loop_header
        %s119 = sphi 0, %s123
        %p120 = scmp.ge.s32.totalorder %s119, 8
      $region44: #{tpu_custom_call.1} parent=40 // loop_header_branch
        %122 = sbr.rel (%p120) target = $region48
      $region45: #{tpu_custom_call.1} parent=40 // loop_body
        %s124 = smul.u32 %s119, 2
        %s125 = scalar_lea.vmem [#allocation7], %s124
        %v126 = vld [vmem:[%s125] sm:$0x3]
        %v128 = vlaneseq
        %v129 = vshrl.u32 %v128, 7
        %v130 = vsub.s32 0, %v129
        %v131 = vrot.slane %v117, %v130
        %vm133 = vcmask 130048
        %v135 = vsel %vm133, %v126, 0
        %137 = vmatprep.subr.mxu0 0.0
        %138 = vmatpush1.msra.mxu0 %v115
        %139 = vmatprep.subr.mxu0 0.0
        %140 = vmatpush1.msra.mxu0 %v116
        %141 = vmatprep.subr.mxu0 0.0
        %142 = vmatpush1.msra.mxu0 0.0
        %143 = vmatprep.subr.mxu0 0.0
        %144 = vmatpush1.msra.mxu0 0.0
        %145 = vmatprep.subr.mxu0 0.0
        %146 = vmatpush1.msra.mxu0 0.0
        %147 = vmatprep.subr.mxu0 0.0
        %148 = vmatpush1.msra.mxu0 0.0
        %149 = vmatprep.subr.mxu0 0.0
        %150 = vmatpush1.msra.mxu0 0.0
        %151 = vmatprep.subr.mxu0 0.0
        %152 = vmatpush1.msra.mxu0 0.0
        %153 = vmatprep.subr.mxu0 0.0
        %154 = vmatpush1.msra.mxu0 0.0
        %155 = vmatprep.subr.mxu0 0.0
        %156 = vmatpush1.msra.mxu0 0.0
        %157 = vmatprep.subr.mxu0 0.0
        %158 = vmatpush1.msra.mxu0 0.0
        %159 = vmatprep.subr.mxu0 0.0
        %160 = vmatpush1.msra.mxu0 0.0
        %161 = vmatprep.subr.mxu0 0.0
        %162 = vmatpush1.msra.mxu0 0.0
        %163 = vmatprep.subr.mxu0 0.0
        %164 = vmatpush1.msra.mxu0 0.0
        %165 = vmatprep.subr.mxu0 0.0
        %166 = vmatpush1.msra.mxu0 0.0
        %167 = vmatprep.subr.mxu0 0.0
        %168 = vmatpush1.msra.mxu0 0.0
        %169 = vmatprep.subr.mxu0 0.0
        %170 = vmatpush1.msra.mxu0 0.0
        %171 = vmatprep.subr.mxu0 0.0
        %172 = vmatpush1.msra.mxu0 0.0
        %173 = vmatprep.subr.mxu0 0.0
        %174 = vmatpush1.msra.mxu0 0.0
        %175 = vmatprep.subr.mxu0 0.0
        %176 = vmatpush1.msra.mxu0 0.0
        %177 = vmatprep.subr.mxu0 0.0
        %178 = vmatpush1.msra.mxu0 0.0
        %179 = vmatprep.subr.mxu0 0.0
        %180 = vmatpush1.msra.mxu0 0.0
        %181 = vmatprep.subr.mxu0 0.0
        %182 = vmatpush1.msra.mxu0 0.0
        %183 = vmatprep.subr.mxu0 0.0
        %184 = vmatpush1.msra.mxu0 0.0
        %185 = vmatprep.subr.mxu0 0.0
        %186 = vmatpush1.msra.mxu0 0.0
        %187 = vmatprep.subr.mxu0 0.0
        %188 = vmatpush1.msra.mxu0 0.0
        %189 = vmatprep.subr.mxu0 0.0
        %190 = vmatpush1.msra.mxu0 0.0
        %191 = vmatprep.subr.mxu0 0.0
        %192 = vmatpush1.msra.mxu0 0.0
        %193 = vmatprep.subr.mxu0 0.0
        %194 = vmatpush1.msra.mxu0 0.0
        %195 = vmatprep.subr.mxu0 0.0
        %196 = vmatpush1.msra.mxu0 0.0
        %197 = vmatprep.subr.mxu0 0.0
        %198 = vmatpush1.msra.mxu0 0.0
        %199 = vmatprep.subr.mxu0 0.0
        %200 = vmatpush1.msra.mxu0 0.0
        %201 = vmatprep.mubr.f32.mxu0 0.0
        %202 = vmatmul.mubr.f32.gmra.mrb[0].mxu0 %v135
        %v203 = vpop.f32.mrb[0].mxu0
        %v204 = vadd.f32 %v131, %v203
        %v205 = vpop.f32.mrb[0].mxu0
        %206 = vdwg.mxu0
        %s207 = scalar_lea.vmem [#allocation2], %s124
        %208 = vst [vmem:[%s207] sm:$0x3] %v204
      $region46: #{tpu_custom_call.1} parent=40 // loop_footer
        %s123 = sadd.s32 1, %s119
      $region47: #{tpu_custom_call.1} parent=40 // loop_footer_branch
        %118 = sbr.rel target = $region43
      $region48: #{tpu_custom_call.1} parent=40 // loop_exit
        _
      %v209 = vld [vmem:[#allocation12] sm:$0xff]
      %v210 = vld [vmem:[#allocation12 + $0x8] sm:$0xff]
      %v211 = vld [vmem:[#allocation12 + $0x10] sm:$0xff]
      %v212 = vld [vmem:[#allocation12 + $0x18] sm:$0xff]
      %v213 = vld [vmem:[%s2] sm:$0x3]
      %s214 = sadd.s32 %s110, 8
      %p215 = scmp.le.s32.totalorder %s214, %s109
      // Predicated region
      $region49: #{tpu_custom_call.1} parent=40 // pred_check
        %p216 = pneg %p215
      $region50: #{tpu_custom_call.1} parent=40 // pred_check_branch
        %218 = sbr.rel (%p216) target = $region52
      $region51: #{tpu_custom_call.1} parent=40 // pred_region
        %v219 = vld [vmem:[#allocation3] sm:$0x3]
        %v220 = vld [vmem:[#allocation4] sm:$0x3]
        %v221 = vld [vmem:[#allocation2] sm:$0x3]
        %vm222 = vcmask 261120
        %v224 = vsel %vm222, %v219, 0
        %226 = vmatprep.subr.mxu0 0.0
        %227 = vmatpush1.msra.mxu0 %v209
        %228 = vmatprep.subr.mxu0 0.0
        %229 = vmatpush1.msra.mxu0 %v210
        %230 = vmatprep.subr.mxu0 0.0
        %231 = vmatpush1.msra.mxu0 %v211
        %232 = vmatprep.subr.mxu0 0.0
        %233 = vmatpush1.msra.mxu0 %v212
        %234 = vmatprep.subr.mxu0 0.0
        %235 = vmatpush1.msra.mxu0 0.0
        %236 = vmatprep.subr.mxu0 0.0
        %237 = vmatpush1.msra.mxu0 0.0
        %238 = vmatprep.subr.mxu0 0.0
        %239 = vmatpush1.msra.mxu0 0.0
        %240 = vmatprep.subr.mxu0 0.0
        %241 = vmatpush1.msra.mxu0 0.0
        %242 = vmatprep.subr.mxu0 0.0
        %243 = vmatpush1.msra.mxu0 0.0
        %244 = vmatprep.subr.mxu0 0.0
        %245 = vmatpush1.msra.mxu0 0.0
        %246 = vmatprep.subr.mxu0 0.0
        %247 = vmatpush1.msra.mxu0 0.0
        %248 = vmatprep.subr.mxu0 0.0
        %249 = vmatpush1.msra.mxu0 0.0
        %250 = vmatprep.subr.mxu0 0.0
        %251 = vmatpush1.msra.mxu0 0.0
        %252 = vmatprep.subr.mxu0 0.0
        %253 = vmatpush1.msra.mxu0 0.0
        %254 = vmatprep.subr.mxu0 0.0
        %255 = vmatpush1.msra.mxu0 0.0
        %256 = vmatprep.subr.mxu0 0.0
        %257 = vmatpush1.msra.mxu0 0.0
        %258 = vmatprep.subr.mxu0 0.0
        %259 = vmatpush1.msra.mxu0 0.0
        %260 = vmatprep.subr.mxu0 0.0
        %261 = vmatpush1.msra.mxu0 0.0
        %262 = vmatprep.subr.mxu0 0.0
        %263 = vmatpush1.msra.mxu0 0.0
        %264 = vmatprep.subr.mxu0 0.0
        %265 = vmatpush1.msra.mxu0 0.0
        %266 = vmatprep.subr.mxu0 0.0
        %267 = vmatpush1.msra.mxu0 0.0
        %268 = vmatprep.subr.mxu0 0.0
        %269 = vmatpush1.msra.mxu0 0.0
        %270 = vmatprep.subr.mxu0 0.0
        %271 = vmatpush1.msra.mxu0 0.0
        %272 = vmatprep.subr.mxu0 0.0
        %273 = vmatpush1.msra.mxu0 0.0
        %274 = vmatprep.subr.mxu0 0.0
        %275 = vmatpush1.msra.mxu0 0.0
        %276 = vmatprep.subr.mxu0 0.0
        %277 = vmatpush1.msra.mxu0 0.0
        %278 = vmatprep.subr.mxu0 0.0
        %279 = vmatpush1.msra.mxu0 0.0
        %280 = vmatprep.subr.mxu0 0.0
        %281 = vmatpush1.msra.mxu0 0.0
        %282 = vmatprep.subr.mxu0 0.0
        %283 = vmatpush1.msra.mxu0 0.0
        %284 = vmatprep.subr.mxu0 0.0
        %285 = vmatpush1.msra.mxu0 0.0
        %286 = vmatprep.subr.mxu0 0.0
        %287 = vmatpush1.msra.mxu0 0.0
        %288 = vmatprep.subr.mxu0 0.0
        %289 = vmatpush1.msra.mxu0 0.0
        %290 = vmatprep.mubr.f32.mxu0 0.0
        %291 = vmatmul.mubr.f32.gmra.mrb[0].mxu0 %v224
        %v292 = vpop.f32.mrb[0].mxu0
        %v293 = vadd.f32 0.0, %v292
        %v294 = vpop.f32.mrb[0].mxu0
        %295 = vdwg.mxu0
        %v296 = vadd.f32 %v221, %v293
        %v297 = vxor.u32 %v296, 2147483648
        %v298 = vmul.f32 %v297, 1.442695
        %v299 = vpow.pop %v298
        %v300 = vadd.f32 %v299, 1.0
        %v301 = vrcp.pop %v300
        %v302 = vmul.f32 1.0, %v301
        %v303 = vtanh.pop %v296
        %305 = vrot.lane.b32.xlu0 %v220, 32
        %v306 = vpop.permute.xlu0 %305
        %v308 = vmul.f32 %v302, %v306
        %310 = vrot.lane.b32.xlu0 %v303, 64
        %v311 = vpop.permute.xlu0 %310
        %v313 = vmul.f32 %v302, %v311
        %315 = vrot.lane.b32.xlu0 %v313, 32
        %v316 = vpop.permute.xlu0 %315
        %v318 = vadd.f32 %v308, %v316
        %v319 = vtanh.pop %v318
        %321 = vrot.lane.b32.xlu0 %v319, 64
        %v322 = vpop.permute.xlu0 %321
        %v324 = vmul.f32 %v302, %v322
        %s325 = scalar_lea.vmem [#allocation2], 2
        %v326 = vld [vmem:[%s325] sm:$0x3]
        %328 = vrot.lane.b32.xlu0 %v324, 32
        %v329 = vpop.permute.xlu0 %328
        %v330 = vsel %vm222, %v329, 0
        %332 = vmatprep.subr.mxu0 0.0
        %333 = vmatpush1.msra.mxu0 %v209
        %334 = vmatprep.subr.mxu0 0.0
        %335 = vmatpush1.msra.mxu0 %v210
        %336 = vmatprep.subr.mxu0 0.0
        %337 = vmatpush1.msra.mxu0 %v211
        %338 = vmatprep.subr.mxu0 0.0
        %339 = vmatpush1.msra.mxu0 %v212
        %340 = vmatprep.subr.mxu0 0.0
        %341 = vmatpush1.msra.mxu0 0.0
        %342 = vmatprep.subr.mxu0 0.0
        %343 = vmatpush1.msra.mxu0 0.0
        %344 = vmatprep.subr.mxu0 0.0
        %345 = vmatpush1.msra.mxu0 0.0
        %346 = vmatprep.subr.mxu0 0.0
        %347 = vmatpush1.msra.mxu0 0.0
        %348 = vmatprep.subr.mxu0 0.0
        %349 = vmatpush1.msra.mxu0 0.0
        %350 = vmatprep.subr.mxu0 0.0
        %351 = vmatpush1.msra.mxu0 0.0
        %352 = vmatprep.subr.mxu0 0.0
        %353 = vmatpush1.msra.mxu0 0.0
        %354 = vmatprep.subr.mxu0 0.0
        %355 = vmatpush1.msra.mxu0 0.0
        %356 = vmatprep.subr.mxu0 0.0
        %357 = vmatpush1.msra.mxu0 0.0
        %358 = vmatprep.subr.mxu0 0.0
        %359 = vmatpush1.msra.mxu0 0.0
        %360 = vmatprep.subr.mxu0 0.0
        %361 = vmatpush1.msra.mxu0 0.0
        %362 = vmatprep.subr.mxu0 0.0
        %363 = vmatpush1.msra.mxu0 0.0
        %364 = vmatprep.subr.mxu0 0.0
        %365 = vmatpush1.msra.mxu0 0.0
        %366 = vmatprep.subr.mxu0 0.0
        %367 = vmatpush1.msra.mxu0 0.0
        %368 = vmatprep.subr.mxu0 0.0
        %369 = vmatpush1.msra.mxu0 0.0
        %370 = vmatprep.subr.mxu0 0.0
        %371 = vmatpush1.msra.mxu0 0.0
        %372 = vmatprep.subr.mxu0 0.0
        %373 = vmatpush1.msra.mxu0 0.0
        %374 = vmatprep.subr.mxu0 0.0
        %375 = vmatpush1.msra.mxu0 0.0
        %376 = vmatprep.subr.mxu0 0.0
        %377 = vmatpush1.msra.mxu0 0.0
        %378 = vmatprep.subr.mxu0 0.0
        %379 = vmatpush1.msra.mxu0 0.0
        %380 = vmatprep.subr.mxu0 0.0
        %381 = vmatpush1.msra.mxu0 0.0
        %382 = vmatprep.subr.mxu0 0.0
        %383 = vmatpush1.msra.mxu0 0.0
        %384 = vmatprep.subr.mxu0 0.0
        %385 = vmatpush1.msra.mxu0 0.0
        %386 = vmatprep.subr.mxu0 0.0
        %387 = vmatpush1.msra.mxu0 0.0
        %388 = vmatprep.subr.mxu0 0.0
        %389 = vmatpush1.msra.mxu0 0.0
        %390 = vmatprep.subr.mxu0 0.0
        %391 = vmatpush1.msra.mxu0 0.0
        %392 = vmatprep.subr.mxu0 0.0
        %393 = vmatpush1.msra.mxu0 0.0
        %394 = vmatprep.subr.mxu0 0.0
        %395 = vmatpush1.msra.mxu0 0.0
        %396 = vmatprep.mubr.f32.mxu0 0.0
        %397 = vmatmul.mubr.f32.gmra.mrb[0].mxu0 %v330
        %v398 = vpop.f32.mrb[0].mxu0
        %v399 = vadd.f32 0.0, %v398
        %v400 = vpop.f32.mrb[0].mxu0
        %401 = vdwg.mxu0
        %v402 = vadd.f32 %v326, %v399
        %v403 = vxor.u32 %v402, 2147483648
        %v404 = vmul.f32 %v403, 1.442695
        %v405 = vpow.pop %v404
        %v406 = vadd.f32 %v405, 1.0
        %v407 = vrcp.pop %v406
        %v408 = vmul.f32 1.0, %v407
        %v409 = vtanh.pop %v402
        %v410 = vmul.f32 %v408, %v318
        %412 = vrot.lane.b32.xlu0 %v409, 64
        %v413 = vpop.permute.xlu0 %412
        %v415 = vmul.f32 %v408, %v413
        %417 = vrot.lane.b32.xlu0 %v415, 32
        %v418 = vpop.permute.xlu0 %417
        %v420 = vadd.f32 %v410, %v418
        %v421 = vtanh.pop %v420
        %423 = vrot.lane.b32.xlu0 %v421, 64
        %v424 = vpop.permute.xlu0 %423
        %v426 = vmul.f32 %v408, %v424
        %s427 = scalar_lea.vmem [#allocation2], 4
        %v428 = vld [vmem:[%s427] sm:$0x3]
        %430 = vrot.lane.b32.xlu0 %v426, 32
        %v431 = vpop.permute.xlu0 %430
        %v432 = vsel %vm222, %v431, 0
        %434 = vmatprep.subr.mxu0 0.0
        %435 = vmatpush1.msra.mxu0 %v209
        %436 = vmatprep.subr.mxu0 0.0
        %437 = vmatpush1.msra.mxu0 %v210
        %438 = vmatprep.subr.mxu0 0.0
        %439 = vmatpush1.msra.mxu0 %v211
        %440 = vmatprep.subr.mxu0 0.0
        %441 = vmatpush1.msra.mxu0 %v212
        %442 = vmatprep.subr.mxu0 0.0
        %443 = vmatpush1.msra.mxu0 0.0
        %444 = vmatprep.subr.mxu0 0.0
        %445 = vmatpush1.msra.mxu0 0.0
        %446 = vmatprep.subr.mxu0 0.0
        %447 = vmatpush1.msra.mxu0 0.0
        %448 = vmatprep.subr.mxu0 0.0
        %449 = vmatpush1.msra.mxu0 0.0
        %450 = vmatprep.subr.mxu0 0.0
        %451 = vmatpush1.msra.mxu0 0.0
        %452 = vmatprep.subr.mxu0 0.0
        %453 = vmatpush1.msra.mxu0 0.0
        %454 = vmatprep.subr.mxu0 0.0
        %455 = vmatpush1.msra.mxu0 0.0
        %456 = vmatprep.subr.mxu0 0.0
        %457 = vmatpush1.msra.mxu0 0.0
        %458 = vmatprep.subr.mxu0 0.0
        %459 = vmatpush1.msra.mxu0 0.0
        %460 = vmatprep.subr.mxu0 0.0
        %461 = vmatpush1.msra.mxu0 0.0
        %462 = vmatprep.subr.mxu0 0.0
        %463 = vmatpush1.msra.mxu0 0.0
        %464 = vmatprep.subr.mxu0 0.0
        %465 = vmatpush1.msra.mxu0 0.0
        %466 = vmatprep.subr.mxu0 0.0
        %467 = vmatpush1.msra.mxu0 0.0
        %468 = vmatprep.subr.mxu0 0.0
        %469 = vmatpush1.msra.mxu0 0.0
        %470 = vmatprep.subr.mxu0 0.0
        %471 = vmatpush1.msra.mxu0 0.0
        %472 = vmatprep.subr.mxu0 0.0
        %473 = vmatpush1.msra.mxu0 0.0
        %474 = vmatprep.subr.mxu0 0.0
        %475 = vmatpush1.msra.mxu0 0.0
        %476 = vmatprep.subr.mxu0 0.0
        %477 = vmatpush1.msra.mxu0 0.0
        %478 = vmatprep.subr.mxu0 0.0
        %479 = vmatpush1.msra.mxu0 0.0
        %480 = vmatprep.subr.mxu0 0.0
        %481 = vmatpush1.msra.mxu0 0.0
        %482 = vmatprep.subr.mxu0 0.0
        %483 = vmatpush1.msra.mxu0 0.0
        %484 = vmatprep.subr.mxu0 0.0
        %485 = vmatpush1.msra.mxu0 0.0
        %486 = vmatprep.subr.mxu0 0.0
        %487 = vmatpush1.msra.mxu0 0.0
        %488 = vmatprep.subr.mxu0 0.0
        %489 = vmatpush1.msra.mxu0 0.0
        %490 = vmatprep.subr.mxu0 0.0
        %491 = vmatpush1.msra.mxu0 0.0
        %492 = vmatprep.subr.mxu0 0.0
        %493 = vmatpush1.msra.mxu0 0.0
        %494 = vmatprep.subr.mxu0 0.0
        %495 = vmatpush1.msra.mxu0 0.0
        %496 = vmatprep.subr.mxu0 0.0
        %497 = vmatpush1.msra.mxu0 0.0
        %498 = vmatprep.mubr.f32.mxu0 0.0
        %499 = vmatmul.mubr.f32.gmra.mrb[0].mxu0 %v432
        %v500 = vpop.f32.mrb[0].mxu0
        %v501 = vadd.f32 0.0, %v500
        %v502 = vpop.f32.mrb[0].mxu0
        %503 = vdwg.mxu0
        %v504 = vadd.f32 %v428, %v501
        %v505 = vxor.u32 %v504, 2147483648
        %v506 = vmul.f32 %v505, 1.442695
        %v507 = vpow.pop %v506
        %v508 = vadd.f32 %v507, 1.0
        %v509 = vrcp.pop %v508
        %v510 = vmul.f32 1.0, %v509
        %v511 = vtanh.pop %v504
        %v512 = vmul.f32 %v510, %v420
        %514 = vrot.lane.b32.xlu0 %v511, 64
        %v515 = vpop.permute.xlu0 %514
        %v517 = vmul.f32 %v510, %v515
        %519 = vrot.lane.b32.xlu0 %v517, 32
        %v520 = vpop.permute.xlu0 %519
        %v522 = vadd.f32 %v512, %v520
        %v523 = vtanh.pop %v522
        %525 = vrot.lane.b32.xlu0 %v523, 64
        %v526 = vpop.permute.xlu0 %525
        %v528 = vmul.f32 %v510, %v526
        %s529 = scalar_lea.vmem [#allocation2], 6
        %v530 = vld [vmem:[%s529] sm:$0x3]
        %532 = vrot.lane.b32.xlu0 %v528, 32
        %v533 = vpop.permute.xlu0 %532
        %v534 = vsel %vm222, %v533, 0
        %536 = vmatprep.subr.mxu0 0.0
        %537 = vmatpush1.msra.mxu0 %v209
        %538 = vmatprep.subr.mxu0 0.0
        %539 = vmatpush1.msra.mxu0 %v210
        %540 = vmatprep.subr.mxu0 0.0
        %541 = vmatpush1.msra.mxu0 %v211
        %542 = vmatprep.subr.mxu0 0.0
        %543 = vmatpush1.msra.mxu0 %v212
        %544 = vmatprep.subr.mxu0 0.0
        %545 = vmatpush1.msra.mxu0 0.0
        %546 = vmatprep.subr.mxu0 0.0
        %547 = vmatpush1.msra.mxu0 0.0
        %548 = vmatprep.subr.mxu0 0.0
        %549 = vmatpush1.msra.mxu0 0.0
        %550 = vmatprep.subr.mxu0 0.0
        %551 = vmatpush1.msra.mxu0 0.0
        %552 = vmatprep.subr.mxu0 0.0
        %553 = vmatpush1.msra.mxu0 0.0
        %554 = vmatprep.subr.mxu0 0.0
        %555 = vmatpush1.msra.mxu0 0.0
        %556 = vmatprep.subr.mxu0 0.0
        %557 = vmatpush1.msra.mxu0 0.0
        %558 = vmatprep.subr.mxu0 0.0
        %559 = vmatpush1.msra.mxu0 0.0
        %560 = vmatprep.subr.mxu0 0.0
        %561 = vmatpush1.msra.mxu0 0.0
        %562 = vmatprep.subr.mxu0 0.0
        %563 = vmatpush1.msra.mxu0 0.0
        %564 = vmatprep.subr.mxu0 0.0
        %565 = vmatpush1.msra.mxu0 0.0
        %566 = vmatprep.subr.mxu0 0.0
        %567 = vmatpush1.msra.mxu0 0.0
        %568 = vmatprep.subr.mxu0 0.0
        %569 = vmatpush1.msra.mxu0 0.0
        %570 = vmatprep.subr.mxu0 0.0
        %571 = vmatpush1.msra.mxu0 0.0
        %572 = vmatprep.subr.mxu0 0.0
        %573 = vmatpush1.msra.mxu0 0.0
        %574 = vmatprep.subr.mxu0 0.0
        %575 = vmatpush1.msra.mxu0 0.0
        %576 = vmatprep.subr.mxu0 0.0
        %577 = vmatpush1.msra.mxu0 0.0
        %578 = vmatprep.subr.mxu0 0.0
        %579 = vmatpush1.msra.mxu0 0.0
        %580 = vmatprep.subr.mxu0 0.0
        %581 = vmatpush1.msra.mxu0 0.0
        %582 = vmatprep.subr.mxu0 0.0
        %583 = vmatpush1.msra.mxu0 0.0
        %584 = vmatprep.subr.mxu0 0.0
        %585 = vmatpush1.msra.mxu0 0.0
        %586 = vmatprep.subr.mxu0 0.0
        %587 = vmatpush1.msra.mxu0 0.0
        %588 = vmatprep.subr.mxu0 0.0
        %589 = vmatpush1.msra.mxu0 0.0
        %590 = vmatprep.subr.mxu0 0.0
        %591 = vmatpush1.msra.mxu0 0.0
        %592 = vmatprep.subr.mxu0 0.0
        %593 = vmatpush1.msra.mxu0 0.0
        %594 = vmatprep.subr.mxu0 0.0
        %595 = vmatpush1.msra.mxu0 0.0
        %596 = vmatprep.subr.mxu0 0.0
        %597 = vmatpush1.msra.mxu0 0.0
        %598 = vmatprep.subr.mxu0 0.0
        %599 = vmatpush1.msra.mxu0 0.0
        %600 = vmatprep.mubr.f32.mxu0 0.0
        %601 = vmatmul.mubr.f32.gmra.mrb[0].mxu0 %v534
        %v602 = vpop.f32.mrb[0].mxu0
        %v603 = vadd.f32 0.0, %v602
        %v604 = vpop.f32.mrb[0].mxu0
        %605 = vdwg.mxu0
        %v606 = vadd.f32 %v530, %v603
        %v607 = vxor.u32 %v606, 2147483648
        %v608 = vmul.f32 %v607, 1.442695
        %v609 = vpow.pop %v608
        %v610 = vadd.f32 %v609, 1.0
        %v611 = vrcp.pop %v610
        %v612 = vmul.f32 1.0, %v611
        %v613 = vtanh.pop %v606
        %v614 = vmul.f32 %v612, %v522
        %616 = vrot.lane.b32.xlu0 %v613, 64
        %v617 = vpop.permute.xlu0 %616
        %v619 = vmul.f32 %v612, %v617
        %621 = vrot.lane.b32.xlu0 %v619, 32
        %v622 = vpop.permute.xlu0 %621
        %v624 = vadd.f32 %v614, %v622
        %v625 = vtanh.pop %v624
        %627 = vrot.lane.b32.xlu0 %v625, 64
        %v628 = vpop.permute.xlu0 %627
        %v630 = vmul.f32 %v612, %v628
        %s631 = scalar_lea.vmem [#allocation2], 8
        %v632 = vld [vmem:[%s631] sm:$0x3]
        %634 = vrot.lane.b32.xlu0 %v630, 32
        %v635 = vpop.permute.xlu0 %634
        %v636 = vsel %vm222, %v635, 0
        %638 = vmatprep.subr.mxu0 0.0
        %639 = vmatpush1.msra.mxu0 %v209
        %640 = vmatprep.subr.mxu0 0.0
        %641 = vmatpush1.msra.mxu0 %v210
        %642 = vmatprep.subr.mxu0 0.0
        %643 = vmatpush1.msra.mxu0 %v211
        %644 = vmatprep.subr.mxu0 0.0
        %645 = vmatpush1.msra.mxu0 %v212
        %646 = vmatprep.subr.mxu0 0.0
        %647 = vmatpush1.msra.mxu0 0.0
        %648 = vmatprep.subr.mxu0 0.0
        %649 = vmatpush1.msra.mxu0 0.0
        %650 = vmatprep.subr.mxu0 0.0
        %651 = vmatpush1.msra.mxu0 0.0
        %652 = vmatprep.subr.mxu0 0.0
        %653 = vmatpush1.msra.mxu0 0.0
        %654 = vmatprep.subr.mxu0 0.0
        %655 = vmatpush1.msra.mxu0 0.0
        %656 = vmatprep.subr.mxu0 0.0
        %657 = vmatpush1.msra.mxu0 0.0
        %658 = vmatprep.subr.mxu0 0.0
        %659 = vmatpush1.msra.mxu0 0.0
        %660 = vmatprep.subr.mxu0 0.0
        %661 = vmatpush1.msra.mxu0 0.0
        %662 = vmatprep.subr.mxu0 0.0
        %663 = vmatpush1.msra.mxu0 0.0
        %664 = vmatprep.subr.mxu0 0.0
        %665 = vmatpush1.msra.mxu0 0.0
        %666 = vmatprep.subr.mxu0 0.0
        %667 = vmatpush1.msra.mxu0 0.0
        %668 = vmatprep.subr.mxu0 0.0
        %669 = vmatpush1.msra.mxu0 0.0
        %670 = vmatprep.subr.mxu0 0.0
        %671 = vmatpush1.msra.mxu0 0.0
        %672 = vmatprep.subr.mxu0 0.0
        %673 = vmatpush1.msra.mxu0 0.0
        %674 = vmatprep.subr.mxu0 0.0
        %675 = vmatpush1.msra.mxu0 0.0
        %676 = vmatprep.subr.mxu0 0.0
        %677 = vmatpush1.msra.mxu0 0.0
        %678 = vmatprep.subr.mxu0 0.0
        %679 = vmatpush1.msra.mxu0 0.0
        %680 = vmatprep.subr.mxu0 0.0
        %681 = vmatpush1.msra.mxu0 0.0
        %682 = vmatprep.subr.mxu0 0.0
        %683 = vmatpush1.msra.mxu0 0.0
        %684 = vmatprep.subr.mxu0 0.0
        %685 = vmatpush1.msra.mxu0 0.0
        %686 = vmatprep.subr.mxu0 0.0
        %687 = vmatpush1.msra.mxu0 0.0
        %688 = vmatprep.subr.mxu0 0.0
        %689 = vmatpush1.msra.mxu0 0.0
        %690 = vmatprep.subr.mxu0 0.0
        %691 = vmatpush1.msra.mxu0 0.0
        %692 = vmatprep.subr.mxu0 0.0
        %693 = vmatpush1.msra.mxu0 0.0
        %694 = vmatprep.subr.mxu0 0.0
        %695 = vmatpush1.msra.mxu0 0.0
        %696 = vmatprep.subr.mxu0 0.0
        %697 = vmatpush1.msra.mxu0 0.0
        %698 = vmatprep.subr.mxu0 0.0
        %699 = vmatpush1.msra.mxu0 0.0
        %700 = vmatprep.subr.mxu0 0.0
        %701 = vmatpush1.msra.mxu0 0.0
        %702 = vmatprep.mubr.f32.mxu0 0.0
        %703 = vmatmul.mubr.f32.gmra.mrb[0].mxu0 %v636
        %v704 = vpop.f32.mrb[0].mxu0
        %v705 = vadd.f32 0.0, %v704
        %v706 = vpop.f32.mrb[0].mxu0
        %707 = vdwg.mxu0
        %v708 = vadd.f32 %v632, %v705
        %v709 = vxor.u32 %v708, 2147483648
        %v710 = vmul.f32 %v709, 1.442695
        %v711 = vpow.pop %v710
        %v712 = vadd.f32 %v711, 1.0
        %v713 = vrcp.pop %v712
        %v714 = vmul.f32 1.0, %v713
        %v715 = vtanh.pop %v708
        %v716 = vmul.f32 %v714, %v624
        %718 = vrot.lane.b32.xlu0 %v715, 64
        %v719 = vpop.permute.xlu0 %718
        %v721 = vmul.f32 %v714, %v719
        %723 = vrot.lane.b32.xlu0 %v721, 32
        %v724 = vpop.permute.xlu0 %723
        %v726 = vadd.f32 %v716, %v724
        %v727 = vtanh.pop %v726
        %729 = vrot.lane.b32.xlu0 %v727, 64
        %v730 = vpop.permute.xlu0 %729
        %v732 = vmul.f32 %v714, %v730
        %s733 = scalar_lea.vmem [#allocation2], 10
        %v734 = vld [vmem:[%s733] sm:$0x3]
        %736 = vrot.lane.b32.xlu0 %v732, 32
        %v737 = vpop.permute.xlu0 %736
        %v738 = vsel %vm222, %v737, 0
        %740 = vmatprep.subr.mxu0 0.0
        %741 = vmatpush1.msra.mxu0 %v209
        %742 = vmatprep.subr.mxu0 0.0
        %743 = vmatpush1.msra.mxu0 %v210
        %744 = vmatprep.subr.mxu0 0.0
        %745 = vmatpush1.msra.mxu0 %v211
        %746 = vmatprep.subr.mxu0 0.0
        %747 = vmatpush1.msra.mxu0 %v212
        %748 = vmatprep.subr.mxu0 0.0
        %749 = vmatpush1.msra.mxu0 0.0
        %750 = vmatprep.subr.mxu0 0.0
        %751 = vmatpush1.msra.mxu0 0.0
        %752 = vmatprep.subr.mxu0 0.0
        %753 = vmatpush1.msra.mxu0 0.0
        %754 = vmatprep.subr.mxu0 0.0
        %755 = vmatpush1.msra.mxu0 0.0
        %756 = vmatprep.subr.mxu0 0.0
        %757 = vmatpush1.msra.mxu0 0.0
        %758 = vmatprep.subr.mxu0 0.0
        %759 = vmatpush1.msra.mxu0 0.0
        %760 = vmatprep.subr.mxu0 0.0
        %761 = vmatpush1.msra.mxu0 0.0
        %762 = vmatprep.subr.mxu0 0.0
        %763 = vmatpush1.msra.mxu0 0.0
        %764 = vmatprep.subr.mxu0 0.0
        %765 = vmatpush1.msra.mxu0 0.0
        %766 = vmatprep.subr.mxu0 0.0
        %767 = vmatpush1.msra.mxu0 0.0
        %768 = vmatprep.subr.mxu0 0.0
        %769 = vmatpush1.msra.mxu0 0.0
        %770 = vmatprep.subr.mxu0 0.0
        %771 = vmatpush1.msra.mxu0 0.0
        %772 = vmatprep.subr.mxu0 0.0
        %773 = vmatpush1.msra.mxu0 0.0
        %774 = vmatprep.subr.mxu0 0.0
        %775 = vmatpush1.msra.mxu0 0.0
        %776 = vmatprep.subr.mxu0 0.0
        %777 = vmatpush1.msra.mxu0 0.0
        %778 = vmatprep.subr.mxu0 0.0
        %779 = vmatpush1.msra.mxu0 0.0
        %780 = vmatprep.subr.mxu0 0.0
        %781 = vmatpush1.msra.mxu0 0.0
        %782 = vmatprep.subr.mxu0 0.0
        %783 = vmatpush1.msra.mxu0 0.0
        %784 = vmatprep.subr.mxu0 0.0
        %785 = vmatpush1.msra.mxu0 0.0
        %786 = vmatprep.subr.mxu0 0.0
        %787 = vmatpush1.msra.mxu0 0.0
        %788 = vmatprep.subr.mxu0 0.0
        %789 = vmatpush1.msra.mxu0 0.0
        %790 = vmatprep.subr.mxu0 0.0
        %791 = vmatpush1.msra.mxu0 0.0
        %792 = vmatprep.subr.mxu0 0.0
        %793 = vmatpush1.msra.mxu0 0.0
        %794 = vmatprep.subr.mxu0 0.0
        %795 = vmatpush1.msra.mxu0 0.0
        %796 = vmatprep.subr.mxu0 0.0
        %797 = vmatpush1.msra.mxu0 0.0
        %798 = vmatprep.subr.mxu0 0.0
        %799 = vmatpush1.msra.mxu0 0.0
        %800 = vmatprep.subr.mxu0 0.0
        %801 = vmatpush1.msra.mxu0 0.0
        %802 = vmatprep.subr.mxu0 0.0
        %803 = vmatpush1.msra.mxu0 0.0
        %804 = vmatprep.mubr.f32.mxu0 0.0
        %805 = vmatmul.mubr.f32.gmra.mrb[0].mxu0 %v738
        %v806 = vpop.f32.mrb[0].mxu0
        %v807 = vadd.f32 0.0, %v806
        %v808 = vpop.f32.mrb[0].mxu0
        %809 = vdwg.mxu0
        %v810 = vadd.f32 %v734, %v807
        %v811 = vxor.u32 %v810, 2147483648
        %v812 = vmul.f32 %v811, 1.442695
        %v813 = vpow.pop %v812
        %v814 = vadd.f32 %v813, 1.0
        %v815 = vrcp.pop %v814
        %v816 = vmul.f32 1.0, %v815
        %v817 = vtanh.pop %v810
        %v818 = vmul.f32 %v816, %v726
        %820 = vrot.lane.b32.xlu0 %v817, 64
        %v821 = vpop.permute.xlu0 %820
        %v823 = vmul.f32 %v816, %v821
        %825 = vrot.lane.b32.xlu0 %v823, 32
        %v826 = vpop.permute.xlu0 %825
        %v828 = vadd.f32 %v818, %v826
        %v829 = vtanh.pop %v828
        %831 = vrot.lane.b32.xlu0 %v829, 64
        %v832 = vpop.permute.xlu0 %831
        %v834 = vmul.f32 %v816, %v832
        %s835 = scalar_lea.vmem [#allocation2], 12
        %v836 = vld [vmem:[%s835] sm:$0x3]
        %838 = vrot.lane.b32.xlu0 %v834, 32
        %v839 = vpop.permute.xlu0 %838
        %v840 = vsel %vm222, %v839, 0
        %842 = vmatprep.subr.mxu0 0.0
        %843 = vmatpush1.msra.mxu0 %v209
        %844 = vmatprep.subr.mxu0 0.0
        %845 = vmatpush1.msra.mxu0 %v210
        %846 = vmatprep.subr.mxu0 0.0
        %847 = vmatpush1.msra.mxu0 %v211
        %848 = vmatprep.subr.mxu0 0.0
        %849 = vmatpush1.msra.mxu0 %v212
        %850 = vmatprep.subr.mxu0 0.0
        %851 = vmatpush1.msra.mxu0 0.0
        %852 = vmatprep.subr.mxu0 0.0
        %853 = vmatpush1.msra.mxu0 0.0
        %854 = vmatprep.subr.mxu0 0.0
        %855 = vmatpush1.msra.mxu0 0.0
        %856 = vmatprep.subr.mxu0 0.0
        %857 = vmatpush1.msra.mxu0 0.0
        %858 = vmatprep.subr.mxu0 0.0
        %859 = vmatpush1.msra.mxu0 0.0
        %860 = vmatprep.subr.mxu0 0.0
        %861 = vmatpush1.msra.mxu0 0.0
        %862 = vmatprep.subr.mxu0 0.0
        %863 = vmatpush1.msra.mxu0 0.0
        %864 = vmatprep.subr.mxu0 0.0
        %865 = vmatpush1.msra.mxu0 0.0
        %866 = vmatprep.subr.mxu0 0.0
        %867 = vmatpush1.msra.mxu0 0.0
        %868 = vmatprep.subr.mxu0 0.0
        %869 = vmatpush1.msra.mxu0 0.0
        %870 = vmatprep.subr.mxu0 0.0
        %871 = vmatpush1.msra.mxu0 0.0
        %872 = vmatprep.subr.mxu0 0.0
        %873 = vmatpush1.msra.mxu0 0.0
        %874 = vmatprep.subr.mxu0 0.0
        %875 = vmatpush1.msra.mxu0 0.0
        %876 = vmatprep.subr.mxu0 0.0
        %877 = vmatpush1.msra.mxu0 0.0
        %878 = vmatprep.subr.mxu0 0.0
        %879 = vmatpush1.msra.mxu0 0.0
        %880 = vmatprep.subr.mxu0 0.0
        %881 = vmatpush1.msra.mxu0 0.0
        %882 = vmatprep.subr.mxu0 0.0
        %883 = vmatpush1.msra.mxu0 0.0
        %884 = vmatprep.subr.mxu0 0.0
        %885 = vmatpush1.msra.mxu0 0.0
        %886 = vmatprep.subr.mxu0 0.0
        %887 = vmatpush1.msra.mxu0 0.0
        %888 = vmatprep.subr.mxu0 0.0
        %889 = vmatpush1.msra.mxu0 0.0
        %890 = vmatprep.subr.mxu0 0.0
        %891 = vmatpush1.msra.mxu0 0.0
        %892 = vmatprep.subr.mxu0 0.0
        %893 = vmatpush1.msra.mxu0 0.0
        %894 = vmatprep.subr.mxu0 0.0
        %895 = vmatpush1.msra.mxu0 0.0
        %896 = vmatprep.subr.mxu0 0.0
        %897 = vmatpush1.msra.mxu0 0.0
        %898 = vmatprep.subr.mxu0 0.0
        %899 = vmatpush1.msra.mxu0 0.0
        %900 = vmatprep.subr.mxu0 0.0
        %901 = vmatpush1.msra.mxu0 0.0
        %902 = vmatprep.subr.mxu0 0.0
        %903 = vmatpush1.msra.mxu0 0.0
        %904 = vmatprep.subr.mxu0 0.0
        %905 = vmatpush1.msra.mxu0 0.0
        %906 = vmatprep.mubr.f32.mxu0 0.0
        %907 = vmatmul.mubr.f32.gmra.mrb[0].mxu0 %v840
        %v908 = vpop.f32.mrb[0].mxu0
        %v909 = vadd.f32 0.0, %v908
        %v910 = vpop.f32.mrb[0].mxu0
        %911 = vdwg.mxu0
        %v912 = vadd.f32 %v836, %v909
        %v913 = vxor.u32 %v912, 2147483648
        %v914 = vmul.f32 %v913, 1.442695
        %v915 = vpow.pop %v914
        %v916 = vadd.f32 %v915, 1.0
        %v917 = vrcp.pop %v916
        %v918 = vmul.f32 1.0, %v917
        %v919 = vtanh.pop %v912
        %v920 = vmul.f32 %v918, %v828
        %922 = vrot.lane.b32.xlu0 %v919, 64
        %v923 = vpop.permute.xlu0 %922
        %v925 = vmul.f32 %v918, %v923
        %927 = vrot.lane.b32.xlu0 %v925, 32
        %v928 = vpop.permute.xlu0 %927
        %v930 = vadd.f32 %v920, %v928
        %v931 = vtanh.pop %v930
        %933 = vrot.lane.b32.xlu0 %v931, 64
        %v934 = vpop.permute.xlu0 %933
        %v936 = vmul.f32 %v918, %v934
        %s937 = scalar_lea.vmem [#allocation2], 14
        %v938 = vld [vmem:[%s937] sm:$0x3]
        %940 = vrot.lane.b32.xlu0 %v936, 32
        %v941 = vpop.permute.xlu0 %940
        %v942 = vsel %vm222, %v941, 0
        %944 = vmatprep.subr.mxu0 0.0
        %945 = vmatpush1.msra.mxu0 %v209
        %946 = vmatprep.subr.mxu0 0.0
        %947 = vmatpush1.msra.mxu0 %v210
        %948 = vmatprep.subr.mxu0 0.0
        %949 = vmatpush1.msra.mxu0 %v211
        %950 = vmatprep.subr.mxu0 0.0
        %951 = vmatpush1.msra.mxu0 %v212
        %952 = vmatprep.subr.mxu0 0.0
        %953 = vmatpush1.msra.mxu0 0.0
        %954 = vmatprep.subr.mxu0 0.0
        %955 = vmatpush1.msra.mxu0 0.0
        %956 = vmatprep.subr.mxu0 0.0
        %957 = vmatpush1.msra.mxu0 0.0
        %958 = vmatprep.subr.mxu0 0.0
        %959 = vmatpush1.msra.mxu0 0.0
        %960 = vmatprep.subr.mxu0 0.0
        %961 = vmatpush1.msra.mxu0 0.0
        %962 = vmatprep.subr.mxu0 0.0
        %963 = vmatpush1.msra.mxu0 0.0
        %964 = vmatprep.subr.mxu0 0.0
        %965 = vmatpush1.msra.mxu0 0.0
        %966 = vmatprep.subr.mxu0 0.0
        %967 = vmatpush1.msra.mxu0 0.0
        %968 = vmatprep.subr.mxu0 0.0
        %969 = vmatpush1.msra.mxu0 0.0
        %970 = vmatprep.subr.mxu0 0.0
        %971 = vmatpush1.msra.mxu0 0.0
        %972 = vmatprep.subr.mxu0 0.0
        %973 = vmatpush1.msra.mxu0 0.0
        %974 = vmatprep.subr.mxu0 0.0
        %975 = vmatpush1.msra.mxu0 0.0
        %976 = vmatprep.subr.mxu0 0.0
        %977 = vmatpush1.msra.mxu0 0.0
        %978 = vmatprep.subr.mxu0 0.0
        %979 = vmatpush1.msra.mxu0 0.0
        %980 = vmatprep.subr.mxu0 0.0
        %981 = vmatpush1.msra.mxu0 0.0
        %982 = vmatprep.subr.mxu0 0.0
        %983 = vmatpush1.msra.mxu0 0.0
        %984 = vmatprep.subr.mxu0 0.0
        %985 = vmatpush1.msra.mxu0 0.0
        %986 = vmatprep.subr.mxu0 0.0
        %987 = vmatpush1.msra.mxu0 0.0
        %988 = vmatprep.subr.mxu0 0.0
        %989 = vmatpush1.msra.mxu0 0.0
        %990 = vmatprep.subr.mxu0 0.0
        %991 = vmatpush1.msra.mxu0 0.0
        %992 = vmatprep.subr.mxu0 0.0
        %993 = vmatpush1.msra.mxu0 0.0
        %994 = vmatprep.subr.mxu0 0.0
        %995 = vmatpush1.msra.mxu0 0.0
        %996 = vmatprep.subr.mxu0 0.0
        %997 = vmatpush1.msra.mxu0 0.0
        %998 = vmatprep.subr.mxu0 0.0
        %999 = vmatpush1.msra.mxu0 0.0
        %1000 = vmatprep.subr.mxu0 0.0
        %1001 = vmatpush1.msra.mxu0 0.0
        %1002 = vmatprep.subr.mxu0 0.0
        %1003 = vmatpush1.msra.mxu0 0.0
        %1004 = vmatprep.subr.mxu0 0.0
        %1005 = vmatpush1.msra.mxu0 0.0
        %1006 = vmatprep.subr.mxu0 0.0
        %1007 = vmatpush1.msra.mxu0 0.0
        %1008 = vmatprep.mubr.f32.mxu0 0.0
        %1009 = vmatmul.mubr.f32.gmra.mrb[0].mxu0 %v942
        %v1010 = vpop.f32.mrb[0].mxu0
        %v1011 = vadd.f32 0.0, %v1010
        %v1012 = vpop.f32.mrb[0].mxu0
        %1013 = vdwg.mxu0
        %v1014 = vadd.f32 %v938, %v1011
        %v1015 = vxor.u32 %v1014, 2147483648
        %v1016 = vmul.f32 %v1015, 1.442695
        %v1017 = vpow.pop %v1016
        %v1018 = vadd.f32 %v1017, 1.0
        %v1019 = vrcp.pop %v1018
        %v1020 = vmul.f32 1.0, %v1019
        %v1021 = vtanh.pop %v1014
        %v1022 = vmul.f32 %v1020, %v930
        %1024 = vrot.lane.b32.xlu0 %v1021, 64
        %v1025 = vpop.permute.xlu0 %1024
        %v1027 = vmul.f32 %v1020, %v1025
        %1029 = vrot.lane.b32.xlu0 %v1027, 32
        %v1030 = vpop.permute.xlu0 %1029
        %v1032 = vadd.f32 %v1022, %v1030
        %v1033 = vtanh.pop %v1032
        %1035 = vrot.lane.b32.xlu0 %v1033, 64
        %v1036 = vpop.permute.xlu0 %1035
        %v1038 = vmul.f32 %v1020, %v1036
        %1040 = vrot.lane.b32.xlu0 %v1038, 32
        %v1041 = vpop.permute.xlu0 %1040
        %vm1043 = vcmask 254976
        %1044 = vst.msk [vmem:[#allocation3] sm:$0x3] %vm1043, %v1041
        %1046 = vrot.lane.b32.xlu0 %v1032, 96
        %v1047 = vpop.permute.xlu0 %1046
        %1049 = vst.msk [vmem:[#allocation4] sm:$0x3] %vm1043, %v1047
      $region52: #{tpu_custom_call.1} parent=40 // pred_fallthru
        _
      %p1050 = scmp.gt.s32.totalorder %s214, %s109
      // Predicated region
      $region53: #{tpu_custom_call.1} parent=40 // pred_check
        %p1051 = pneg %p1050
      $region54: #{tpu_custom_call.1} parent=40 // pred_check_branch
        %1053 = sbr.rel (%p1051) target = $region56
      $region55: #{tpu_custom_call.1} parent=40 // pred_region
        %v1054 = vld [vmem:[#allocation3] sm:$0x3]
        %v1055 = vld [vmem:[#allocation4] sm:$0x3]
        %v1056 = vld [vmem:[#allocation2] sm:$0x3]
        %vm1057 = vcmask 261120
        %v1059 = vsel %vm1057, %v1054, 0
        %1061 = vmatprep.subr.mxu0 0.0
        %1062 = vmatpush1.msra.mxu0 %v209
        %1063 = vmatprep.subr.mxu0 0.0
        %1064 = vmatpush1.msra.mxu0 %v210
        %1065 = vmatprep.subr.mxu0 0.0
        %1066 = vmatpush1.msra.mxu0 %v211
        %1067 = vmatprep.subr.mxu0 0.0
        %1068 = vmatpush1.msra.mxu0 %v212
        %1069 = vmatprep.subr.mxu0 0.0
        %1070 = vmatpush1.msra.mxu0 0.0
        %1071 = vmatprep.subr.mxu0 0.0
        %1072 = vmatpush1.msra.mxu0 0.0
        %1073 = vmatprep.subr.mxu0 0.0
        %1074 = vmatpush1.msra.mxu0 0.0
        %1075 = vmatprep.subr.mxu0 0.0
        %1076 = vmatpush1.msra.mxu0 0.0
        %1077 = vmatprep.subr.mxu0 0.0
        %1078 = vmatpush1.msra.mxu0 0.0
        %1079 = vmatprep.subr.mxu0 0.0
        %1080 = vmatpush1.msra.mxu0 0.0
        %1081 = vmatprep.subr.mxu0 0.0
        %1082 = vmatpush1.msra.mxu0 0.0
        %1083 = vmatprep.subr.mxu0 0.0
        %1084 = vmatpush1.msra.mxu0 0.0
        %1085 = vmatprep.subr.mxu0 0.0
        %1086 = vmatpush1.msra.mxu0 0.0
        %1087 = vmatprep.subr.mxu0 0.0
        %1088 = vmatpush1.msra.mxu0 0.0
        %1089 = vmatprep.subr.mxu0 0.0
        %1090 = vmatpush1.msra.mxu0 0.0
        %1091 = vmatprep.subr.mxu0 0.0
        %1092 = vmatpush1.msra.mxu0 0.0
        %1093 = vmatprep.subr.mxu0 0.0
        %1094 = vmatpush1.msra.mxu0 0.0
        %1095 = vmatprep.subr.mxu0 0.0
        %1096 = vmatpush1.msra.mxu0 0.0
        %1097 = vmatprep.subr.mxu0 0.0
        %1098 = vmatpush1.msra.mxu0 0.0
        %1099 = vmatprep.subr.mxu0 0.0
        %1100 = vmatpush1.msra.mxu0 0.0
        %1101 = vmatprep.subr.mxu0 0.0
        %1102 = vmatpush1.msra.mxu0 0.0
        %1103 = vmatprep.subr.mxu0 0.0
        %1104 = vmatpush1.msra.mxu0 0.0
        %1105 = vmatprep.subr.mxu0 0.0
        %1106 = vmatpush1.msra.mxu0 0.0
        %1107 = vmatprep.subr.mxu0 0.0
        %1108 = vmatpush1.msra.mxu0 0.0
        %1109 = vmatprep.subr.mxu0 0.0
        %1110 = vmatpush1.msra.mxu0 0.0
        %1111 = vmatprep.subr.mxu0 0.0
        %1112 = vmatpush1.msra.mxu0 0.0
        %1113 = vmatprep.subr.mxu0 0.0
        %1114 = vmatpush1.msra.mxu0 0.0
        %1115 = vmatprep.subr.mxu0 0.0
        %1116 = vmatpush1.msra.mxu0 0.0
        %1117 = vmatprep.subr.mxu0 0.0
        %1118 = vmatpush1.msra.mxu0 0.0
        %1119 = vmatprep.subr.mxu0 0.0
        %1120 = vmatpush1.msra.mxu0 0.0
        %1121 = vmatprep.subr.mxu0 0.0
        %1122 = vmatpush1.msra.mxu0 0.0
        %1123 = vmatprep.subr.mxu0 0.0
        %1124 = vmatpush1.msra.mxu0 0.0
        %1125 = vmatprep.mubr.f32.mxu0 0.0
        %1126 = vmatmul.mubr.f32.gmra.mrb[0].mxu0 %v1059
        %v1127 = vpop.f32.mrb[0].mxu0
        %v1128 = vadd.f32 0.0, %v1127
        %v1129 = vpop.f32.mrb[0].mxu0
        %1130 = vdwg.mxu0
        %v1131 = vadd.f32 %v1056, %v1128
        %v1132 = vxor.u32 %v1131, 2147483648
        %v1133 = vmul.f32 %v1132, 1.442695
        %v1134 = vpow.pop %v1133
        %v1135 = vadd.f32 %v1134, 1.0
        %v1136 = vrcp.pop %v1135
        %v1137 = vmul.f32 1.0, %v1136
        %v1138 = vtanh.pop %v1131
        %1140 = vrot.lane.b32.xlu0 %v1055, 32
        %v1141 = vpop.permute.xlu0 %1140
        %v1143 = vmul.f32 %v1137, %v1141
        %1145 = vrot.lane.b32.xlu0 %v1138, 64
        %v1146 = vpop.permute.xlu0 %1145
        %v1148 = vmul.f32 %v1137, %v1146
        %1150 = vrot.lane.b32.xlu0 %v1148, 32
        %v1151 = vpop.permute.xlu0 %1150
        %v1153 = vadd.f32 %v1143, %v1151
        %v1154 = vtanh.pop %v1153
        %1156 = vrot.lane.b32.xlu0 %v1154, 64
        %v1157 = vpop.permute.xlu0 %1156
        %v1159 = vmul.f32 %v1137, %v1157
        %v1160 = vstv %s110
        %vm1161 = vcmp.gt.s32.totalorder %v213, %v1160
        %v1162 = vsel %vm1161, 1, 0
        %1163 = vset.pattern.permute.xlu0 0
        %1164 = vperm.xlu0 %1163, %v1162
        %v1165 = vpop.permute.xlu0 %1164
        %vm1166 = vcmp.eq.s32.totalorder %v1165, 1
        %1167 = vrot.lane.b32.xlu0 %v1054, 96
        %v1168 = vpop.permute.xlu0 %1167
        %v1170 = vsel %vm1166, %v1159, %v1168
        %v1171 = vsel %vm1166, %v1153, %v1141
        %s1172 = scalar_lea.vmem [#allocation2], 2
        %v1173 = vld [vmem:[%s1172] sm:$0x3]
        %1175 = vrot.lane.b32.xlu0 %v1170, 32
        %v1176 = vpop.permute.xlu0 %1175
        %v1177 = vsel %vm1057, %v1176, 0
        %1179 = vmatprep.subr.mxu0 0.0
        %1180 = vmatpush1.msra.mxu0 %v209
        %1181 = vmatprep.subr.mxu0 0.0
        %1182 = vmatpush1.msra.mxu0 %v210
        %1183 = vmatprep.subr.mxu0 0.0
        %1184 = vmatpush1.msra.mxu0 %v211
        %1185 = vmatprep.subr.mxu0 0.0
        %1186 = vmatpush1.msra.mxu0 %v212
        %1187 = vmatprep.subr.mxu0 0.0
        %1188 = vmatpush1.msra.mxu0 0.0
        %1189 = vmatprep.subr.mxu0 0.0
        %1190 = vmatpush1.msra.mxu0 0.0
        %1191 = vmatprep.subr.mxu0 0.0
        %1192 = vmatpush1.msra.mxu0 0.0
        %1193 = vmatprep.subr.mxu0 0.0
        %1194 = vmatpush1.msra.mxu0 0.0
        %1195 = vmatprep.subr.mxu0 0.0
        %1196 = vmatpush1.msra.mxu0 0.0
        %1197 = vmatprep.subr.mxu0 0.0
        %1198 = vmatpush1.msra.mxu0 0.0
        %1199 = vmatprep.subr.mxu0 0.0
        %1200 = vmatpush1.msra.mxu0 0.0
        %1201 = vmatprep.subr.mxu0 0.0
        %1202 = vmatpush1.msra.mxu0 0.0
        %1203 = vmatprep.subr.mxu0 0.0
        %1204 = vmatpush1.msra.mxu0 0.0
        %1205 = vmatprep.subr.mxu0 0.0
        %1206 = vmatpush1.msra.mxu0 0.0
        %1207 = vmatprep.subr.mxu0 0.0
        %1208 = vmatpush1.msra.mxu0 0.0
        %1209 = vmatprep.subr.mxu0 0.0
        %1210 = vmatpush1.msra.mxu0 0.0
        %1211 = vmatprep.subr.mxu0 0.0
        %1212 = vmatpush1.msra.mxu0 0.0
        %1213 = vmatprep.subr.mxu0 0.0
        %1214 = vmatpush1.msra.mxu0 0.0
        %1215 = vmatprep.subr.mxu0 0.0
        %1216 = vmatpush1.msra.mxu0 0.0
        %1217 = vmatprep.subr.mxu0 0.0
        %1218 = vmatpush1.msra.mxu0 0.0
        %1219 = vmatprep.subr.mxu0 0.0
        %1220 = vmatpush1.msra.mxu0 0.0
        %1221 = vmatprep.subr.mxu0 0.0
        %1222 = vmatpush1.msra.mxu0 0.0
        %1223 = vmatprep.subr.mxu0 0.0
        %1224 = vmatpush1.msra.mxu0 0.0
        %1225 = vmatprep.subr.mxu0 0.0
        %1226 = vmatpush1.msra.mxu0 0.0
        %1227 = vmatprep.subr.mxu0 0.0
        %1228 = vmatpush1.msra.mxu0 0.0
        %1229 = vmatprep.subr.mxu0 0.0
        %1230 = vmatpush1.msra.mxu0 0.0
        %1231 = vmatprep.subr.mxu0 0.0
        %1232 = vmatpush1.msra.mxu0 0.0
        %1233 = vmatprep.subr.mxu0 0.0
        %1234 = vmatpush1.msra.mxu0 0.0
        %1235 = vmatprep.subr.mxu0 0.0
        %1236 = vmatpush1.msra.mxu0 0.0
        %1237 = vmatprep.subr.mxu0 0.0
        %1238 = vmatpush1.msra.mxu0 0.0
        %1239 = vmatprep.subr.mxu0 0.0
        %1240 = vmatpush1.msra.mxu0 0.0
        %1241 = vmatprep.subr.mxu0 0.0
        %1242 = vmatpush1.msra.mxu0 0.0
        %1243 = vmatprep.mubr.f32.mxu0 0.0
        %1244 = vmatmul.mubr.f32.gmra.mrb[0].mxu0 %v1177
        %v1245 = vpop.f32.mrb[0].mxu0
        %v1246 = vadd.f32 0.0, %v1245
        %v1247 = vpop.f32.mrb[0].mxu0
        %1248 = vdwg.mxu0
        %v1249 = vadd.f32 %v1173, %v1246
        %v1250 = vxor.u32 %v1249, 2147483648
        %v1251 = vmul.f32 %v1250, 1.442695
        %v1252 = vpow.pop %v1251
        %v1253 = vadd.f32 %v1252, 1.0
        %v1254 = vrcp.pop %v1253
        %v1255 = vmul.f32 1.0, %v1254
        %v1256 = vtanh.pop %v1249
        %v1257 = vmul.f32 %v1255, %v1171
        %1259 = vrot.lane.b32.xlu0 %v1256, 64
        %v1260 = vpop.permute.xlu0 %1259
        %v1262 = vmul.f32 %v1255, %v1260
        %1264 = vrot.lane.b32.xlu0 %v1262, 32
        %v1265 = vpop.permute.xlu0 %1264
        %v1267 = vadd.f32 %v1257, %v1265
        %v1268 = vtanh.pop %v1267
        %1270 = vrot.lane.b32.xlu0 %v1268, 64
        %v1271 = vpop.permute.xlu0 %1270
        %v1273 = vmul.f32 %v1255, %v1271
        %s1274 = sadd.s32 %s110, 1
        %v1275 = vstv %s1274
        %vm1276 = vcmp.gt.s32.totalorder %v213, %v1275
        %v1277 = vsel %vm1276, 1, 0
        %1278 = vset.pattern.permute.xlu0 0
        %1279 = vperm.xlu0 %1278, %v1277
        %v1280 = vpop.permute.xlu0 %1279
        %vm1281 = vcmp.eq.s32.totalorder %v1280, 1
        %v1282 = vsel %vm1281, %v1273, %v1170
        %v1283 = vsel %vm1281, %v1267, %v1171
        %s1284 = scalar_lea.vmem [#allocation2], 4
        %v1285 = vld [vmem:[%s1284] sm:$0x3]
        %1287 = vrot.lane.b32.xlu0 %v1282, 32
        %v1288 = vpop.permute.xlu0 %1287
        %v1289 = vsel %vm1057, %v1288, 0
        %1291 = vmatprep.subr.mxu0 0.0
        %1292 = vmatpush1.msra.mxu0 %v209
        %1293 = vmatprep.subr.mxu0 0.0
        %1294 = vmatpush1.msra.mxu0 %v210
        %1295 = vmatprep.subr.mxu0 0.0
        %1296 = vmatpush1.msra.mxu0 %v211
        %1297 = vmatprep.subr.mxu0 0.0
        %1298 = vmatpush1.msra.mxu0 %v212
        %1299 = vmatprep.subr.mxu0 0.0
        %1300 = vmatpush1.msra.mxu0 0.0
        %1301 = vmatprep.subr.mxu0 0.0
        %1302 = vmatpush1.msra.mxu0 0.0
        %1303 = vmatprep.subr.mxu0 0.0
        %1304 = vmatpush1.msra.mxu0 0.0
        %1305 = vmatprep.subr.mxu0 0.0
        %1306 = vmatpush1.msra.mxu0 0.0
        %1307 = vmatprep.subr.mxu0 0.0
        %1308 = vmatpush1.msra.mxu0 0.0
        %1309 = vmatprep.subr.mxu0 0.0
        %1310 = vmatpush1.msra.mxu0 0.0
        %1311 = vmatprep.subr.mxu0 0.0
        %1312 = vmatpush1.msra.mxu0 0.0
        %1313 = vmatprep.subr.mxu0 0.0
        %1314 = vmatpush1.msra.mxu0 0.0
        %1315 = vmatprep.subr.mxu0 0.0
        %1316 = vmatpush1.msra.mxu0 0.0
        %1317 = vmatprep.subr.mxu0 0.0
        %1318 = vmatpush1.msra.mxu0 0.0
        %1319 = vmatprep.subr.mxu0 0.0
        %1320 = vmatpush1.msra.mxu0 0.0
        %1321 = vmatprep.subr.mxu0 0.0
        %1322 = vmatpush1.msra.mxu0 0.0
        %1323 = vmatprep.subr.mxu0 0.0
        %1324 = vmatpush1.msra.mxu0 0.0
        %1325 = vmatprep.subr.mxu0 0.0
        %1326 = vmatpush1.msra.mxu0 0.0
        %1327 = vmatprep.subr.mxu0 0.0
        %1328 = vmatpush1.msra.mxu0 0.0
        %1329 = vmatprep.subr.mxu0 0.0
        %1330 = vmatpush1.msra.mxu0 0.0
        %1331 = vmatprep.subr.mxu0 0.0
        %1332 = vmatpush1.msra.mxu0 0.0
        %1333 = vmatprep.subr.mxu0 0.0
        %1334 = vmatpush1.msra.mxu0 0.0
        %1335 = vmatprep.subr.mxu0 0.0
        %1336 = vmatpush1.msra.mxu0 0.0
        %1337 = vmatprep.subr.mxu0 0.0
        %1338 = vmatpush1.msra.mxu0 0.0
        %1339 = vmatprep.subr.mxu0 0.0
        %1340 = vmatpush1.msra.mxu0 0.0
        %1341 = vmatprep.subr.mxu0 0.0
        %1342 = vmatpush1.msra.mxu0 0.0
        %1343 = vmatprep.subr.mxu0 0.0
        %1344 = vmatpush1.msra.mxu0 0.0
        %1345 = vmatprep.subr.mxu0 0.0
        %1346 = vmatpush1.msra.mxu0 0.0
        %1347 = vmatprep.subr.mxu0 0.0
        %1348 = vmatpush1.msra.mxu0 0.0
        %1349 = vmatprep.subr.mxu0 0.0
        %1350 = vmatpush1.msra.mxu0 0.0
        %1351 = vmatprep.subr.mxu0 0.0
        %1352 = vmatpush1.msra.mxu0 0.0
        %1353 = vmatprep.subr.mxu0 0.0
        %1354 = vmatpush1.msra.mxu0 0.0
        %1355 = vmatprep.mubr.f32.mxu0 0.0
        %1356 = vmatmul.mubr.f32.gmra.mrb[0].mxu0 %v1289
        %v1357 = vpop.f32.mrb[0].mxu0
        %v1358 = vadd.f32 0.0, %v1357
        %v1359 = vpop.f32.mrb[0].mxu0
        %1360 = vdwg.mxu0
        %v1361 = vadd.f32 %v1285, %v1358
        %v1362 = vxor.u32 %v1361, 2147483648
        %v1363 = vmul.f32 %v1362, 1.442695
        %v1364 = vpow.pop %v1363
        %v1365 = vadd.f32 %v1364, 1.0
        %v1366 = vrcp.pop %v1365
        %v1367 = vmul.f32 1.0, %v1366
        %v1368 = vtanh.pop %v1361
        %v1369 = vmul.f32 %v1367, %v1283
        %1371 = vrot.lane.b32.xlu0 %v1368, 64
        %v1372 = vpop.permute.xlu0 %1371
        %v1374 = vmul.f32 %v1367, %v1372
        %1376 = vrot.lane.b32.xlu0 %v1374, 32
        %v1377 = vpop.permute.xlu0 %1376
        %v1379 = vadd.f32 %v1369, %v1377
        %v1380 = vtanh.pop %v1379
        %1382 = vrot.lane.b32.xlu0 %v1380, 64
        %v1383 = vpop.permute.xlu0 %1382
        %v1385 = vmul.f32 %v1367, %v1383
        %s1386 = sadd.s32 %s110, 2
        %v1387 = vstv %s1386
        %vm1388 = vcmp.gt.s32.totalorder %v213, %v1387
        %v1389 = vsel %vm1388, 1, 0
        %1390 = vset.pattern.permute.xlu0 0
        %1391 = vperm.xlu0 %1390, %v1389
        %v1392 = vpop.permute.xlu0 %1391
        %vm1393 = vcmp.eq.s32.totalorder %v1392, 1
        %v1394 = vsel %vm1393, %v1385, %v1282
        %v1395 = vsel %vm1393, %v1379, %v1283
        %s1396 = scalar_lea.vmem [#allocation2], 6
        %v1397 = vld [vmem:[%s1396] sm:$0x3]
        %1399 = vrot.lane.b32.xlu0 %v1394, 32
        %v1400 = vpop.permute.xlu0 %1399
        %v1401 = vsel %vm1057, %v1400, 0
        %1403 = vmatprep.subr.mxu0 0.0
        %1404 = vmatpush1.msra.mxu0 %v209
        %1405 = vmatprep.subr.mxu0 0.0
        %1406 = vmatpush1.msra.mxu0 %v210
        %1407 = vmatprep.subr.mxu0 0.0
        %1408 = vmatpush1.msra.mxu0 %v211
        %1409 = vmatprep.subr.mxu0 0.0
        %1410 = vmatpush1.msra.mxu0 %v212
        %1411 = vmatprep.subr.mxu0 0.0
        %1412 = vmatpush1.msra.mxu0 0.0
        %1413 = vmatprep.subr.mxu0 0.0
        %1414 = vmatpush1.msra.mxu0 0.0
        %1415 = vmatprep.subr.mxu0 0.0
        %1416 = vmatpush1.msra.mxu0 0.0
        %1417 = vmatprep.subr.mxu0 0.0
        %1418 = vmatpush1.msra.mxu0 0.0
        %1419 = vmatprep.subr.mxu0 0.0
        %1420 = vmatpush1.msra.mxu0 0.0
        %1421 = vmatprep.subr.mxu0 0.0
        %1422 = vmatpush1.msra.mxu0 0.0
        %1423 = vmatprep.subr.mxu0 0.0
        %1424 = vmatpush1.msra.mxu0 0.0
        %1425 = vmatprep.subr.mxu0 0.0
        %1426 = vmatpush1.msra.mxu0 0.0
        %1427 = vmatprep.subr.mxu0 0.0
        %1428 = vmatpush1.msra.mxu0 0.0
        %1429 = vmatprep.subr.mxu0 0.0
        %1430 = vmatpush1.msra.mxu0 0.0
        %1431 = vmatprep.subr.mxu0 0.0
        %1432 = vmatpush1.msra.mxu0 0.0
        %1433 = vmatprep.subr.mxu0 0.0
        %1434 = vmatpush1.msra.mxu0 0.0
        %1435 = vmatprep.subr.mxu0 0.0
        %1436 = vmatpush1.msra.mxu0 0.0
        %1437 = vmatprep.subr.mxu0 0.0
        %1438 = vmatpush1.msra.mxu0 0.0
        %1439 = vmatprep.subr.mxu0 0.0
        %1440 = vmatpush1.msra.mxu0 0.0
        %1441 = vmatprep.subr.mxu0 0.0
        %1442 = vmatpush1.msra.mxu0 0.0
        %1443 = vmatprep.subr.mxu0 0.0
        %1444 = vmatpush1.msra.mxu0 0.0
        %1445 = vmatprep.subr.mxu0 0.0
        %1446 = vmatpush1.msra.mxu0 0.0
        %1447 = vmatprep.subr.mxu0 0.0
        %1448 = vmatpush1.msra.mxu0 0.0
        %1449 = vmatprep.subr.mxu0 0.0
        %1450 = vmatpush1.msra.mxu0 0.0
        %1451 = vmatprep.subr.mxu0 0.0
        %1452 = vmatpush1.msra.mxu0 0.0
        %1453 = vmatprep.subr.mxu0 0.0
        %1454 = vmatpush1.msra.mxu0 0.0
        %1455 = vmatprep.subr.mxu0 0.0
        %1456 = vmatpush1.msra.mxu0 0.0
        %1457 = vmatprep.subr.mxu0 0.0
        %1458 = vmatpush1.msra.mxu0 0.0
        %1459 = vmatprep.subr.mxu0 0.0
        %1460 = vmatpush1.msra.mxu0 0.0
        %1461 = vmatprep.subr.mxu0 0.0
        %1462 = vmatpush1.msra.mxu0 0.0
        %1463 = vmatprep.subr.mxu0 0.0
        %1464 = vmatpush1.msra.mxu0 0.0
        %1465 = vmatprep.subr.mxu0 0.0
        %1466 = vmatpush1.msra.mxu0 0.0
        %1467 = vmatprep.mubr.f32.mxu0 0.0
        %1468 = vmatmul.mubr.f32.gmra.mrb[0].mxu0 %v1401
        %v1469 = vpop.f32.mrb[0].mxu0
        %v1470 = vadd.f32 0.0, %v1469
        %v1471 = vpop.f32.mrb[0].mxu0
        %1472 = vdwg.mxu0
        %v1473 = vadd.f32 %v1397, %v1470
        %v1474 = vxor.u32 %v1473, 2147483648
        %v1475 = vmul.f32 %v1474, 1.442695
        %v1476 = vpow.pop %v1475
        %v1477 = vadd.f32 %v1476, 1.0
        %v1478 = vrcp.pop %v1477
        %v1479 = vmul.f32 1.0, %v1478
        %v1480 = vtanh.pop %v1473
        %v1481 = vmul.f32 %v1479, %v1395
        %1483 = vrot.lane.b32.xlu0 %v1480, 64
        %v1484 = vpop.permute.xlu0 %1483
        %v1486 = vmul.f32 %v1479, %v1484
        %1488 = vrot.lane.b32.xlu0 %v1486, 32
        %v1489 = vpop.permute.xlu0 %1488
        %v1491 = vadd.f32 %v1481, %v1489
        %v1492 = vtanh.pop %v1491
        %1494 = vrot.lane.b32.xlu0 %v1492, 64
        %v1495 = vpop.permute.xlu0 %1494
        %v1497 = vmul.f32 %v1479, %v1495
        %s1498 = sadd.s32 %s110, 3
        %v1499 = vstv %s1498
        %vm1500 = vcmp.gt.s32.totalorder %v213, %v1499
        %v1501 = vsel %vm1500, 1, 0
        %1502 = vset.pattern.permute.xlu0 0
        %1503 = vperm.xlu0 %1502, %v1501
        %v1504 = vpop.permute.xlu0 %1503
        %vm1505 = vcmp.eq.s32.totalorder %v1504, 1
        %v1506 = vsel %vm1505, %v1497, %v1394
        %v1507 = vsel %vm1505, %v1491, %v1395
        %s1508 = scalar_lea.vmem [#allocation2], 8
        %v1509 = vld [vmem:[%s1508] sm:$0x3]
        %1511 = vrot.lane.b32.xlu0 %v1506, 32
        %v1512 = vpop.permute.xlu0 %1511
        %v1513 = vsel %vm1057, %v1512, 0
        %1515 = vmatprep.subr.mxu0 0.0
        %1516 = vmatpush1.msra.mxu0 %v209
        %1517 = vmatprep.subr.mxu0 0.0
        %1518 = vmatpush1.msra.mxu0 %v210
        %1519 = vmatprep.subr.mxu0 0.0
        %1520 = vmatpush1.msra.mxu0 %v211
        %1521 = vmatprep.subr.mxu0 0.0
        %1522 = vmatpush1.msra.mxu0 %v212
        %1523 = vmatprep.subr.mxu0 0.0
        %1524 = vmatpush1.msra.mxu0 0.0
        %1525 = vmatprep.subr.mxu0 0.0
        %1526 = vmatpush1.msra.mxu0 0.0
        %1527 = vmatprep.subr.mxu0 0.0
        %1528 = vmatpush1.msra.mxu0 0.0
        %1529 = vmatprep.subr.mxu0 0.0
        %1530 = vmatpush1.msra.mxu0 0.0
        %1531 = vmatprep.subr.mxu0 0.0
        %1532 = vmatpush1.msra.mxu0 0.0
        %1533 = vmatprep.subr.mxu0 0.0
        %1534 = vmatpush1.msra.mxu0 0.0
        %1535 = vmatprep.subr.mxu0 0.0
        %1536 = vmatpush1.msra.mxu0 0.0
        %1537 = vmatprep.subr.mxu0 0.0
        %1538 = vmatpush1.msra.mxu0 0.0
        %1539 = vmatprep.subr.mxu0 0.0
        %1540 = vmatpush1.msra.mxu0 0.0
        %1541 = vmatprep.subr.mxu0 0.0
        %1542 = vmatpush1.msra.mxu0 0.0
        %1543 = vmatprep.subr.mxu0 0.0
        %1544 = vmatpush1.msra.mxu0 0.0
        %1545 = vmatprep.subr.mxu0 0.0
        %1546 = vmatpush1.msra.mxu0 0.0
        %1547 = vmatprep.subr.mxu0 0.0
        %1548 = vmatpush1.msra.mxu0 0.0
        %1549 = vmatprep.subr.mxu0 0.0
        %1550 = vmatpush1.msra.mxu0 0.0
        %1551 = vmatprep.subr.mxu0 0.0
        %1552 = vmatpush1.msra.mxu0 0.0
        %1553 = vmatprep.subr.mxu0 0.0
        %1554 = vmatpush1.msra.mxu0 0.0
        %1555 = vmatprep.subr.mxu0 0.0
        %1556 = vmatpush1.msra.mxu0 0.0
        %1557 = vmatprep.subr.mxu0 0.0
        %1558 = vmatpush1.msra.mxu0 0.0
        %1559 = vmatprep.subr.mxu0 0.0
        %1560 = vmatpush1.msra.mxu0 0.0
        %1561 = vmatprep.subr.mxu0 0.0
        %1562 = vmatpush1.msra.mxu0 0.0
        %1563 = vmatprep.subr.mxu0 0.0
        %1564 = vmatpush1.msra.mxu0 0.0
        %1565 = vmatprep.subr.mxu0 0.0
        %1566 = vmatpush1.msra.mxu0 0.0
        %1567 = vmatprep.subr.mxu0 0.0
        %1568 = vmatpush1.msra.mxu0 0.0
        %1569 = vmatprep.subr.mxu0 0.0
        %1570 = vmatpush1.msra.mxu0 0.0
        %1571 = vmatprep.subr.mxu0 0.0
        %1572 = vmatpush1.msra.mxu0 0.0
        %1573 = vmatprep.subr.mxu0 0.0
        %1574 = vmatpush1.msra.mxu0 0.0
        %1575 = vmatprep.subr.mxu0 0.0
        %1576 = vmatpush1.msra.mxu0 0.0
        %1577 = vmatprep.subr.mxu0 0.0
        %1578 = vmatpush1.msra.mxu0 0.0
        %1579 = vmatprep.mubr.f32.mxu0 0.0
        %1580 = vmatmul.mubr.f32.gmra.mrb[0].mxu0 %v1513
        %v1581 = vpop.f32.mrb[0].mxu0
        %v1582 = vadd.f32 0.0, %v1581
        %v1583 = vpop.f32.mrb[0].mxu0
        %1584 = vdwg.mxu0
        %v1585 = vadd.f32 %v1509, %v1582
        %v1586 = vxor.u32 %v1585, 2147483648
        %v1587 = vmul.f32 %v1586, 1.442695
        %v1588 = vpow.pop %v1587
        %v1589 = vadd.f32 %v1588, 1.0
        %v1590 = vrcp.pop %v1589
        %v1591 = vmul.f32 1.0, %v1590
        %v1592 = vtanh.pop %v1585
        %v1593 = vmul.f32 %v1591, %v1507
        %1595 = vrot.lane.b32.xlu0 %v1592, 64
        %v1596 = vpop.permute.xlu0 %1595
        %v1598 = vmul.f32 %v1591, %v1596
        %1600 = vrot.lane.b32.xlu0 %v1598, 32
        %v1601 = vpop.permute.xlu0 %1600
        %v1603 = vadd.f32 %v1593, %v1601
        %v1604 = vtanh.pop %v1603
        %1606 = vrot.lane.b32.xlu0 %v1604, 64
        %v1607 = vpop.permute.xlu0 %1606
        %v1609 = vmul.f32 %v1591, %v1607
        %s1610 = sadd.s32 %s110, 4
        %v1611 = vstv %s1610
        %vm1612 = vcmp.gt.s32.totalorder %v213, %v1611
        %v1613 = vsel %vm1612, 1, 0
        %1614 = vset.pattern.permute.xlu0 0
        %1615 = vperm.xlu0 %1614, %v1613
        %v1616 = vpop.permute.xlu0 %1615
        %vm1617 = vcmp.eq.s32.totalorder %v1616, 1
        %v1618 = vsel %vm1617, %v1609, %v1506
        %v1619 = vsel %vm1617, %v1603, %v1507
        %s1620 = scalar_lea.vmem [#allocation2], 10
        %v1621 = vld [vmem:[%s1620] sm:$0x3]
        %1623 = vrot.lane.b32.xlu0 %v1618, 32
        %v1624 = vpop.permute.xlu0 %1623
        %v1625 = vsel %vm1057, %v1624, 0
        %1627 = vmatprep.subr.mxu0 0.0
        %1628 = vmatpush1.msra.mxu0 %v209
        %1629 = vmatprep.subr.mxu0 0.0
        %1630 = vmatpush1.msra.mxu0 %v210
        %1631 = vmatprep.subr.mxu0 0.0
        %1632 = vmatpush1.msra.mxu0 %v211
        %1633 = vmatprep.subr.mxu0 0.0
        %1634 = vmatpush1.msra.mxu0 %v212
        %1635 = vmatprep.subr.mxu0 0.0
        %1636 = vmatpush1.msra.mxu0 0.0
        %1637 = vmatprep.subr.mxu0 0.0
        %1638 = vmatpush1.msra.mxu0 0.0
        %1639 = vmatprep.subr.mxu0 0.0
        %1640 = vmatpush1.msra.mxu0 0.0
        %1641 = vmatprep.subr.mxu0 0.0
        %1642 = vmatpush1.msra.mxu0 0.0
        %1643 = vmatprep.subr.mxu0 0.0
        %1644 = vmatpush1.msra.mxu0 0.0
        %1645 = vmatprep.subr.mxu0 0.0
        %1646 = vmatpush1.msra.mxu0 0.0
        %1647 = vmatprep.subr.mxu0 0.0
        %1648 = vmatpush1.msra.mxu0 0.0
        %1649 = vmatprep.subr.mxu0 0.0
        %1650 = vmatpush1.msra.mxu0 0.0
        %1651 = vmatprep.subr.mxu0 0.0
        %1652 = vmatpush1.msra.mxu0 0.0
        %1653 = vmatprep.subr.mxu0 0.0
        %1654 = vmatpush1.msra.mxu0 0.0
        %1655 = vmatprep.subr.mxu0 0.0
        %1656 = vmatpush1.msra.mxu0 0.0
        %1657 = vmatprep.subr.mxu0 0.0
        %1658 = vmatpush1.msra.mxu0 0.0
        %1659 = vmatprep.subr.mxu0 0.0
        %1660 = vmatpush1.msra.mxu0 0.0
        %1661 = vmatprep.subr.mxu0 0.0
        %1662 = vmatpush1.msra.mxu0 0.0
        %1663 = vmatprep.subr.mxu0 0.0
        %1664 = vmatpush1.msra.mxu0 0.0
        %1665 = vmatprep.subr.mxu0 0.0
        %1666 = vmatpush1.msra.mxu0 0.0
        %1667 = vmatprep.subr.mxu0 0.0
        %1668 = vmatpush1.msra.mxu0 0.0
        %1669 = vmatprep.subr.mxu0 0.0
        %1670 = vmatpush1.msra.mxu0 0.0
        %1671 = vmatprep.subr.mxu0 0.0
        %1672 = vmatpush1.msra.mxu0 0.0
        %1673 = vmatprep.subr.mxu0 0.0
        %1674 = vmatpush1.msra.mxu0 0.0
        %1675 = vmatprep.subr.mxu0 0.0
        %1676 = vmatpush1.msra.mxu0 0.0
        %1677 = vmatprep.subr.mxu0 0.0
        %1678 = vmatpush1.msra.mxu0 0.0
        %1679 = vmatprep.subr.mxu0 0.0
        %1680 = vmatpush1.msra.mxu0 0.0
        %1681 = vmatprep.subr.mxu0 0.0
        %1682 = vmatpush1.msra.mxu0 0.0
        %1683 = vmatprep.subr.mxu0 0.0
        %1684 = vmatpush1.msra.mxu0 0.0
        %1685 = vmatprep.subr.mxu0 0.0
        %1686 = vmatpush1.msra.mxu0 0.0
        %1687 = vmatprep.subr.mxu0 0.0
        %1688 = vmatpush1.msra.mxu0 0.0
        %1689 = vmatprep.subr.mxu0 0.0
        %1690 = vmatpush1.msra.mxu0 0.0
        %1691 = vmatprep.mubr.f32.mxu0 0.0
        %1692 = vmatmul.mubr.f32.gmra.mrb[0].mxu0 %v1625
        %v1693 = vpop.f32.mrb[0].mxu0
        %v1694 = vadd.f32 0.0, %v1693
        %v1695 = vpop.f32.mrb[0].mxu0
        %1696 = vdwg.mxu0
        %v1697 = vadd.f32 %v1621, %v1694
        %v1698 = vxor.u32 %v1697, 2147483648
        %v1699 = vmul.f32 %v1698, 1.442695
        %v1700 = vpow.pop %v1699
        %v1701 = vadd.f32 %v1700, 1.0
        %v1702 = vrcp.pop %v1701
        %v1703 = vmul.f32 1.0, %v1702
        %v1704 = vtanh.pop %v1697
        %v1705 = vmul.f32 %v1703, %v1619
        %1707 = vrot.lane.b32.xlu0 %v1704, 64
        %v1708 = vpop.permute.xlu0 %1707
        %v1710 = vmul.f32 %v1703, %v1708
        %1712 = vrot.lane.b32.xlu0 %v1710, 32
        %v1713 = vpop.permute.xlu0 %1712
        %v1715 = vadd.f32 %v1705, %v1713
        %v1716 = vtanh.pop %v1715
        %1718 = vrot.lane.b32.xlu0 %v1716, 64
        %v1719 = vpop.permute.xlu0 %1718
        %v1721 = vmul.f32 %v1703, %v1719
        %s1722 = sadd.s32 %s110, 5
        %v1723 = vstv %s1722
        %vm1724 = vcmp.gt.s32.totalorder %v213, %v1723
        %v1725 = vsel %vm1724, 1, 0
        %1726 = vset.pattern.permute.xlu0 0
        %1727 = vperm.xlu0 %1726, %v1725
        %v1728 = vpop.permute.xlu0 %1727
        %vm1729 = vcmp.eq.s32.totalorder %v1728, 1
        %v1730 = vsel %vm1729, %v1721, %v1618
        %v1731 = vsel %vm1729, %v1715, %v1619
        %s1732 = scalar_lea.vmem [#allocation2], 12
        %v1733 = vld [vmem:[%s1732] sm:$0x3]
        %1735 = vrot.lane.b32.xlu0 %v1730, 32
        %v1736 = vpop.permute.xlu0 %1735
        %v1737 = vsel %vm1057, %v1736, 0
        %1739 = vmatprep.subr.mxu0 0.0
        %1740 = vmatpush1.msra.mxu0 %v209
        %1741 = vmatprep.subr.mxu0 0.0
        %1742 = vmatpush1.msra.mxu0 %v210
        %1743 = vmatprep.subr.mxu0 0.0
        %1744 = vmatpush1.msra.mxu0 %v211
        %1745 = vmatprep.subr.mxu0 0.0
        %1746 = vmatpush1.msra.mxu0 %v212
        %1747 = vmatprep.subr.mxu0 0.0
        %1748 = vmatpush1.msra.mxu0 0.0
        %1749 = vmatprep.subr.mxu0 0.0
        %1750 = vmatpush1.msra.mxu0 0.0
        %1751 = vmatprep.subr.mxu0 0.0
        %1752 = vmatpush1.msra.mxu0 0.0
        %1753 = vmatprep.subr.mxu0 0.0
        %1754 = vmatpush1.msra.mxu0 0.0
        %1755 = vmatprep.subr.mxu0 0.0
        %1756 = vmatpush1.msra.mxu0 0.0
        %1757 = vmatprep.subr.mxu0 0.0
        %1758 = vmatpush1.msra.mxu0 0.0
        %1759 = vmatprep.subr.mxu0 0.0
        %1760 = vmatpush1.msra.mxu0 0.0
        %1761 = vmatprep.subr.mxu0 0.0
        %1762 = vmatpush1.msra.mxu0 0.0
        %1763 = vmatprep.subr.mxu0 0.0
        %1764 = vmatpush1.msra.mxu0 0.0
        %1765 = vmatprep.subr.mxu0 0.0
        %1766 = vmatpush1.msra.mxu0 0.0
        %1767 = vmatprep.subr.mxu0 0.0
        %1768 = vmatpush1.msra.mxu0 0.0
        %1769 = vmatprep.subr.mxu0 0.0
        %1770 = vmatpush1.msra.mxu0 0.0
        %1771 = vmatprep.subr.mxu0 0.0
        %1772 = vmatpush1.msra.mxu0 0.0
        %1773 = vmatprep.subr.mxu0 0.0
        %1774 = vmatpush1.msra.mxu0 0.0
        %1775 = vmatprep.subr.mxu0 0.0
        %1776 = vmatpush1.msra.mxu0 0.0
        %1777 = vmatprep.subr.mxu0 0.0
        %1778 = vmatpush1.msra.mxu0 0.0
        %1779 = vmatprep.subr.mxu0 0.0
        %1780 = vmatpush1.msra.mxu0 0.0
        %1781 = vmatprep.subr.mxu0 0.0
        %1782 = vmatpush1.msra.mxu0 0.0
        %1783 = vmatprep.subr.mxu0 0.0
        %1784 = vmatpush1.msra.mxu0 0.0
        %1785 = vmatprep.subr.mxu0 0.0
        %1786 = vmatpush1.msra.mxu0 0.0
        %1787 = vmatprep.subr.mxu0 0.0
        %1788 = vmatpush1.msra.mxu0 0.0
        %1789 = vmatprep.subr.mxu0 0.0
        %1790 = vmatpush1.msra.mxu0 0.0
        %1791 = vmatprep.subr.mxu0 0.0
        %1792 = vmatpush1.msra.mxu0 0.0
        %1793 = vmatprep.subr.mxu0 0.0
        %1794 = vmatpush1.msra.mxu0 0.0
        %1795 = vmatprep.subr.mxu0 0.0
        %1796 = vmatpush1.msra.mxu0 0.0
        %1797 = vmatprep.subr.mxu0 0.0
        %1798 = vmatpush1.msra.mxu0 0.0
        %1799 = vmatprep.subr.mxu0 0.0
        %1800 = vmatpush1.msra.mxu0 0.0
        %1801 = vmatprep.subr.mxu0 0.0
        %1802 = vmatpush1.msra.mxu0 0.0
        %1803 = vmatprep.mubr.f32.mxu0 0.0
        %1804 = vmatmul.mubr.f32.gmra.mrb[0].mxu0 %v1737
        %v1805 = vpop.f32.mrb[0].mxu0
        %v1806 = vadd.f32 0.0, %v1805
        %v1807 = vpop.f32.mrb[0].mxu0
        %1808 = vdwg.mxu0
        %v1809 = vadd.f32 %v1733, %v1806
        %v1810 = vxor.u32 %v1809, 2147483648
        %v1811 = vmul.f32 %v1810, 1.442695
        %v1812 = vpow.pop %v1811
        %v1813 = vadd.f32 %v1812, 1.0
        %v1814 = vrcp.pop %v1813
        %v1815 = vmul.f32 1.0, %v1814
        %v1816 = vtanh.pop %v1809
        %v1817 = vmul.f32 %v1815, %v1731
        %1819 = vrot.lane.b32.xlu0 %v1816, 64
        %v1820 = vpop.permute.xlu0 %1819
        %v1822 = vmul.f32 %v1815, %v1820
        %1824 = vrot.lane.b32.xlu0 %v1822, 32
        %v1825 = vpop.permute.xlu0 %1824
        %v1827 = vadd.f32 %v1817, %v1825
        %v1828 = vtanh.pop %v1827
        %1830 = vrot.lane.b32.xlu0 %v1828, 64
        %v1831 = vpop.permute.xlu0 %1830
        %v1833 = vmul.f32 %v1815, %v1831
        %s1834 = sadd.s32 %s110, 6
        %v1835 = vstv %s1834
        %vm1836 = vcmp.gt.s32.totalorder %v213, %v1835
        %v1837 = vsel %vm1836, 1, 0
        %1838 = vset.pattern.permute.xlu0 0
        %1839 = vperm.xlu0 %1838, %v1837
        %v1840 = vpop.permute.xlu0 %1839
        %vm1841 = vcmp.eq.s32.totalorder %v1840, 1
        %v1842 = vsel %vm1841, %v1833, %v1730
        %v1843 = vsel %vm1841, %v1827, %v1731
        %s1844 = scalar_lea.vmem [#allocation2], 14
        %v1845 = vld [vmem:[%s1844] sm:$0x3]
        %1847 = vrot.lane.b32.xlu0 %v1842, 32
        %v1848 = vpop.permute.xlu0 %1847
        %v1849 = vsel %vm1057, %v1848, 0
        %1851 = vmatprep.subr.mxu0 0.0
        %1852 = vmatpush1.msra.mxu0 %v209
        %1853 = vmatprep.subr.mxu0 0.0
        %1854 = vmatpush1.msra.mxu0 %v210
        %1855 = vmatprep.subr.mxu0 0.0
        %1856 = vmatpush1.msra.mxu0 %v211
        %1857 = vmatprep.subr.mxu0 0.0
        %1858 = vmatpush1.msra.mxu0 %v212
        %1859 = vmatprep.subr.mxu0 0.0
        %1860 = vmatpush1.msra.mxu0 0.0
        %1861 = vmatprep.subr.mxu0 0.0
        %1862 = vmatpush1.msra.mxu0 0.0
        %1863 = vmatprep.subr.mxu0 0.0
        %1864 = vmatpush1.msra.mxu0 0.0
        %1865 = vmatprep.subr.mxu0 0.0
        %1866 = vmatpush1.msra.mxu0 0.0
        %1867 = vmatprep.subr.mxu0 0.0
        %1868 = vmatpush1.msra.mxu0 0.0
        %1869 = vmatprep.subr.mxu0 0.0
        %1870 = vmatpush1.msra.mxu0 0.0
        %1871 = vmatprep.subr.mxu0 0.0
        %1872 = vmatpush1.msra.mxu0 0.0
        %1873 = vmatprep.subr.mxu0 0.0
        %1874 = vmatpush1.msra.mxu0 0.0
        %1875 = vmatprep.subr.mxu0 0.0
        %1876 = vmatpush1.msra.mxu0 0.0
        %1877 = vmatprep.subr.mxu0 0.0
        %1878 = vmatpush1.msra.mxu0 0.0
        %1879 = vmatprep.subr.mxu0 0.0
        %1880 = vmatpush1.msra.mxu0 0.0
        %1881 = vmatprep.subr.mxu0 0.0
        %1882 = vmatpush1.msra.mxu0 0.0
        %1883 = vmatprep.subr.mxu0 0.0
        %1884 = vmatpush1.msra.mxu0 0.0
        %1885 = vmatprep.subr.mxu0 0.0
        %1886 = vmatpush1.msra.mxu0 0.0
        %1887 = vmatprep.subr.mxu0 0.0
        %1888 = vmatpush1.msra.mxu0 0.0
        %1889 = vmatprep.subr.mxu0 0.0
        %1890 = vmatpush1.msra.mxu0 0.0
        %1891 = vmatprep.subr.mxu0 0.0
        %1892 = vmatpush1.msra.mxu0 0.0
        %1893 = vmatprep.subr.mxu0 0.0
        %1894 = vmatpush1.msra.mxu0 0.0
        %1895 = vmatprep.subr.mxu0 0.0
        %1896 = vmatpush1.msra.mxu0 0.0
        %1897 = vmatprep.subr.mxu0 0.0
        %1898 = vmatpush1.msra.mxu0 0.0
        %1899 = vmatprep.subr.mxu0 0.0
        %1900 = vmatpush1.msra.mxu0 0.0
        %1901 = vmatprep.subr.mxu0 0.0
        %1902 = vmatpush1.msra.mxu0 0.0
        %1903 = vmatprep.subr.mxu0 0.0
        %1904 = vmatpush1.msra.mxu0 0.0
        %1905 = vmatprep.subr.mxu0 0.0
        %1906 = vmatpush1.msra.mxu0 0.0
        %1907 = vmatprep.subr.mxu0 0.0
        %1908 = vmatpush1.msra.mxu0 0.0
        %1909 = vmatprep.subr.mxu0 0.0
        %1910 = vmatpush1.msra.mxu0 0.0
        %1911 = vmatprep.subr.mxu0 0.0
        %1912 = vmatpush1.msra.mxu0 0.0
        %1913 = vmatprep.subr.mxu0 0.0
        %1914 = vmatpush1.msra.mxu0 0.0
        %1915 = vmatprep.mubr.f32.mxu0 0.0
        %1916 = vmatmul.mubr.f32.gmra.mrb[0].mxu0 %v1849
        %v1917 = vpop.f32.mrb[0].mxu0
        %v1918 = vadd.f32 0.0, %v1917
        %v1919 = vpop.f32.mrb[0].mxu0
        %1920 = vdwg.mxu0
        %v1921 = vadd.f32 %v1845, %v1918
        %v1922 = vxor.u32 %v1921, 2147483648
        %v1923 = vmul.f32 %v1922, 1.442695
        %v1924 = vpow.pop %v1923
        %v1925 = vadd.f32 %v1924, 1.0
        %v1926 = vrcp.pop %v1925
        %v1927 = vmul.f32 1.0, %v1926
        %v1928 = vtanh.pop %v1921
        %v1929 = vmul.f32 %v1927, %v1843
        %1931 = vrot.lane.b32.xlu0 %v1928, 64
        %v1932 = vpop.permute.xlu0 %1931
        %v1934 = vmul.f32 %v1927, %v1932
        %1936 = vrot.lane.b32.xlu0 %v1934, 32
        %v1937 = vpop.permute.xlu0 %1936
        %v1939 = vadd.f32 %v1929, %v1937
        %v1940 = vtanh.pop %v1939
        %1942 = vrot.lane.b32.xlu0 %v1940, 64
        %v1943 = vpop.permute.xlu0 %1942
        %v1945 = vmul.f32 %v1927, %v1943
        %s1946 = sadd.s32 %s110, 7
        %v1947 = vstv %s1946
        %vm1948 = vcmp.gt.s32.totalorder %v213, %v1947
        %v1949 = vsel %vm1948, 1, 0
        %1950 = vset.pattern.permute.xlu0 0
        %1951 = vperm.xlu0 %1950, %v1949
        %v1952 = vpop.permute.xlu0 %1951
        %vm1953 = vcmp.eq.s32.totalorder %v1952, 1
        %v1954 = vsel %vm1953, %v1945, %v1842
        %v1955 = vsel %vm1953, %v1939, %v1843
        %1957 = vrot.lane.b32.xlu0 %v1954, 32
        %v1958 = vpop.permute.xlu0 %1957
        %vm1960 = vcmask 254976
        %1961 = vst.msk [vmem:[#allocation3] sm:$0x3] %vm1960, %v1958
        %1963 = vrot.lane.b32.xlu0 %v1955, 96
        %v1964 = vpop.permute.xlu0 %1963
        %1966 = vst.msk [vmem:[#allocation4] sm:$0x3] %vm1960, %v1964
      $region56: #{tpu_custom_call.1} parent=40 // pred_fallthru
        _
    $region41: #{tpu_custom_call.1} parent=1 // pred_fallthru
      _
    // Predicated region
    $region57: #{tpu_custom_call.1} parent=1 // pred_check
      %p1967 = pneg %p99
    $region58: #{tpu_custom_call.1} parent=1 // pred_check_branch
      %1969 = sbr.rel (%p1967) target = $region60
    $region59: #{tpu_custom_call.1} parent=1 // pred_region
      %v1970 = vld [vmem:[#allocation3] sm:$0x3]
      %vm1971 = vcmask 254976
      %1972 = vst.msk [vmem:[#allocation13] sm:$0x3] %vm1971, %v1970
    $region60: #{tpu_custom_call.1} parent=1 // pred_fallthru
      _
    // Predicated region
    $region61: #{tpu_custom_call.1} parent=1 // pred_check
      _
    $region62: #{tpu_custom_call.1} parent=1 // pred_check_branch
      %1974 = sbr.rel (0) target = $region64
    $region63: #{tpu_custom_call.1} parent=1 // pred_region
      %s1976 = ssub.s32 32, 32
      %1977 = vsyncadd [#allocation9], %s1976
      %s1979 = sshll.u32 [#allocation13], 4
      %s1980 = int_to_ptr.vmem [resolvable:$true] %s1979
      %1982 = dma.vmem_to_hbm [thread:$0]  %s1980, 32, %s6, [#allocation9]
    $region64: #{tpu_custom_call.1} parent=1 // pred_fallthru
      _
    // Predicated region
    $region65: #{tpu_custom_call.1} parent=1 // pred_check
      _
    $region66: #{tpu_custom_call.1} parent=1 // pred_check_branch
      %1984 = sbr.rel (0) target = $region68
    $region67: #{tpu_custom_call.1} parent=1 // pred_region
      %1985 = dma.done [#allocation9], 32
    $region68: #{tpu_custom_call.1} parent=1 // pred_fallthru
      _
    %1986 = vsyncpa [#allocation8], 1
    %1987 = vsyncpa [#allocation11], 1
    %1988 = vsyncpa [#allocation9], 1

// kernel: tpu_custom_call.1
$region0: #{tpu_custom_call.1}
  #allocation0 [shape = 'u32[]', space=smem, size = 0x4, offset = 0x4, fixed_abs, tag = 'smem constant byte address 0x4 - core index']
  #allocation1 [shape = 'u32[144,128]{1,0:T(1,128)}', space=vmem, size = 0x12000, scoped, tag = 'internal scratch']
  #allocation2 [shape = 'f32[8,2,128]{2,1,0:T(2,128)}', space=vmem, size = 0x2000, scoped, tag = 'scratch operand']
  #allocation3 [shape = 'f32[2,32]{1,0:T(2,128)}', space=vmem, size = 0x400, scoped, tag = 'scratch operand']
  #allocation4 [shape = 'f32[2,32]{1,0:T(2,128)}', space=vmem, size = 0x400, scoped, tag = 'scratch operand']
  #allocation5 [shape = 's32[1]{0}', space=sflag, size = 0x4, scoped, tag = 'scoped memory for tpu_custom_call.1']
  #allocation6 [shape = 'u8[512]{0}', space=smem, size = 0x200, scoped, tag = 'prefetched SMEM operand 0']
  %s0 = inlined_call_operand.vmem [shape: s32[2], index: 0, kind: input, shape index: {}]
  %s1 = inlined_call_operand.hbm [shape: f32[8,2,16], index: 1, kind: input, shape index: {}]
  %s2 = inlined_call_operand.vmem [shape: s32[2,1], index: 2, kind: input, shape index: {}]
  %s3 = inlined_call_operand.hbm [shape: f32[16,128], index: 3, kind: input, shape index: {}]
  %s4 = inlined_call_operand.hbm [shape: f32[32,128], index: 4, kind: input, shape index: {}]
  %s5 = inlined_call_operand.vmem [shape: f32[1,128], index: 5, kind: input, shape index: {}]
  %s6 = inlined_call_operand.hbm [shape: f32[2,32], index: 6, kind: output, shape index: {}]
  %s7 = sld [smem:[#allocation0]]
  $region69: #{tpu_custom_call.1} parent=0
    _
  %s9 = ssub.s32 1, %s7
  %s10 = scalar_select 0, %s9, %s7
  %s11 = sshll.u32 %s0, 4
  %s12 = int_to_ptr.vmem [resolvable:$true] %s11
  %14 = dma.vmem_to_smem %s12, 16, [#allocation6], [#allocation5]
  %15 = dma.done [#allocation5], 16
  %16 = sfence
  $region1: #{tpu_custom_call.1} parent=0
    #allocation7 [shape = 'u8[8192]{0}', space=vmem, size = 0x2000, scoped, tag = 'input window, operand 1, single buffered']
    #allocation8 [shape = 's32[1]{0}', space=sflag, size = 0x4, scoped, tag = 'scoped memory for tpu_custom_call.1']
    #allocation9 [shape = 's32[1]{0}', space=sflag, size = 0x4, scoped, tag = 'scoped memory for tpu_custom_call.1']
    #allocation10 [shape = 'u8[8192]{0}', space=vmem, size = 0x2000, scoped, tag = 'input window, operand 3, single buffered']
    #allocation11 [shape = 's32[1]{0}', space=sflag, size = 0x4, scoped, tag = 'scoped memory for tpu_custom_call.1']
    #allocation12 [shape = 'u8[16384]{0}', space=vmem, size = 0x4000, scoped, tag = 'input window, operand 4, single buffered']
    #allocation13 [shape = 'u8[1024]{0}', space=vmem, size = 0x400, scoped, tag = 'output window, operand 0, single buffered']
    %17 = vsyncpa [#allocation8], 0
    %18 = vsyncpa [#allocation11], 0
    %19 = vsyncpa [#allocation9], 0
    // Predicated region
    $region2: #{tpu_custom_call.1} parent=1 // pred_check
      _
    $region3: #{tpu_custom_call.1} parent=1 // pred_check_branch
      %21 = sbr.rel (0) target = $region5
    $region4: #{tpu_custom_call.1} parent=1 // pred_region
      %s22 = smul.u32 0, 2
      %s23 = sld [smem:[#allocation6 + %s22]]
      %s24 = ssub.s32 %s23, 1
      %p25 = scmp.gt.s32.totalorder %s24, 0
      %s26 = scalar_select %p25, %s24, 0
      %p27 = scmp.lt.s32.totalorder %s26, 0
      %s28 = ssub.s32 0, %s26
      %s29 = scalar_select %p27, %s28, %s26
      %s30 = sshrl.u32 %s29, 3
      %s31 = ssub.s32 0, %s30
      %s32 = scalar_select %p27, %s31, %s30
      %p33 = scmp.lt.s32.totalorder 0, %s32
      %s34 = scalar_select %p33, 0, %s32
      %s35 = smul.u32 8, %s34
      %s37 = ssub.s32 256, 256
      %38 = vsyncadd [#allocation8], %s37
      %s39 = smul.addr %s35, 32
      %s40 = scalar_lea.hbm %s1, %s39
      %s41 = sshll.u32 [#allocation7], 4
      %s42 = int_to_ptr.vmem [resolvable:$true] %s41
      %47 = dma.hbm_to_vmem [thread:$0]  %s40, 256, %s42, [#allocation8], 32, 32, 2
    $region5: #{tpu_custom_call.1} parent=1 // pred_fallthru
      _
    // Predicated region
    $region6: #{tpu_custom_call.1} parent=1 // pred_check
      _
    $region7: #{tpu_custom_call.1} parent=1 // pred_check_branch
      %49 = sbr.rel (0) target = $region9
    $region8: #{tpu_custom_call.1} parent=1 // pred_region
      _
    $region9: #{tpu_custom_call.1} parent=1 // pred_fallthru
      _
    // Predicated region
    $region10: #{tpu_custom_call.1} parent=1 // pred_check
      _
    $region11: #{tpu_custom_call.1} parent=1 // pred_check_branch
      %51 = sbr.rel (0) target = $region13
    $region12: #{tpu_custom_call.1} parent=1 // pred_region
      %s53 = ssub.s32 256, 256
      %54 = vsyncadd [#allocation11], %s53
      %s55 = sshll.u32 [#allocation10], 4
      %s56 = int_to_ptr.vmem [resolvable:$true] %s55
      %61 = dma.hbm_to_vmem [thread:$0]  %s3, 256, %s56, [#allocation11], 128, 128, 8
    $region13: #{tpu_custom_call.1} parent=1 // pred_fallthru
      _
    // Predicated region
    $region14: #{tpu_custom_call.1} parent=1 // pred_check
      _
    $region15: #{tpu_custom_call.1} parent=1 // pred_check_branch
      %63 = sbr.rel (0) target = $region17
    $region16: #{tpu_custom_call.1} parent=1 // pred_region
      %s65 = ssub.s32 512, 512
      %66 = vsyncadd [#allocation11], %s65
      %s67 = sshll.u32 [#allocation12], 4
      %s68 = int_to_ptr.vmem [resolvable:$true] %s67
      %73 = dma.hbm_to_vmem [thread:$0]  %s4, 512, %s68, [#allocation11], 128, 128, 8
    $region17: #{tpu_custom_call.1} parent=1 // pred_fallthru
      _
    // Predicated region
    $region18: #{tpu_custom_call.1} parent=1 // pred_check
      _
    $region19: #{tpu_custom_call.1} parent=1 // pred_check_branch
      %75 = sbr.rel (0) target = $region21
    $region20: #{tpu_custom_call.1} parent=1 // pred_region
      _
    $region21: #{tpu_custom_call.1} parent=1 // pred_fallthru
      _
    // Predicated region
    $region22: #{tpu_custom_call.1} parent=1 // pred_check
      _
    $region23: #{tpu_custom_call.1} parent=1 // pred_check_branch
      %77 = sbr.rel (0) target = $region25
    $region24: #{tpu_custom_call.1} parent=1 // pred_region
      %78 = dma.done [#allocation8], 256
    $region25: #{tpu_custom_call.1} parent=1 // pred_fallthru
      _
    // Predicated region
    $region26: #{tpu_custom_call.1} parent=1 // pred_check
      _
    $region27: #{tpu_custom_call.1} parent=1 // pred_check_branch
      %80 = sbr.rel (0) target = $region29
    $region28: #{tpu_custom_call.1} parent=1 // pred_region
      %81 = dma.done [#allocation11], 256
    $region29: #{tpu_custom_call.1} parent=1 // pred_fallthru
      _
    // Predicated region
    $region30: #{tpu_custom_call.1} parent=1 // pred_check
      _
    $region31: #{tpu_custom_call.1} parent=1 // pred_check_branch
      %83 = sbr.rel (0) target = $region33
    $region32: #{tpu_custom_call.1} parent=1 // pred_region
      %84 = dma.done [#allocation11], 512
    $region33: #{tpu_custom_call.1} parent=1 // pred_fallthru
      _
    %s85 = smul.u32 0, 2
    %s86 = sld [smem:[#allocation6 + %s85]]
    %s87 = ssub.s32 %s86, 1
    %p88 = scmp.gt.s32.totalorder %s87, 0
    %s89 = scalar_select %p88, %s87, 0
    %p90 = scmp.lt.s32.totalorder %s89, 0
    %s91 = ssub.s32 0, %s89
    %s92 = scalar_select %p90, %s91, %s89
    %s93 = sshrl.u32 %s92, 3
    %s94 = ssub.s32 0, %s93
    %s95 = scalar_select %p90, %s94, %s93
    %p96 = scmp.lt.s32.totalorder 0, %s95
    %s97 = scalar_select %p96, 0, %s95
    %s98 = smul.u32 8, %s97
    %p99 = scmp.eq.s32.totalorder 0, 0
    // Predicated region
    $region34: #{tpu_custom_call.1} parent=1 // pred_check
      %p100 = pneg %p99
    $region35: #{tpu_custom_call.1} parent=1 // pred_check_branch
      %102 = sbr.rel (%p100) target = $region37
    $region36: #{tpu_custom_call.1} parent=1 // pred_region
      %vm103 = vcmask 254976
      %104 = vst.msk [vmem:[#allocation3] sm:$0x3] %vm103, 0.0
      %105 = vst.msk [vmem:[#allocation4] sm:$0x3] %vm103, 0.0
    $region37: #{tpu_custom_call.1} parent=1 // pred_fallthru
      _
    %s106 = smul.u32 0, 2
    %s107 = sld [smem:[#allocation6 + %s106]]
    %s108 = sadd.s32 %s106, 1
    %s109 = sld [smem:[#allocation6 + %s108]]
    %s110 = smul.u32 0, 8
    %p111 = scmp.lt.s32.totalorder %s110, %s107
    // Predicated region
    $region38: #{tpu_custom_call.1} parent=1 // pred_check
      %p112 = pneg %p111
    $region39: #{tpu_custom_call.1} parent=1 // pred_check_branch
      %114 = sbr.rel (%p112) target = $region41
    $region40: #{tpu_custom_call.1} parent=1 // pred_region
      %v115 = vld [vmem:[#allocation10] sm:$0xff]
      %v116 = vld [vmem:[#allocation10 + $0x8] sm:$0xff]
      %v117 = vld [vmem:[%s5] sm:$0x1]
      loop: start=0, step=1, limit=8
      $region42: #{tpu_custom_call.1} parent=40 // loop_pre_header
        _
      $region43: #{tpu_custom_call.1} parent=40 // loop_header
        %s119 = sphi 0, %s123
        %p120 = scmp.ge.s32.totalorder %s119, 8
      $region44: #{tpu_custom_call.1} parent=40 // loop_header_branch
        %122 = sbr.rel (%p120) target = $region48
      $region45: #{tpu_custom_call.1} parent=40 // loop_body
        %s124 = smul.u32 %s119, 2
        %s125 = scalar_lea.vmem [#allocation7], %s124
        %v126 = vld [vmem:[%s125] sm:$0x3]
        %v128 = vlaneseq
        %v129 = vshrl.u32 %v128, 7
        %v130 = vsub.s32 0, %v129
        %v131 = vrot.slane %v117, %v130
        %vm133 = vcmask 130048
        %v135 = vsel %vm133, %v126, 0
        %137 = vmatprep.subr.mxu0 0.0
        %138 = vmatpush1.msra.mxu0 %v115
        %139 = vmatprep.subr.mxu0 0.0
        %140 = vmatpush1.msra.mxu0 %v116
        %141 = vmatprep.subr.mxu0 0.0
        %142 = vmatpush1.msra.mxu0 0.0
        %143 = vmatprep.subr.mxu0 0.0
        %144 = vmatpush1.msra.mxu0 0.0
        %145 = vmatprep.subr.mxu0 0.0
        %146 = vmatpush1.msra.mxu0 0.0
        %147 = vmatprep.subr.mxu0 0.0
        %148 = vmatpush1.msra.mxu0 0.0
        %149 = vmatprep.subr.mxu0 0.0
        %150 = vmatpush1.msra.mxu0 0.0
        %151 = vmatprep.subr.mxu0 0.0
        %152 = vmatpush1.msra.mxu0 0.0
        %153 = vmatprep.subr.mxu0 0.0
        %154 = vmatpush1.msra.mxu0 0.0
        %155 = vmatprep.subr.mxu0 0.0
        %156 = vmatpush1.msra.mxu0 0.0
        %157 = vmatprep.subr.mxu0 0.0
        %158 = vmatpush1.msra.mxu0 0.0
        %159 = vmatprep.subr.mxu0 0.0
        %160 = vmatpush1.msra.mxu0 0.0
        %161 = vmatprep.subr.mxu0 0.0
        %162 = vmatpush1.msra.mxu0 0.0
        %163 = vmatprep.subr.mxu0 0.0
        %164 = vmatpush1.msra.mxu0 0.0
        %165 = vmatprep.subr.mxu0 0.0
        %166 = vmatpush1.msra.mxu0 0.0
        %167 = vmatprep.subr.mxu0 0.0
        %168 = vmatpush1.msra.mxu0 0.0
        %169 = vmatprep.subr.mxu0 0.0
        %170 = vmatpush1.msra.mxu0 0.0
        %171 = vmatprep.subr.mxu0 0.0
        %172 = vmatpush1.msra.mxu0 0.0
        %173 = vmatprep.subr.mxu0 0.0
        %174 = vmatpush1.msra.mxu0 0.0
        %175 = vmatprep.subr.mxu0 0.0
        %176 = vmatpush1.msra.mxu0 0.0
        %177 = vmatprep.subr.mxu0 0.0
        %178 = vmatpush1.msra.mxu0 0.0
        %179 = vmatprep.subr.mxu0 0.0
        %180 = vmatpush1.msra.mxu0 0.0
        %181 = vmatprep.subr.mxu0 0.0
        %182 = vmatpush1.msra.mxu0 0.0
        %183 = vmatprep.subr.mxu0 0.0
        %184 = vmatpush1.msra.mxu0 0.0
        %185 = vmatprep.subr.mxu0 0.0
        %186 = vmatpush1.msra.mxu0 0.0
        %187 = vmatprep.subr.mxu0 0.0
        %188 = vmatpush1.msra.mxu0 0.0
        %189 = vmatprep.subr.mxu0 0.0
        %190 = vmatpush1.msra.mxu0 0.0
        %191 = vmatprep.subr.mxu0 0.0
        %192 = vmatpush1.msra.mxu0 0.0
        %193 = vmatprep.subr.mxu0 0.0
        %194 = vmatpush1.msra.mxu0 0.0
        %195 = vmatprep.subr.mxu0 0.0
        %196 = vmatpush1.msra.mxu0 0.0
        %197 = vmatprep.subr.mxu0 0.0
        %198 = vmatpush1.msra.mxu0 0.0
        %199 = vmatprep.subr.mxu0 0.0
        %200 = vmatpush1.msra.mxu0 0.0
        %201 = vmatprep.mubr.f32.mxu0 0.0
        %202 = vmatmul.mubr.f32.gmra.mrb[0].mxu0 %v135
        %v203 = vpop.f32.mrb[0].mxu0
        %v204 = vadd.f32 %v131, %v203
        %v205 = vpop.f32.mrb[0].mxu0
        %206 = vdwg.mxu0
        %s207 = scalar_lea.vmem [#allocation2], %s124
        %208 = vst [vmem:[%s207] sm:$0x3] %v204
      $region46: #{tpu_custom_call.1} parent=40 // loop_footer
        %s123 = sadd.s32 1, %s119
      $region47: #{tpu_custom_call.1} parent=40 // loop_footer_branch
        %118 = sbr.rel target = $region43
      $region48: #{tpu_custom_call.1} parent=40 // loop_exit
        _
      %v209 = vld [vmem:[#allocation12] sm:$0xff]
      %v210 = vld [vmem:[#allocation12 + $0x8] sm:$0xff]
      %v211 = vld [vmem:[#allocation12 + $0x10] sm:$0xff]
      %v212 = vld [vmem:[#allocation12 + $0x18] sm:$0xff]
      %v213 = vld [vmem:[%s2] sm:$0x3]
      %s214 = sadd.s32 %s110, 8
      %p215 = scmp.le.s32.totalorder %s214, %s109
      // Predicated region
      $region49: #{tpu_custom_call.1} parent=40 // pred_check
        %p216 = pneg %p215
      $region50: #{tpu_custom_call.1} parent=40 // pred_check_branch
        %218 = sbr.rel (%p216) target = $region52
      $region51: #{tpu_custom_call.1} parent=40 // pred_region
        %v219 = vld [vmem:[#allocation3] sm:$0x3]
        %v220 = vld [vmem:[#allocation4] sm:$0x3]
        %v221 = vld [vmem:[#allocation2] sm:$0x3]
        %vm222 = vcmask 261120
        %v224 = vsel %vm222, %v219, 0
        %226 = vmatprep.subr.mxu0 0.0
        %227 = vmatpush1.msra.mxu0 %v209
        %228 = vmatprep.subr.mxu0 0.0
        %229 = vmatpush1.msra.mxu0 %v210
        %230 = vmatprep.subr.mxu0 0.0
        %231 = vmatpush1.msra.mxu0 %v211
        %232 = vmatprep.subr.mxu0 0.0
        %233 = vmatpush1.msra.mxu0 %v212
        %234 = vmatprep.subr.mxu0 0.0
        %235 = vmatpush1.msra.mxu0 0.0
        %236 = vmatprep.subr.mxu0 0.0
        %237 = vmatpush1.msra.mxu0 0.0
        %238 = vmatprep.subr.mxu0 0.0
        %239 = vmatpush1.msra.mxu0 0.0
        %240 = vmatprep.subr.mxu0 0.0
        %241 = vmatpush1.msra.mxu0 0.0
        %242 = vmatprep.subr.mxu0 0.0
        %243 = vmatpush1.msra.mxu0 0.0
        %244 = vmatprep.subr.mxu0 0.0
        %245 = vmatpush1.msra.mxu0 0.0
        %246 = vmatprep.subr.mxu0 0.0
        %247 = vmatpush1.msra.mxu0 0.0
        %248 = vmatprep.subr.mxu0 0.0
        %249 = vmatpush1.msra.mxu0 0.0
        %250 = vmatprep.subr.mxu0 0.0
        %251 = vmatpush1.msra.mxu0 0.0
        %252 = vmatprep.subr.mxu0 0.0
        %253 = vmatpush1.msra.mxu0 0.0
        %254 = vmatprep.subr.mxu0 0.0
        %255 = vmatpush1.msra.mxu0 0.0
        %256 = vmatprep.subr.mxu0 0.0
        %257 = vmatpush1.msra.mxu0 0.0
        %258 = vmatprep.subr.mxu0 0.0
        %259 = vmatpush1.msra.mxu0 0.0
        %260 = vmatprep.subr.mxu0 0.0
        %261 = vmatpush1.msra.mxu0 0.0
        %262 = vmatprep.subr.mxu0 0.0
        %263 = vmatpush1.msra.mxu0 0.0
        %264 = vmatprep.subr.mxu0 0.0
        %265 = vmatpush1.msra.mxu0 0.0
        %266 = vmatprep.subr.mxu0 0.0
        %267 = vmatpush1.msra.mxu0 0.0
        %268 = vmatprep.subr.mxu0 0.0
        %269 = vmatpush1.msra.mxu0 0.0
        %270 = vmatprep.subr.mxu0 0.0
        %271 = vmatpush1.msra.mxu0 0.0
        %272 = vmatprep.subr.mxu0 0.0
        %273 = vmatpush1.msra.mxu0 0.0
        %274 = vmatprep.subr.mxu0 0.0
        %275 = vmatpush1.msra.mxu0 0.0
        %276 = vmatprep.subr.mxu0 0.0
        %277 = vmatpush1.msra.mxu0 0.0
        %278 = vmatprep.subr.mxu0 0.0
        %279 = vmatpush1.msra.mxu0 0.0
        %280 = vmatprep.subr.mxu0 0.0
        %281 = vmatpush1.msra.mxu0 0.0
        %282 = vmatprep.subr.mxu0 0.0
        %283 = vmatpush1.msra.mxu0 0.0
        %284 = vmatprep.subr.mxu0 0.0
        %285 = vmatpush1.msra.mxu0 0.0
        %286 = vmatprep.subr.mxu0 0.0
        %287 = vmatpush1.msra.mxu0 0.0
        %288 = vmatprep.subr.mxu0 0.0
        %289 = vmatpush1.msra.mxu0 0.0
        %290 = vmatprep.mubr.f32.mxu0 0.0
        %291 = vmatmul.mubr.f32.gmra.mrb[0].mxu0 %v224
        %v292 = vpop.f32.mrb[0].mxu0
        %v293 = vadd.f32 0.0, %v292
        %v294 = vpop.f32.mrb[0].mxu0
        %295 = vdwg.mxu0
        %v296 = vadd.f32 %v221, %v293
        %v297 = vxor.u32 %v296, 2147483648
        %v298 = vmul.f32 %v297, 1.442695
        %v299 = vpow.pop %v298
        %v300 = vadd.f32 %v299, 1.0
        %v301 = vrcp.pop %v300
        %v302 = vmul.f32 1.0, %v301
        %v303 = vtanh.pop %v296
        %305 = vrot.lane.b32.xlu0 %v220, 32
        %v306 = vpop.permute.xlu0 %305
        %v308 = vmul.f32 %v302, %v306
        %310 = vrot.lane.b32.xlu0 %v303, 64
        %v311 = vpop.permute.xlu0 %310
        %v313 = vmul.f32 %v302, %v311
        %315 = vrot.lane.b32.xlu0 %v313, 32
        %v316 = vpop.permute.xlu0 %315
        %v318 = vadd.f32 %v308, %v316
        %v319 = vtanh.pop %v318
        %321 = vrot.lane.b32.xlu0 %v319, 64
        %v322 = vpop.permute.xlu0 %321
        %v324 = vmul.f32 %v302, %v322
        %s325 = scalar_lea.vmem [#allocation2], 2
        %v326 = vld [vmem:[%s325] sm:$0x3]
        %328 = vrot.lane.b32.xlu0 %v324, 32
        %v329 = vpop.permute.xlu0 %328
        %v330 = vsel %vm222, %v329, 0
        %332 = vmatprep.subr.mxu0 0.0
        %333 = vmatpush1.msra.mxu0 %v209
        %334 = vmatprep.subr.mxu0 0.0
        %335 = vmatpush1.msra.mxu0 %v210
        %336 = vmatprep.subr.mxu0 0.0
        %337 = vmatpush1.msra.mxu0 %v211
        %338 = vmatprep.subr.mxu0 0.0
        %339 = vmatpush1.msra.mxu0 %v212
        %340 = vmatprep.subr.mxu0 0.0
        %341 = vmatpush1.msra.mxu0 0.0
        %342 = vmatprep.subr.mxu0 0.0
        %343 = vmatpush1.msra.mxu0 0.0
        %344 = vmatprep.subr.mxu0 0.0
        %345 = vmatpush1.msra.mxu0 0.0
        %346 = vmatprep.subr.mxu0 0.0
        %347 = vmatpush1.msra.mxu0 0.0
        %348 = vmatprep.subr.mxu0 0.0
        %349 = vmatpush1.msra.mxu0 0.0
        %350 = vmatprep.subr.mxu0 0.0
        %351 = vmatpush1.msra.mxu0 0.0
        %352 = vmatprep.subr.mxu0 0.0
        %353 = vmatpush1.msra.mxu0 0.0
        %354 = vmatprep.subr.mxu0 0.0
        %355 = vmatpush1.msra.mxu0 0.0
        %356 = vmatprep.subr.mxu0 0.0
        %357 = vmatpush1.msra.mxu0 0.0
        %358 = vmatprep.subr.mxu0 0.0
        %359 = vmatpush1.msra.mxu0 0.0
        %360 = vmatprep.subr.mxu0 0.0
        %361 = vmatpush1.msra.mxu0 0.0
        %362 = vmatprep.subr.mxu0 0.0
        %363 = vmatpush1.msra.mxu0 0.0
        %364 = vmatprep.subr.mxu0 0.0
        %365 = vmatpush1.msra.mxu0 0.0
        %366 = vmatprep.subr.mxu0 0.0
        %367 = vmatpush1.msra.mxu0 0.0
        %368 = vmatprep.subr.mxu0 0.0
        %369 = vmatpush1.msra.mxu0 0.0
        %370 = vmatprep.subr.mxu0 0.0
        %371 = vmatpush1.msra.mxu0 0.0
        %372 = vmatprep.subr.mxu0 0.0
        %373 = vmatpush1.msra.mxu0 0.0
        %374 = vmatprep.subr.mxu0 0.0
        %375 = vmatpush1.msra.mxu0 0.0
        %376 = vmatprep.subr.mxu0 0.0
        %377 = vmatpush1.msra.mxu0 0.0
        %378 = vmatprep.subr.mxu0 0.0
        %379 = vmatpush1.msra.mxu0 0.0
        %380 = vmatprep.subr.mxu0 0.0
        %381 = vmatpush1.msra.mxu0 0.0
        %382 = vmatprep.subr.mxu0 0.0
        %383 = vmatpush1.msra.mxu0 0.0
        %384 = vmatprep.subr.mxu0 0.0
        %385 = vmatpush1.msra.mxu0 0.0
        %386 = vmatprep.subr.mxu0 0.0
        %387 = vmatpush1.msra.mxu0 0.0
        %388 = vmatprep.subr.mxu0 0.0
        %389 = vmatpush1.msra.mxu0 0.0
        %390 = vmatprep.subr.mxu0 0.0
        %391 = vmatpush1.msra.mxu0 0.0
        %392 = vmatprep.subr.mxu0 0.0
        %393 = vmatpush1.msra.mxu0 0.0
        %394 = vmatprep.subr.mxu0 0.0
        %395 = vmatpush1.msra.mxu0 0.0
        %396 = vmatprep.mubr.f32.mxu0 0.0
        %397 = vmatmul.mubr.f32.gmra.mrb[0].mxu0 %v330
        %v398 = vpop.f32.mrb[0].mxu0
        %v399 = vadd.f32 0.0, %v398
        %v400 = vpop.f32.mrb[0].mxu0
        %401 = vdwg.mxu0
        %v402 = vadd.f32 %v326, %v399
        %v403 = vxor.u32 %v402, 2147483648
        %v404 = vmul.f32 %v403, 1.442695
        %v405 = vpow.pop %v404
        %v406 = vadd.f32 %v405, 1.0
        %v407 = vrcp.pop %v406
        %v408 = vmul.f32 1.0, %v407
        %v409 = vtanh.pop %v402
        %v410 = vmul.f32 %v408, %v318
        %412 = vrot.lane.b32.xlu0 %v409, 64
        %v413 = vpop.permute.xlu0 %412
        %v415 = vmul.f32 %v408, %v413
        %417 = vrot.lane.b32.xlu0 %v415, 32
        %v418 = vpop.permute.xlu0 %417
        %v420 = vadd.f32 %v410, %v418
        %v421 = vtanh.pop %v420
        %423 = vrot.lane.b32.xlu0 %v421, 64
        %v424 = vpop.permute.xlu0 %423
        %v426 = vmul.f32 %v408, %v424
        %s427 = scalar_lea.vmem [#allocation2], 4
        %v428 = vld [vmem:[%s427] sm:$0x3]
        %430 = vrot.lane.b32.xlu0 %v426, 32
        %v431 = vpop.permute.xlu0 %430
        %v432 = vsel %vm222, %v431, 0
        %434 = vmatprep.subr.mxu0 0.0
        %435 = vmatpush1.msra.mxu0 %v209
        %436 = vmatprep.subr.mxu0 0.0
        %437 = vmatpush1.msra.mxu0 %v210
        %438 = vmatprep.subr.mxu0 0.0
        %439 = vmatpush1.msra.mxu0 %v211
        %440 = vmatprep.subr.mxu0 0.0
        %441 = vmatpush1.msra.mxu0 %v212
        %442 = vmatprep.subr.mxu0 0.0
        %443 = vmatpush1.msra.mxu0 0.0
        %444 = vmatprep.subr.mxu0 0.0
        %445 = vmatpush1.msra.mxu0 0.0
        %446 = vmatprep.subr.mxu0 0.0
        %447 = vmatpush1.msra.mxu0 0.0
        %448 = vmatprep.subr.mxu0 0.0
        %449 = vmatpush1.msra.mxu0 0.0
        %450 = vmatprep.subr.mxu0 0.0
        %451 = vmatpush1.msra.mxu0 0.0
        %452 = vmatprep.subr.mxu0 0.0
        %453 = vmatpush1.msra.mxu0 0.0
        %454 = vmatprep.subr.mxu0 0.0
        %455 = vmatpush1.msra.mxu0 0.0
        %456 = vmatprep.subr.mxu0 0.0
        %457 = vmatpush1.msra.mxu0 0.0
        %458 = vmatprep.subr.mxu0 0.0
        %459 = vmatpush1.msra.mxu0 0.0
        %460 = vmatprep.subr.mxu0 0.0
        %461 = vmatpush1.msra.mxu0 0.0
        %462 = vmatprep.subr.mxu0 0.0
        %463 = vmatpush1.msra.mxu0 0.0
        %464 = vmatprep.subr.mxu0 0.0
        %465 = vmatpush1.msra.mxu0 0.0
        %466 = vmatprep.subr.mxu0 0.0
        %467 = vmatpush1.msra.mxu0 0.0
        %468 = vmatprep.subr.mxu0 0.0
        %469 = vmatpush1.msra.mxu0 0.0
        %470 = vmatprep.subr.mxu0 0.0
        %471 = vmatpush1.msra.mxu0 0.0
        %472 = vmatprep.subr.mxu0 0.0
        %473 = vmatpush1.msra.mxu0 0.0
        %474 = vmatprep.subr.mxu0 0.0
        %475 = vmatpush1.msra.mxu0 0.0
        %476 = vmatprep.subr.mxu0 0.0
        %477 = vmatpush1.msra.mxu0 0.0
        %478 = vmatprep.subr.mxu0 0.0
        %479 = vmatpush1.msra.mxu0 0.0
        %480 = vmatprep.subr.mxu0 0.0
        %481 = vmatpush1.msra.mxu0 0.0
        %482 = vmatprep.subr.mxu0 0.0
        %483 = vmatpush1.msra.mxu0 0.0
        %484 = vmatprep.subr.mxu0 0.0
        %485 = vmatpush1.msra.mxu0 0.0
        %486 = vmatprep.subr.mxu0 0.0
        %487 = vmatpush1.msra.mxu0 0.0
        %488 = vmatprep.subr.mxu0 0.0
        %489 = vmatpush1.msra.mxu0 0.0
        %490 = vmatprep.subr.mxu0 0.0
        %491 = vmatpush1.msra.mxu0 0.0
        %492 = vmatprep.subr.mxu0 0.0
        %493 = vmatpush1.msra.mxu0 0.0
        %494 = vmatprep.subr.mxu0 0.0
        %495 = vmatpush1.msra.mxu0 0.0
        %496 = vmatprep.subr.mxu0 0.0
        %497 = vmatpush1.msra.mxu0 0.0
        %498 = vmatprep.mubr.f32.mxu0 0.0
        %499 = vmatmul.mubr.f32.gmra.mrb[0].mxu0 %v432
        %v500 = vpop.f32.mrb[0].mxu0
        %v501 = vadd.f32 0.0, %v500
        %v502 = vpop.f32.mrb[0].mxu0
        %503 = vdwg.mxu0
        %v504 = vadd.f32 %v428, %v501
        %v505 = vxor.u32 %v504, 2147483648
        %v506 = vmul.f32 %v505, 1.442695
        %v507 = vpow.pop %v506
        %v508 = vadd.f32 %v507, 1.0
        %v509 = vrcp.pop %v508
        %v510 = vmul.f32 1.0, %v509
        %v511 = vtanh.pop %v504
        %v512 = vmul.f32 %v510, %v420
        %514 = vrot.lane.b32.xlu0 %v511, 64
        %v515 = vpop.permute.xlu0 %514
        %v517 = vmul.f32 %v510, %v515
        %519 = vrot.lane.b32.xlu0 %v517, 32
        %v520 = vpop.permute.xlu0 %519
        %v522 = vadd.f32 %v512, %v520
        %v523 = vtanh.pop %v522
        %525 = vrot.lane.b32.xlu0 %v523, 64
        %v526 = vpop.permute.xlu0 %525
        %v528 = vmul.f32 %v510, %v526
        %s529 = scalar_lea.vmem [#allocation2], 6
        %v530 = vld [vmem:[%s529] sm:$0x3]
        %532 = vrot.lane.b32.xlu0 %v528, 32
        %v533 = vpop.permute.xlu0 %532
        %v534 = vsel %vm222, %v533, 0
        %536 = vmatprep.subr.mxu0 0.0
        %537 = vmatpush1.msra.mxu0 %v209
        %538 = vmatprep.subr.mxu0 0.0
        %539 = vmatpush1.msra.mxu0 %v210
        %540 = vmatprep.subr.mxu0 0.0
        %541 = vmatpush1.msra.mxu0 %v211
        %542 = vmatprep.subr.mxu0 0.0
        %543 = vmatpush1.msra.mxu0 %v212
        %544 = vmatprep.subr.mxu0 0.0
        %545 = vmatpush1.msra.mxu0 0.0
        %546 = vmatprep.subr.mxu0 0.0
        %547 = vmatpush1.msra.mxu0 0.0
        %548 = vmatprep.subr.mxu0 0.0
        %549 = vmatpush1.msra.mxu0 0.0
        %550 = vmatprep.subr.mxu0 0.0
        %551 = vmatpush1.msra.mxu0 0.0
        %552 = vmatprep.subr.mxu0 0.0
        %553 = vmatpush1.msra.mxu0 0.0
        %554 = vmatprep.subr.mxu0 0.0
        %555 = vmatpush1.msra.mxu0 0.0
        %556 = vmatprep.subr.mxu0 0.0
        %557 = vmatpush1.msra.mxu0 0.0
        %558 = vmatprep.subr.mxu0 0.0
        %559 = vmatpush1.msra.mxu0 0.0
        %560 = vmatprep.subr.mxu0 0.0
        %561 = vmatpush1.msra.mxu0 0.0
        %562 = vmatprep.subr.mxu0 0.0
        %563 = vmatpush1.msra.mxu0 0.0
        %564 = vmatprep.subr.mxu0 0.0
        %565 = vmatpush1.msra.mxu0 0.0
        %566 = vmatprep.subr.mxu0 0.0
        %567 = vmatpush1.msra.mxu0 0.0
        %568 = vmatprep.subr.mxu0 0.0
        %569 = vmatpush1.msra.mxu0 0.0
        %570 = vmatprep.subr.mxu0 0.0
        %571 = vmatpush1.msra.mxu0 0.0
        %572 = vmatprep.subr.mxu0 0.0
        %573 = vmatpush1.msra.mxu0 0.0
        %574 = vmatprep.subr.mxu0 0.0
        %575 = vmatpush1.msra.mxu0 0.0
        %576 = vmatprep.subr.mxu0 0.0
        %577 = vmatpush1.msra.mxu0 0.0
        %578 = vmatprep.subr.mxu0 0.0
        %579 = vmatpush1.msra.mxu0 0.0
        %580 = vmatprep.subr.mxu0 0.0
        %581 = vmatpush1.msra.mxu0 0.0
        %582 = vmatprep.subr.mxu0 0.0
        %583 = vmatpush1.msra.mxu0 0.0
        %584 = vmatprep.subr.mxu0 0.0
        %585 = vmatpush1.msra.mxu0 0.0
        %586 = vmatprep.subr.mxu0 0.0
        %587 = vmatpush1.msra.mxu0 0.0
        %588 = vmatprep.subr.mxu0 0.0
        %589 = vmatpush1.msra.mxu0 0.0
        %590 = vmatprep.subr.mxu0 0.0
        %591 = vmatpush1.msra.mxu0 0.0
        %592 = vmatprep.subr.mxu0 0.0
        %593 = vmatpush1.msra.mxu0 0.0
        %594 = vmatprep.subr.mxu0 0.0
        %595 = vmatpush1.msra.mxu0 0.0
        %596 = vmatprep.subr.mxu0 0.0
        %597 = vmatpush1.msra.mxu0 0.0
        %598 = vmatprep.subr.mxu0 0.0
        %599 = vmatpush1.msra.mxu0 0.0
        %600 = vmatprep.mubr.f32.mxu0 0.0
        %601 = vmatmul.mubr.f32.gmra.mrb[0].mxu0 %v534
        %v602 = vpop.f32.mrb[0].mxu0
        %v603 = vadd.f32 0.0, %v602
        %v604 = vpop.f32.mrb[0].mxu0
        %605 = vdwg.mxu0
        %v606 = vadd.f32 %v530, %v603
        %v607 = vxor.u32 %v606, 2147483648
        %v608 = vmul.f32 %v607, 1.442695
        %v609 = vpow.pop %v608
        %v610 = vadd.f32 %v609, 1.0
        %v611 = vrcp.pop %v610
        %v612 = vmul.f32 1.0, %v611
        %v613 = vtanh.pop %v606
        %v614 = vmul.f32 %v612, %v522
        %616 = vrot.lane.b32.xlu0 %v613, 64
        %v617 = vpop.permute.xlu0 %616
        %v619 = vmul.f32 %v612, %v617
        %621 = vrot.lane.b32.xlu0 %v619, 32
        %v622 = vpop.permute.xlu0 %621
        %v624 = vadd.f32 %v614, %v622
        %v625 = vtanh.pop %v624
        %627 = vrot.lane.b32.xlu0 %v625, 64
        %v628 = vpop.permute.xlu0 %627
        %v630 = vmul.f32 %v612, %v628
        %s631 = scalar_lea.vmem [#allocation2], 8
        %v632 = vld [vmem:[%s631] sm:$0x3]
        %634 = vrot.lane.b32.xlu0 %v630, 32
        %v635 = vpop.permute.xlu0 %634
        %v636 = vsel %vm222, %v635, 0
        %638 = vmatprep.subr.mxu0 0.0
        %639 = vmatpush1.msra.mxu0 %v209
        %640 = vmatprep.subr.mxu0 0.0
        %641 = vmatpush1.msra.mxu0 %v210
        %642 = vmatprep.subr.mxu0 0.0
        %643 = vmatpush1.msra.mxu0 %v211
        %644 = vmatprep.subr.mxu0 0.0
        %645 = vmatpush1.msra.mxu0 %v212
        %646 = vmatprep.subr.mxu0 0.0
        %647 = vmatpush1.msra.mxu0 0.0
        %648 = vmatprep.subr.mxu0 0.0
        %649 = vmatpush1.msra.mxu0 0.0
        %650 = vmatprep.subr.mxu0 0.0
        %651 = vmatpush1.msra.mxu0 0.0
        %652 = vmatprep.subr.mxu0 0.0
        %653 = vmatpush1.msra.mxu0 0.0
        %654 = vmatprep.subr.mxu0 0.0
        %655 = vmatpush1.msra.mxu0 0.0
        %656 = vmatprep.subr.mxu0 0.0
        %657 = vmatpush1.msra.mxu0 0.0
        %658 = vmatprep.subr.mxu0 0.0
        %659 = vmatpush1.msra.mxu0 0.0
        %660 = vmatprep.subr.mxu0 0.0
        %661 = vmatpush1.msra.mxu0 0.0
        %662 = vmatprep.subr.mxu0 0.0
        %663 = vmatpush1.msra.mxu0 0.0
        %664 = vmatprep.subr.mxu0 0.0
        %665 = vmatpush1.msra.mxu0 0.0
        %666 = vmatprep.subr.mxu0 0.0
        %667 = vmatpush1.msra.mxu0 0.0
        %668 = vmatprep.subr.mxu0 0.0
        %669 = vmatpush1.msra.mxu0 0.0
        %670 = vmatprep.subr.mxu0 0.0
        %671 = vmatpush1.msra.mxu0 0.0
        %672 = vmatprep.subr.mxu0 0.0
        %673 = vmatpush1.msra.mxu0 0.0
        %674 = vmatprep.subr.mxu0 0.0
        %675 = vmatpush1.msra.mxu0 0.0
        %676 = vmatprep.subr.mxu0 0.0
        %677 = vmatpush1.msra.mxu0 0.0
        %678 = vmatprep.subr.mxu0 0.0
        %679 = vmatpush1.msra.mxu0 0.0
        %680 = vmatprep.subr.mxu0 0.0
        %681 = vmatpush1.msra.mxu0 0.0
        %682 = vmatprep.subr.mxu0 0.0
        %683 = vmatpush1.msra.mxu0 0.0
        %684 = vmatprep.subr.mxu0 0.0
        %685 = vmatpush1.msra.mxu0 0.0
        %686 = vmatprep.subr.mxu0 0.0
        %687 = vmatpush1.msra.mxu0 0.0
        %688 = vmatprep.subr.mxu0 0.0
        %689 = vmatpush1.msra.mxu0 0.0
        %690 = vmatprep.subr.mxu0 0.0
        %691 = vmatpush1.msra.mxu0 0.0
        %692 = vmatprep.subr.mxu0 0.0
        %693 = vmatpush1.msra.mxu0 0.0
        %694 = vmatprep.subr.mxu0 0.0
        %695 = vmatpush1.msra.mxu0 0.0
        %696 = vmatprep.subr.mxu0 0.0
        %697 = vmatpush1.msra.mxu0 0.0
        %698 = vmatprep.subr.mxu0 0.0
        %699 = vmatpush1.msra.mxu0 0.0
        %700 = vmatprep.subr.mxu0 0.0
        %701 = vmatpush1.msra.mxu0 0.0
        %702 = vmatprep.mubr.f32.mxu0 0.0
        %703 = vmatmul.mubr.f32.gmra.mrb[0].mxu0 %v636
        %v704 = vpop.f32.mrb[0].mxu0
        %v705 = vadd.f32 0.0, %v704
        %v706 = vpop.f32.mrb[0].mxu0
        %707 = vdwg.mxu0
        %v708 = vadd.f32 %v632, %v705
        %v709 = vxor.u32 %v708, 2147483648
        %v710 = vmul.f32 %v709, 1.442695
        %v711 = vpow.pop %v710
        %v712 = vadd.f32 %v711, 1.0
        %v713 = vrcp.pop %v712
        %v714 = vmul.f32 1.0, %v713
        %v715 = vtanh.pop %v708
        %v716 = vmul.f32 %v714, %v624
        %718 = vrot.lane.b32.xlu0 %v715, 64
        %v719 = vpop.permute.xlu0 %718
        %v721 = vmul.f32 %v714, %v719
        %723 = vrot.lane.b32.xlu0 %v721, 32
        %v724 = vpop.permute.xlu0 %723
        %v726 = vadd.f32 %v716, %v724
        %v727 = vtanh.pop %v726
        %729 = vrot.lane.b32.xlu0 %v727, 64
        %v730 = vpop.permute.xlu0 %729
        %v732 = vmul.f32 %v714, %v730
        %s733 = scalar_lea.vmem [#allocation2], 10
        %v734 = vld [vmem:[%s733] sm:$0x3]
        %736 = vrot.lane.b32.xlu0 %v732, 32
        %v737 = vpop.permute.xlu0 %736
        %v738 = vsel %vm222, %v737, 0
        %740 = vmatprep.subr.mxu0 0.0
        %741 = vmatpush1.msra.mxu0 %v209
        %742 = vmatprep.subr.mxu0 0.0
        %743 = vmatpush1.msra.mxu0 %v210
        %744 = vmatprep.subr.mxu0 0.0
        %745 = vmatpush1.msra.mxu0 %v211
        %746 = vmatprep.subr.mxu0 0.0
        %747 = vmatpush1.msra.mxu0 %v212
        %748 = vmatprep.subr.mxu0 0.0
        %749 = vmatpush1.msra.mxu0 0.0
        %750 = vmatprep.subr.mxu0 0.0
        %751 = vmatpush1.msra.mxu0 0.0
        %752 = vmatprep.subr.mxu0 0.0
        %753 = vmatpush1.msra.mxu0 0.0
        %754 = vmatprep.subr.mxu0 0.0
        %755 = vmatpush1.msra.mxu0 0.0
        %756 = vmatprep.subr.mxu0 0.0
        %757 = vmatpush1.msra.mxu0 0.0
        %758 = vmatprep.subr.mxu0 0.0
        %759 = vmatpush1.msra.mxu0 0.0
        %760 = vmatprep.subr.mxu0 0.0
        %761 = vmatpush1.msra.mxu0 0.0
        %762 = vmatprep.subr.mxu0 0.0
        %763 = vmatpush1.msra.mxu0 0.0
        %764 = vmatprep.subr.mxu0 0.0
        %765 = vmatpush1.msra.mxu0 0.0
        %766 = vmatprep.subr.mxu0 0.0
        %767 = vmatpush1.msra.mxu0 0.0
        %768 = vmatprep.subr.mxu0 0.0
        %769 = vmatpush1.msra.mxu0 0.0
        %770 = vmatprep.subr.mxu0 0.0
        %771 = vmatpush1.msra.mxu0 0.0
        %772 = vmatprep.subr.mxu0 0.0
        %773 = vmatpush1.msra.mxu0 0.0
        %774 = vmatprep.subr.mxu0 0.0
        %775 = vmatpush1.msra.mxu0 0.0
        %776 = vmatprep.subr.mxu0 0.0
        %777 = vmatpush1.msra.mxu0 0.0
        %778 = vmatprep.subr.mxu0 0.0
        %779 = vmatpush1.msra.mxu0 0.0
        %780 = vmatprep.subr.mxu0 0.0
        %781 = vmatpush1.msra.mxu0 0.0
        %782 = vmatprep.subr.mxu0 0.0
        %783 = vmatpush1.msra.mxu0 0.0
        %784 = vmatprep.subr.mxu0 0.0
        %785 = vmatpush1.msra.mxu0 0.0
        %786 = vmatprep.subr.mxu0 0.0
        %787 = vmatpush1.msra.mxu0 0.0
        %788 = vmatprep.subr.mxu0 0.0
        %789 = vmatpush1.msra.mxu0 0.0
        %790 = vmatprep.subr.mxu0 0.0
        %791 = vmatpush1.msra.mxu0 0.0
        %792 = vmatprep.subr.mxu0 0.0
        %793 = vmatpush1.msra.mxu0 0.0
        %794 = vmatprep.subr.mxu0 0.0
        %795 = vmatpush1.msra.mxu0 0.0
        %796 = vmatprep.subr.mxu0 0.0
        %797 = vmatpush1.msra.mxu0 0.0
        %798 = vmatprep.subr.mxu0 0.0
        %799 = vmatpush1.msra.mxu0 0.0
        %800 = vmatprep.subr.mxu0 0.0
        %801 = vmatpush1.msra.mxu0 0.0
        %802 = vmatprep.subr.mxu0 0.0
        %803 = vmatpush1.msra.mxu0 0.0
        %804 = vmatprep.mubr.f32.mxu0 0.0
        %805 = vmatmul.mubr.f32.gmra.mrb[0].mxu0 %v738
        %v806 = vpop.f32.mrb[0].mxu0
        %v807 = vadd.f32 0.0, %v806
        %v808 = vpop.f32.mrb[0].mxu0
        %809 = vdwg.mxu0
        %v810 = vadd.f32 %v734, %v807
        %v811 = vxor.u32 %v810, 2147483648
        %v812 = vmul.f32 %v811, 1.442695
        %v813 = vpow.pop %v812
        %v814 = vadd.f32 %v813, 1.0
        %v815 = vrcp.pop %v814
        %v816 = vmul.f32 1.0, %v815
        %v817 = vtanh.pop %v810
        %v818 = vmul.f32 %v816, %v726
        %820 = vrot.lane.b32.xlu0 %v817, 64
        %v821 = vpop.permute.xlu0 %820
        %v823 = vmul.f32 %v816, %v821
        %825 = vrot.lane.b32.xlu0 %v823, 32
        %v826 = vpop.permute.xlu0 %825
        %v828 = vadd.f32 %v818, %v826
        %v829 = vtanh.pop %v828
        %831 = vrot.lane.b32.xlu0 %v829, 64
        %v832 = vpop.permute.xlu0 %831
        %v834 = vmul.f32 %v816, %v832
        %s835 = scalar_lea.vmem [#allocation2], 12
        %v836 = vld [vmem:[%s835] sm:$0x3]
        %838 = vrot.lane.b32.xlu0 %v834, 32
        %v839 = vpop.permute.xlu0 %838
        %v840 = vsel %vm222, %v839, 0
        %842 = vmatprep.subr.mxu0 0.0
        %843 = vmatpush1.msra.mxu0 %v209
        %844 = vmatprep.subr.mxu0 0.0
        %845 = vmatpush1.msra.mxu0 %v210
        %846 = vmatprep.subr.mxu0 0.0
        %847 = vmatpush1.msra.mxu0 %v211
        %848 = vmatprep.subr.mxu0 0.0
        %849 = vmatpush1.msra.mxu0 %v212
        %850 = vmatprep.subr.mxu0 0.0
        %851 = vmatpush1.msra.mxu0 0.0
        %852 = vmatprep.subr.mxu0 0.0
        %853 = vmatpush1.msra.mxu0 0.0
        %854 = vmatprep.subr.mxu0 0.0
        %855 = vmatpush1.msra.mxu0 0.0
        %856 = vmatprep.subr.mxu0 0.0
        %857 = vmatpush1.msra.mxu0 0.0
        %858 = vmatprep.subr.mxu0 0.0
        %859 = vmatpush1.msra.mxu0 0.0
        %860 = vmatprep.subr.mxu0 0.0
        %861 = vmatpush1.msra.mxu0 0.0
        %862 = vmatprep.subr.mxu0 0.0
        %863 = vmatpush1.msra.mxu0 0.0
        %864 = vmatprep.subr.mxu0 0.0
        %865 = vmatpush1.msra.mxu0 0.0
        %866 = vmatprep.subr.mxu0 0.0
        %867 = vmatpush1.msra.mxu0 0.0
        %868 = vmatprep.subr.mxu0 0.0
        %869 = vmatpush1.msra.mxu0 0.0
        %870 = vmatprep.subr.mxu0 0.0
        %871 = vmatpush1.msra.mxu0 0.0
        %872 = vmatprep.subr.mxu0 0.0
        %873 = vmatpush1.msra.mxu0 0.0
        %874 = vmatprep.subr.mxu0 0.0
        %875 = vmatpush1.msra.mxu0 0.0
        %876 = vmatprep.subr.mxu0 0.0
        %877 = vmatpush1.msra.mxu0 0.0
        %878 = vmatprep.subr.mxu0 0.0
        %879 = vmatpush1.msra.mxu0 0.0
        %880 = vmatprep.subr.mxu0 0.0
        %881 = vmatpush1.msra.mxu0 0.0
        %882 = vmatprep.subr.mxu0 0.0
        %883 = vmatpush1.msra.mxu0 0.0
        %884 = vmatprep.subr.mxu0 0.0
        %885 = vmatpush1.msra.mxu0 0.0
        %886 = vmatprep.subr.mxu0 0.0
        %887 = vmatpush1.msra.mxu0 0.0
        %888 = vmatprep.subr.mxu0 0.0
        %889 = vmatpush1.msra.mxu0 0.0
        %890 = vmatprep.subr.mxu0 0.0
        %891 = vmatpush1.msra.mxu0 0.0
        %892 = vmatprep.subr.mxu0 0.0
        %893 = vmatpush1.msra.mxu0 0.0
        %894 = vmatprep.subr.mxu0 0.0
        %895 = vmatpush1.msra.mxu0 0.0
        %896 = vmatprep.subr.mxu0 0.0
        %897 = vmatpush1.msra.mxu0 0.0
        %898 = vmatprep.subr.mxu0 0.0
        %899 = vmatpush1.msra.mxu0 0.0
        %900 = vmatprep.subr.mxu0 0.0
        %901 = vmatpush1.msra.mxu0 0.0
        %902 = vmatprep.subr.mxu0 0.0
        %903 = vmatpush1.msra.mxu0 0.0
        %904 = vmatprep.subr.mxu0 0.0
        %905 = vmatpush1.msra.mxu0 0.0
        %906 = vmatprep.mubr.f32.mxu0 0.0
        %907 = vmatmul.mubr.f32.gmra.mrb[0].mxu0 %v840
        %v908 = vpop.f32.mrb[0].mxu0
        %v909 = vadd.f32 0.0, %v908
        %v910 = vpop.f32.mrb[0].mxu0
        %911 = vdwg.mxu0
        %v912 = vadd.f32 %v836, %v909
        %v913 = vxor.u32 %v912, 2147483648
        %v914 = vmul.f32 %v913, 1.442695
        %v915 = vpow.pop %v914
        %v916 = vadd.f32 %v915, 1.0
        %v917 = vrcp.pop %v916
        %v918 = vmul.f32 1.0, %v917
        %v919 = vtanh.pop %v912
        %v920 = vmul.f32 %v918, %v828
        %922 = vrot.lane.b32.xlu0 %v919, 64
        %v923 = vpop.permute.xlu0 %922
        %v925 = vmul.f32 %v918, %v923
        %927 = vrot.lane.b32.xlu0 %v925, 32
        %v928 = vpop.permute.xlu0 %927
        %v930 = vadd.f32 %v920, %v928
        %v931 = vtanh.pop %v930
        %933 = vrot.lane.b32.xlu0 %v931, 64
        %v934 = vpop.permute.xlu0 %933
        %v936 = vmul.f32 %v918, %v934
        %s937 = scalar_lea.vmem [#allocation2], 14
        %v938 = vld [vmem:[%s937] sm:$0x3]
        %940 = vrot.lane.b32.xlu0 %v936, 32
        %v941 = vpop.permute.xlu0 %940
        %v942 = vsel %vm222, %v941, 0
        %944 = vmatprep.subr.mxu0 0.0
        %945 = vmatpush1.msra.mxu0 %v209
        %946 = vmatprep.subr.mxu0 0.0
        %947 = vmatpush1.msra.mxu0 %v210
        %948 = vmatprep.subr.mxu0 0.0
        %949 = vmatpush1.msra.mxu0 %v211
        %950 = vmatprep.subr.mxu0 0.0
        %951 = vmatpush1.msra.mxu0 %v212
        %952 = vmatprep.subr.mxu0 0.0
        %953 = vmatpush1.msra.mxu0 0.0
        %954 = vmatprep.subr.mxu0 0.0
        %955 = vmatpush1.msra.mxu0 0.0
        %956 = vmatprep.subr.mxu0 0.0
        %957 = vmatpush1.msra.mxu0 0.0
        %958 = vmatprep.subr.mxu0 0.0
        %959 = vmatpush1.msra.mxu0 0.0
        %960 = vmatprep.subr.mxu0 0.0
        %961 = vmatpush1.msra.mxu0 0.0
        %962 = vmatprep.subr.mxu0 0.0
        %963 = vmatpush1.msra.mxu0 0.0
        %964 = vmatprep.subr.mxu0 0.0
        %965 = vmatpush1.msra.mxu0 0.0
        %966 = vmatprep.subr.mxu0 0.0
        %967 = vmatpush1.msra.mxu0 0.0
        %968 = vmatprep.subr.mxu0 0.0
        %969 = vmatpush1.msra.mxu0 0.0
        %970 = vmatprep.subr.mxu0 0.0
        %971 = vmatpush1.msra.mxu0 0.0
        %972 = vmatprep.subr.mxu0 0.0
        %973 = vmatpush1.msra.mxu0 0.0
        %974 = vmatprep.subr.mxu0 0.0
        %975 = vmatpush1.msra.mxu0 0.0
        %976 = vmatprep.subr.mxu0 0.0
        %977 = vmatpush1.msra.mxu0 0.0
        %978 = vmatprep.subr.mxu0 0.0
        %979 = vmatpush1.msra.mxu0 0.0
        %980 = vmatprep.subr.mxu0 0.0
        %981 = vmatpush1.msra.mxu0 0.0
        %982 = vmatprep.subr.mxu0 0.0
        %983 = vmatpush1.msra.mxu0 0.0
        %984 = vmatprep.subr.mxu0 0.0
        %985 = vmatpush1.msra.mxu0 0.0
        %986 = vmatprep.subr.mxu0 0.0
        %987 = vmatpush1.msra.mxu0 0.0
        %988 = vmatprep.subr.mxu0 0.0
        %989 = vmatpush1.msra.mxu0 0.0
        %990 = vmatprep.subr.mxu0 0.0
        %991 = vmatpush1.msra.mxu0 0.0
        %992 = vmatprep.subr.mxu0 0.0
        %993 = vmatpush1.msra.mxu0 0.0
        %994 = vmatprep.subr.mxu0 0.0
        %995 = vmatpush1.msra.mxu0 0.0
        %996 = vmatprep.subr.mxu0 0.0
        %997 = vmatpush1.msra.mxu0 0.0
        %998 = vmatprep.subr.mxu0 0.0
        %999 = vmatpush1.msra.mxu0 0.0
        %1000 = vmatprep.subr.mxu0 0.0
        %1001 = vmatpush1.msra.mxu0 0.0
        %1002 = vmatprep.subr.mxu0 0.0
        %1003 = vmatpush1.msra.mxu0 0.0
        %1004 = vmatprep.subr.mxu0 0.0
        %1005 = vmatpush1.msra.mxu0 0.0
        %1006 = vmatprep.subr.mxu0 0.0
        %1007 = vmatpush1.msra.mxu0 0.0
        %1008 = vmatprep.mubr.f32.mxu0 0.0
        %1009 = vmatmul.mubr.f32.gmra.mrb[0].mxu0 %v942
        %v1010 = vpop.f32.mrb[0].mxu0
        %v1011 = vadd.f32 0.0, %v1010
        %v1012 = vpop.f32.mrb[0].mxu0
        %1013 = vdwg.mxu0
        %v1014 = vadd.f32 %v938, %v1011
        %v1015 = vxor.u32 %v1014, 2147483648
        %v1016 = vmul.f32 %v1015, 1.442695
        %v1017 = vpow.pop %v1016
        %v1018 = vadd.f32 %v1017, 1.0
        %v1019 = vrcp.pop %v1018
        %v1020 = vmul.f32 1.0, %v1019
        %v1021 = vtanh.pop %v1014
        %v1022 = vmul.f32 %v1020, %v930
        %1024 = vrot.lane.b32.xlu0 %v1021, 64
        %v1025 = vpop.permute.xlu0 %1024
        %v1027 = vmul.f32 %v1020, %v1025
        %1029 = vrot.lane.b32.xlu0 %v1027, 32
        %v1030 = vpop.permute.xlu0 %1029
        %v1032 = vadd.f32 %v1022, %v1030
        %v1033 = vtanh.pop %v1032
        %1035 = vrot.lane.b32.xlu0 %v1033, 64
        %v1036 = vpop.permute.xlu0 %1035
        %v1038 = vmul.f32 %v1020, %v1036
        %1040 = vrot.lane.b32.xlu0 %v1038, 32
        %v1041 = vpop.permute.xlu0 %1040
        %vm1043 = vcmask 254976
        %1044 = vst.msk [vmem:[#allocation3] sm:$0x3] %vm1043, %v1041
        %1046 = vrot.lane.b32.xlu0 %v1032, 96
        %v1047 = vpop.permute.xlu0 %1046
        %1049 = vst.msk [vmem:[#allocation4] sm:$0x3] %vm1043, %v1047
      $region52: #{tpu_custom_call.1} parent=40 // pred_fallthru
        _
      %p1050 = scmp.gt.s32.totalorder %s214, %s109
      // Predicated region
      $region53: #{tpu_custom_call.1} parent=40 // pred_check
        %p1051 = pneg %p1050
      $region54: #{tpu_custom_call.1} parent=40 // pred_check_branch
        %1053 = sbr.rel (%p1051) target = $region56
      $region55: #{tpu_custom_call.1} parent=40 // pred_region
        %v1054 = vld [vmem:[#allocation3] sm:$0x3]
        %v1055 = vld [vmem:[#allocation4] sm:$0x3]
        %v1056 = vld [vmem:[#allocation2] sm:$0x3]
        %vm1057 = vcmask 261120
        %v1059 = vsel %vm1057, %v1054, 0
        %1061 = vmatprep.subr.mxu0 0.0
        %1062 = vmatpush1.msra.mxu0 %v209
        %1063 = vmatprep.subr.mxu0 0.0
        %1064 = vmatpush1.msra.mxu0 %v210
        %1065 = vmatprep.subr.mxu0 0.0
        %1066 = vmatpush1.msra.mxu0 %v211
        %1067 = vmatprep.subr.mxu0 0.0
        %1068 = vmatpush1.msra.mxu0 %v212
        %1069 = vmatprep.subr.mxu0 0.0
        %1070 = vmatpush1.msra.mxu0 0.0
        %1071 = vmatprep.subr.mxu0 0.0
        %1072 = vmatpush1.msra.mxu0 0.0
        %1073 = vmatprep.subr.mxu0 0.0
        %1074 = vmatpush1.msra.mxu0 0.0
        %1075 = vmatprep.subr.mxu0 0.0
        %1076 = vmatpush1.msra.mxu0 0.0
        %1077 = vmatprep.subr.mxu0 0.0
        %1078 = vmatpush1.msra.mxu0 0.0
        %1079 = vmatprep.subr.mxu0 0.0
        %1080 = vmatpush1.msra.mxu0 0.0
        %1081 = vmatprep.subr.mxu0 0.0
        %1082 = vmatpush1.msra.mxu0 0.0
        %1083 = vmatprep.subr.mxu0 0.0
        %1084 = vmatpush1.msra.mxu0 0.0
        %1085 = vmatprep.subr.mxu0 0.0
        %1086 = vmatpush1.msra.mxu0 0.0
        %1087 = vmatprep.subr.mxu0 0.0
        %1088 = vmatpush1.msra.mxu0 0.0
        %1089 = vmatprep.subr.mxu0 0.0
        %1090 = vmatpush1.msra.mxu0 0.0
        %1091 = vmatprep.subr.mxu0 0.0
        %1092 = vmatpush1.msra.mxu0 0.0
        %1093 = vmatprep.subr.mxu0 0.0
        %1094 = vmatpush1.msra.mxu0 0.0
        %1095 = vmatprep.subr.mxu0 0.0
        %1096 = vmatpush1.msra.mxu0 0.0
        %1097 = vmatprep.subr.mxu0 0.0
        %1098 = vmatpush1.msra.mxu0 0.0
        %1099 = vmatprep.subr.mxu0 0.0
        %1100 = vmatpush1.msra.mxu0 0.0
        %1101 = vmatprep.subr.mxu0 0.0
        %1102 = vmatpush1.msra.mxu0 0.0
        %1103 = vmatprep.subr.mxu0 0.0
        %1104 = vmatpush1.msra.mxu0 0.0
        %1105 = vmatprep.subr.mxu0 0.0
        %1106 = vmatpush1.msra.mxu0 0.0
        %1107 = vmatprep.subr.mxu0 0.0
        %1108 = vmatpush1.msra.mxu0 0.0
        %1109 = vmatprep.subr.mxu0 0.0
        %1110 = vmatpush1.msra.mxu0 0.0
        %1111 = vmatprep.subr.mxu0 0.0
        %1112 = vmatpush1.msra.mxu0 0.0
        %1113 = vmatprep.subr.mxu0 0.0
        %1114 = vmatpush1.msra.mxu0 0.0
        %1115 = vmatprep.subr.mxu0 0.0
        %1116 = vmatpush1.msra.mxu0 0.0
        %1117 = vmatprep.subr.mxu0 0.0
        %1118 = vmatpush1.msra.mxu0 0.0
        %1119 = vmatprep.subr.mxu0 0.0
        %1120 = vmatpush1.msra.mxu0 0.0
        %1121 = vmatprep.subr.mxu0 0.0
        %1122 = vmatpush1.msra.mxu0 0.0
        %1123 = vmatprep.subr.mxu0 0.0
        %1124 = vmatpush1.msra.mxu0 0.0
        %1125 = vmatprep.mubr.f32.mxu0 0.0
        %1126 = vmatmul.mubr.f32.gmra.mrb[0].mxu0 %v1059
        %v1127 = vpop.f32.mrb[0].mxu0
        %v1128 = vadd.f32 0.0, %v1127
        %v1129 = vpop.f32.mrb[0].mxu0
        %1130 = vdwg.mxu0
        %v1131 = vadd.f32 %v1056, %v1128
        %v1132 = vxor.u32 %v1131, 2147483648
        %v1133 = vmul.f32 %v1132, 1.442695
        %v1134 = vpow.pop %v1133
        %v1135 = vadd.f32 %v1134, 1.0
        %v1136 = vrcp.pop %v1135
        %v1137 = vmul.f32 1.0, %v1136
        %v1138 = vtanh.pop %v1131
        %1140 = vrot.lane.b32.xlu0 %v1055, 32
        %v1141 = vpop.permute.xlu0 %1140
        %v1143 = vmul.f32 %v1137, %v1141
        %1145 = vrot.lane.b32.xlu0 %v1138, 64
        %v1146 = vpop.permute.xlu0 %1145
        %v1148 = vmul.f32 %v1137, %v1146
        %1150 = vrot.lane.b32.xlu0 %v1148, 32
        %v1151 = vpop.permute.xlu0 %1150
        %v1153 = vadd.f32 %v1143, %v1151
        %v1154 = vtanh.pop %v1153
        %1156 = vrot.lane.b32.xlu0 %v1154, 64
        %v1157 = vpop.permute.xlu0 %1156
        %v1159 = vmul.f32 %v1137, %v1157
        %v1160 = vstv %s110
        %vm1161 = vcmp.gt.s32.totalorder %v213, %v1160
        %v1162 = vsel %vm1161, 1, 0
        %1163 = vset.pattern.permute.xlu0 0
        %1164 = vperm.xlu0 %1163, %v1162
        %v1165 = vpop.permute.xlu0 %1164
        %vm1166 = vcmp.eq.s32.totalorder %v1165, 1
        %1167 = vrot.lane.b32.xlu0 %v1054, 96
        %v1168 = vpop.permute.xlu0 %1167
        %v1170 = vsel %vm1166, %v1159, %v1168
        %v1171 = vsel %vm1166, %v1153, %v1141
        %s1172 = scalar_lea.vmem [#allocation2], 2
        %v1173 = vld [vmem:[%s1172] sm:$0x3]
        %1175 = vrot.lane.b32.xlu0 %v1170, 32
        %v1176 = vpop.permute.xlu0 %1175
        %v1177 = vsel %vm1057, %v1176, 0
        %1179 = vmatprep.subr.mxu0 0.0
        %1180 = vmatpush1.msra.mxu0 %v209
        %1181 = vmatprep.subr.mxu0 0.0
        %1182 = vmatpush1.msra.mxu0 %v210
        %1183 = vmatprep.subr.mxu0 0.0
        %1184 = vmatpush1.msra.mxu0 %v211
        %1185 = vmatprep.subr.mxu0 0.0
        %1186 = vmatpush1.msra.mxu0 %v212
        %1187 = vmatprep.subr.mxu0 0.0
        %1188 = vmatpush1.msra.mxu0 0.0
        %1189 = vmatprep.subr.mxu0 0.0
        %1190 = vmatpush1.msra.mxu0 0.0
        %1191 = vmatprep.subr.mxu0 0.0
        %1192 = vmatpush1.msra.mxu0 0.0
        %1193 = vmatprep.subr.mxu0 0.0
        %1194 = vmatpush1.msra.mxu0 0.0
        %1195 = vmatprep.subr.mxu0 0.0
        %1196 = vmatpush1.msra.mxu0 0.0
        %1197 = vmatprep.subr.mxu0 0.0
        %1198 = vmatpush1.msra.mxu0 0.0
        %1199 = vmatprep.subr.mxu0 0.0
        %1200 = vmatpush1.msra.mxu0 0.0
        %1201 = vmatprep.subr.mxu0 0.0
        %1202 = vmatpush1.msra.mxu0 0.0
        %1203 = vmatprep.subr.mxu0 0.0
        %1204 = vmatpush1.msra.mxu0 0.0
        %1205 = vmatprep.subr.mxu0 0.0
        %1206 = vmatpush1.msra.mxu0 0.0
        %1207 = vmatprep.subr.mxu0 0.0
        %1208 = vmatpush1.msra.mxu0 0.0
        %1209 = vmatprep.subr.mxu0 0.0
        %1210 = vmatpush1.msra.mxu0 0.0
        %1211 = vmatprep.subr.mxu0 0.0
        %1212 = vmatpush1.msra.mxu0 0.0
        %1213 = vmatprep.subr.mxu0 0.0
        %1214 = vmatpush1.msra.mxu0 0.0
        %1215 = vmatprep.subr.mxu0 0.0
        %1216 = vmatpush1.msra.mxu0 0.0
        %1217 = vmatprep.subr.mxu0 0.0
        %1218 = vmatpush1.msra.mxu0 0.0
        %1219 = vmatprep.subr.mxu0 0.0
        %1220 = vmatpush1.msra.mxu0 0.0
        %1221 = vmatprep.subr.mxu0 0.0
        %1222 = vmatpush1.msra.mxu0 0.0
        %1223 = vmatprep.subr.mxu0 0.0
        %1224 = vmatpush1.msra.mxu0 0.0
        %1225 = vmatprep.subr.mxu0 0.0
        %1226 = vmatpush1.msra.mxu0 0.0
        %1227 = vmatprep.subr.mxu0 0.0
        %1228 = vmatpush1.msra.mxu0 0.0
        %1229 = vmatprep.subr.mxu0 0.0
        %1230 = vmatpush1.msra.mxu0 0.0
        %1231 = vmatprep.subr.mxu0 0.0
        %1232 = vmatpush1.msra.mxu0 0.0
        %1233 = vmatprep.subr.mxu0 0.0
        %1234 = vmatpush1.msra.mxu0 0.0
        %1235 = vmatprep.subr.mxu0 0.0
        %1236 = vmatpush1.msra.mxu0 0.0
        %1237 = vmatprep.subr.mxu0 0.0
        %1238 = vmatpush1.msra.mxu0 0.0
        %1239 = vmatprep.subr.mxu0 0.0
        %1240 = vmatpush1.msra.mxu0 0.0
        %1241 = vmatprep.subr.mxu0 0.0
        %1242 = vmatpush1.msra.mxu0 0.0
        %1243 = vmatprep.mubr.f32.mxu0 0.0
        %1244 = vmatmul.mubr.f32.gmra.mrb[0].mxu0 %v1177
        %v1245 = vpop.f32.mrb[0].mxu0
        %v1246 = vadd.f32 0.0, %v1245
        %v1247 = vpop.f32.mrb[0].mxu0
        %1248 = vdwg.mxu0
        %v1249 = vadd.f32 %v1173, %v1246
        %v1250 = vxor.u32 %v1249, 2147483648
        %v1251 = vmul.f32 %v1250, 1.442695
        %v1252 = vpow.pop %v1251
        %v1253 = vadd.f32 %v1252, 1.0
        %v1254 = vrcp.pop %v1253
        %v1255 = vmul.f32 1.0, %v1254
        %v1256 = vtanh.pop %v1249
        %v1257 = vmul.f32 %v1255, %v1171
        %1259 = vrot.lane.b32.xlu0 %v1256, 64
        %v1260 = vpop.permute.xlu0 %1259
        %v1262 = vmul.f32 %v1255, %v1260
        %1264 = vrot.lane.b32.xlu0 %v1262, 32
        %v1265 = vpop.permute.xlu0 %1264
        %v1267 = vadd.f32 %v1257, %v1265
        %v1268 = vtanh.pop %v1267
        %1270 = vrot.lane.b32.xlu0 %v1268, 64
        %v1271 = vpop.permute.xlu0 %1270
        %v1273 = vmul.f32 %v1255, %v1271
        %s1274 = sadd.s32 %s110, 1
        %v1275 = vstv %s1274
        %vm1276 = vcmp.gt.s32.totalorder %v213, %v1275
        %v1277 = vsel %vm1276, 1, 0
        %1278 = vset.pattern.permute.xlu0 0
        %1279 = vperm.xlu0 %1278, %v1277
        %v1280 = vpop.permute.xlu0 %1279
        %vm1281 = vcmp.eq.s32.totalorder %v1280, 1
        %v1282 = vsel %vm1281, %v1273, %v1170
        %v1283 = vsel %vm1281, %v1267, %v1171
        %s1284 = scalar_lea.vmem [#allocation2], 4
        %v1285 = vld [vmem:[%s1284] sm:$0x3]
        %1287 = vrot.lane.b32.xlu0 %v1282, 32
        %v1288 = vpop.permute.xlu0 %1287
        %v1289 = vsel %vm1057, %v1288, 0
        %1291 = vmatprep.subr.mxu0 0.0
        %1292 = vmatpush1.msra.mxu0 %v209
        %1293 = vmatprep.subr.mxu0 0.0
        %1294 = vmatpush1.msra.mxu0 %v210
        %1295 = vmatprep.subr.mxu0 0.0
        %1296 = vmatpush1.msra.mxu0 %v211
        %1297 = vmatprep.subr.mxu0 0.0
        %1298 = vmatpush1.msra.mxu0 %v212
        %1299 = vmatprep.subr.mxu0 0.0
        %1300 = vmatpush1.msra.mxu0 0.0
        %1301 = vmatprep.subr.mxu0 0.0
        %1302 = vmatpush1.msra.mxu0 0.0
        %1303 = vmatprep.subr.mxu0 0.0
        %1304 = vmatpush1.msra.mxu0 0.0
        %1305 = vmatprep.subr.mxu0 0.0
        %1306 = vmatpush1.msra.mxu0 0.0
        %1307 = vmatprep.subr.mxu0 0.0
        %1308 = vmatpush1.msra.mxu0 0.0
        %1309 = vmatprep.subr.mxu0 0.0
        %1310 = vmatpush1.msra.mxu0 0.0
        %1311 = vmatprep.subr.mxu0 0.0
        %1312 = vmatpush1.msra.mxu0 0.0
        %1313 = vmatprep.subr.mxu0 0.0
        %1314 = vmatpush1.msra.mxu0 0.0
        %1315 = vmatprep.subr.mxu0 0.0
        %1316 = vmatpush1.msra.mxu0 0.0
        %1317 = vmatprep.subr.mxu0 0.0
        %1318 = vmatpush1.msra.mxu0 0.0
        %1319 = vmatprep.subr.mxu0 0.0
        %1320 = vmatpush1.msra.mxu0 0.0
        %1321 = vmatprep.subr.mxu0 0.0
        %1322 = vmatpush1.msra.mxu0 0.0
        %1323 = vmatprep.subr.mxu0 0.0
        %1324 = vmatpush1.msra.mxu0 0.0
        %1325 = vmatprep.subr.mxu0 0.0
        %1326 = vmatpush1.msra.mxu0 0.0
        %1327 = vmatprep.subr.mxu0 0.0
        %1328 = vmatpush1.msra.mxu0 0.0
        %1329 = vmatprep.subr.mxu0 0.0
        %1330 = vmatpush1.msra.mxu0 0.0
        %1331 = vmatprep.subr.mxu0 0.0
        %1332 = vmatpush1.msra.mxu0 0.0
        %1333 = vmatprep.subr.mxu0 0.0
        %1334 = vmatpush1.msra.mxu0 0.0
        %1335 = vmatprep.subr.mxu0 0.0
        %1336 = vmatpush1.msra.mxu0 0.0
        %1337 = vmatprep.subr.mxu0 0.0
        %1338 = vmatpush1.msra.mxu0 0.0
        %1339 = vmatprep.subr.mxu0 0.0
        %1340 = vmatpush1.msra.mxu0 0.0
        %1341 = vmatprep.subr.mxu0 0.0
        %1342 = vmatpush1.msra.mxu0 0.0
        %1343 = vmatprep.subr.mxu0 0.0
        %1344 = vmatpush1.msra.mxu0 0.0
        %1345 = vmatprep.subr.mxu0 0.0
        %1346 = vmatpush1.msra.mxu0 0.0
        %1347 = vmatprep.subr.mxu0 0.0
        %1348 = vmatpush1.msra.mxu0 0.0
        %1349 = vmatprep.subr.mxu0 0.0
        %1350 = vmatpush1.msra.mxu0 0.0
        %1351 = vmatprep.subr.mxu0 0.0
        %1352 = vmatpush1.msra.mxu0 0.0
        %1353 = vmatprep.subr.mxu0 0.0
        %1354 = vmatpush1.msra.mxu0 0.0
        %1355 = vmatprep.mubr.f32.mxu0 0.0
        %1356 = vmatmul.mubr.f32.gmra.mrb[0].mxu0 %v1289
        %v1357 = vpop.f32.mrb[0].mxu0
        %v1358 = vadd.f32 0.0, %v1357
        %v1359 = vpop.f32.mrb[0].mxu0
        %1360 = vdwg.mxu0
        %v1361 = vadd.f32 %v1285, %v1358
        %v1362 = vxor.u32 %v1361, 2147483648
        %v1363 = vmul.f32 %v1362, 1.442695
        %v1364 = vpow.pop %v1363
        %v1365 = vadd.f32 %v1364, 1.0
        %v1366 = vrcp.pop %v1365
        %v1367 = vmul.f32 1.0, %v1366
        %v1368 = vtanh.pop %v1361
        %v1369 = vmul.f32 %v1367, %v1283
        %1371 = vrot.lane.b32.xlu0 %v1368, 64
        %v1372 = vpop.permute.xlu0 %1371
        %v1374 = vmul.f32 %v1367, %v1372
        %1376 = vrot.lane.b32.xlu0 %v1374, 32
        %v1377 = vpop.permute.xlu0 %1376
        %v1379 = vadd.f32 %v1369, %v1377
        %v1380 = vtanh.pop %v1379
        %1382 = vrot.lane.b32.xlu0 %v1380, 64
        %v1383 = vpop.permute.xlu0 %1382
        %v1385 = vmul.f32 %v1367, %v1383
        %s1386 = sadd.s32 %s110, 2
        %v1387 = vstv %s1386
        %vm1388 = vcmp.gt.s32.totalorder %v213, %v1387
        %v1389 = vsel %vm1388, 1, 0
        %1390 = vset.pattern.permute.xlu0 0
        %1391 = vperm.xlu0 %1390, %v1389
        %v1392 = vpop.permute.xlu0 %1391
        %vm1393 = vcmp.eq.s32.totalorder %v1392, 1
        %v1394 = vsel %vm1393, %v1385, %v1282
        %v1395 = vsel %vm1393, %v1379, %v1283
        %s1396 = scalar_lea.vmem [#allocation2], 6
        %v1397 = vld [vmem:[%s1396] sm:$0x3]
        %1399 = vrot.lane.b32.xlu0 %v1394, 32
        %v1400 = vpop.permute.xlu0 %1399
        %v1401 = vsel %vm1057, %v1400, 0
        %1403 = vmatprep.subr.mxu0 0.0
        %1404 = vmatpush1.msra.mxu0 %v209
        %1405 = vmatprep.subr.mxu0 0.0
        %1406 = vmatpush1.msra.mxu0 %v210
        %1407 = vmatprep.subr.mxu0 0.0
        %1408 = vmatpush1.msra.mxu0 %v211
        %1409 = vmatprep.subr.mxu0 0.0
        %1410 = vmatpush1.msra.mxu0 %v212
        %1411 = vmatprep.subr.mxu0 0.0
        %1412 = vmatpush1.msra.mxu0 0.0
        %1413 = vmatprep.subr.mxu0 0.0
        %1414 = vmatpush1.msra.mxu0 0.0
        %1415 = vmatprep.subr.mxu0 0.0
        %1416 = vmatpush1.msra.mxu0 0.0
        %1417 = vmatprep.subr.mxu0 0.0
        %1418 = vmatpush1.msra.mxu0 0.0
        %1419 = vmatprep.subr.mxu0 0.0
        %1420 = vmatpush1.msra.mxu0 0.0
        %1421 = vmatprep.subr.mxu0 0.0
        %1422 = vmatpush1.msra.mxu0 0.0
        %1423 = vmatprep.subr.mxu0 0.0
        %1424 = vmatpush1.msra.mxu0 0.0
        %1425 = vmatprep.subr.mxu0 0.0
        %1426 = vmatpush1.msra.mxu0 0.0
        %1427 = vmatprep.subr.mxu0 0.0
        %1428 = vmatpush1.msra.mxu0 0.0
        %1429 = vmatprep.subr.mxu0 0.0
        %1430 = vmatpush1.msra.mxu0 0.0
        %1431 = vmatprep.subr.mxu0 0.0
        %1432 = vmatpush1.msra.mxu0 0.0
        %1433 = vmatprep.subr.mxu0 0.0
        %1434 = vmatpush1.msra.mxu0 0.0
        %1435 = vmatprep.subr.mxu0 0.0
        %1436 = vmatpush1.msra.mxu0 0.0
        %1437 = vmatprep.subr.mxu0 0.0
        %1438 = vmatpush1.msra.mxu0 0.0
        %1439 = vmatprep.subr.mxu0 0.0
        %1440 = vmatpush1.msra.mxu0 0.0
        %1441 = vmatprep.subr.mxu0 0.0
        %1442 = vmatpush1.msra.mxu0 0.0
        %1443 = vmatprep.subr.mxu0 0.0
        %1444 = vmatpush1.msra.mxu0 0.0
        %1445 = vmatprep.subr.mxu0 0.0
        %1446 = vmatpush1.msra.mxu0 0.0
        %1447 = vmatprep.subr.mxu0 0.0
        %1448 = vmatpush1.msra.mxu0 0.0
        %1449 = vmatprep.subr.mxu0 0.0
        %1450 = vmatpush1.msra.mxu0 0.0
        %1451 = vmatprep.subr.mxu0 0.0
        %1452 = vmatpush1.msra.mxu0 0.0
        %1453 = vmatprep.subr.mxu0 0.0
        %1454 = vmatpush1.msra.mxu0 0.0
        %1455 = vmatprep.subr.mxu0 0.0
        %1456 = vmatpush1.msra.mxu0 0.0
        %1457 = vmatprep.subr.mxu0 0.0
        %1458 = vmatpush1.msra.mxu0 0.0
        %1459 = vmatprep.subr.mxu0 0.0
        %1460 = vmatpush1.msra.mxu0 0.0
        %1461 = vmatprep.subr.mxu0 0.0
        %1462 = vmatpush1.msra.mxu0 0.0
        %1463 = vmatprep.subr.mxu0 0.0
        %1464 = vmatpush1.msra.mxu0 0.0
        %1465 = vmatprep.subr.mxu0 0.0
        %1466 = vmatpush1.msra.mxu0 0.0
        %1467 = vmatprep.mubr.f32.mxu0 0.0
        %1468 = vmatmul.mubr.f32.gmra.mrb[0].mxu0 %v1401
        %v1469 = vpop.f32.mrb[0].mxu0
        %v1470 = vadd.f32 0.0, %v1469
        %v1471 = vpop.f32.mrb[0].mxu0
        %1472 = vdwg.mxu0
        %v1473 = vadd.f32 %v1397, %v1470
        %v1474 = vxor.u32 %v1473, 2147483648
        %v1475 = vmul.f32 %v1474, 1.442695
        %v1476 = vpow.pop %v1475
        %v1477 = vadd.f32 %v1476, 1.0
        %v1478 = vrcp.pop %v1477
        %v1479 = vmul.f32 1.0, %v1478
        %v1480 = vtanh.pop %v1473
        %v1481 = vmul.f32 %v1479, %v1395
        %1483 = vrot.lane.b32.xlu0 %v1480, 64
        %v1484 = vpop.permute.xlu0 %1483
        %v1486 = vmul.f32 %v1479, %v1484
        %1488 = vrot.lane.b32.xlu0 %v1486, 32
        %v1489 = vpop.permute.xlu0 %1488
        %v1491 = vadd.f32 %v1481, %v1489
        %v1492 = vtanh.pop %v1491
        %1494 = vrot.lane.b32.xlu0 %v1492, 64
        %v1495 = vpop.permute.xlu0 %1494
        %v1497 = vmul.f32 %v1479, %v1495
        %s1498 = sadd.s32 %s110, 3
        %v1499 = vstv %s1498
        %vm1500 = vcmp.gt.s32.totalorder %v213, %v1499
        %v1501 = vsel %vm1500, 1, 0
        %1502 = vset.pattern.permute.xlu0 0
        %1503 = vperm.xlu0 %1502, %v1501
        %v1504 = vpop.permute.xlu0 %1503
        %vm1505 = vcmp.eq.s32.totalorder %v1504, 1
        %v1506 = vsel %vm1505, %v1497, %v1394
        %v1507 = vsel %vm1505, %v1491, %v1395
        %s1508 = scalar_lea.vmem [#allocation2], 8
        %v1509 = vld [vmem:[%s1508] sm:$0x3]
        %1511 = vrot.lane.b32.xlu0 %v1506, 32
        %v1512 = vpop.permute.xlu0 %1511
        %v1513 = vsel %vm1057, %v1512, 0
        %1515 = vmatprep.subr.mxu0 0.0
        %1516 = vmatpush1.msra.mxu0 %v209
        %1517 = vmatprep.subr.mxu0 0.0
        %1518 = vmatpush1.msra.mxu0 %v210
        %1519 = vmatprep.subr.mxu0 0.0
        %1520 = vmatpush1.msra.mxu0 %v211
        %1521 = vmatprep.subr.mxu0 0.0
        %1522 = vmatpush1.msra.mxu0 %v212
        %1523 = vmatprep.subr.mxu0 0.0
        %1524 = vmatpush1.msra.mxu0 0.0
        %1525 = vmatprep.subr.mxu0 0.0
        %1526 = vmatpush1.msra.mxu0 0.0
        %1527 = vmatprep.subr.mxu0 0.0
        %1528 = vmatpush1.msra.mxu0 0.0
        %1529 = vmatprep.subr.mxu0 0.0
        %1530 = vmatpush1.msra.mxu0 0.0
        %1531 = vmatprep.subr.mxu0 0.0
        %1532 = vmatpush1.msra.mxu0 0.0
        %1533 = vmatprep.subr.mxu0 0.0
        %1534 = vmatpush1.msra.mxu0 0.0
        %1535 = vmatprep.subr.mxu0 0.0
        %1536 = vmatpush1.msra.mxu0 0.0
        %1537 = vmatprep.subr.mxu0 0.0
        %1538 = vmatpush1.msra.mxu0 0.0
        %1539 = vmatprep.subr.mxu0 0.0
        %1540 = vmatpush1.msra.mxu0 0.0
        %1541 = vmatprep.subr.mxu0 0.0
        %1542 = vmatpush1.msra.mxu0 0.0
        %1543 = vmatprep.subr.mxu0 0.0
        %1544 = vmatpush1.msra.mxu0 0.0
        %1545 = vmatprep.subr.mxu0 0.0
        %1546 = vmatpush1.msra.mxu0 0.0
        %1547 = vmatprep.subr.mxu0 0.0
        %1548 = vmatpush1.msra.mxu0 0.0
        %1549 = vmatprep.subr.mxu0 0.0
        %1550 = vmatpush1.msra.mxu0 0.0
        %1551 = vmatprep.subr.mxu0 0.0
        %1552 = vmatpush1.msra.mxu0 0.0
        %1553 = vmatprep.subr.mxu0 0.0
        %1554 = vmatpush1.msra.mxu0 0.0
        %1555 = vmatprep.subr.mxu0 0.0
        %1556 = vmatpush1.msra.mxu0 0.0
        %1557 = vmatprep.subr.mxu0 0.0
        %1558 = vmatpush1.msra.mxu0 0.0
        %1559 = vmatprep.subr.mxu0 0.0
        %1560 = vmatpush1.msra.mxu0 0.0
        %1561 = vmatprep.subr.mxu0 0.0
        %1562 = vmatpush1.msra.mxu0 0.0
        %1563 = vmatprep.subr.mxu0 0.0
        %1564 = vmatpush1.msra.mxu0 0.0
        %1565 = vmatprep.subr.mxu0 0.0
        %1566 = vmatpush1.msra.mxu0 0.0
        %1567 = vmatprep.subr.mxu0 0.0
        %1568 = vmatpush1.msra.mxu0 0.0
        %1569 = vmatprep.subr.mxu0 0.0
        %1570 = vmatpush1.msra.mxu0 0.0
        %1571 = vmatprep.subr.mxu0 0.0
        %1572 = vmatpush1.msra.mxu0 0.0
        %1573 = vmatprep.subr.mxu0 0.0
        %1574 = vmatpush1.msra.mxu0 0.0
        %1575 = vmatprep.subr.mxu0 0.0
        %1576 = vmatpush1.msra.mxu0 0.0
        %1577 = vmatprep.subr.mxu0 0.0
        %1578 = vmatpush1.msra.mxu0 0.0
        %1579 = vmatprep.mubr.f32.mxu0 0.0
        %1580 = vmatmul.mubr.f32.gmra.mrb[0].mxu0 %v1513
        %v1581 = vpop.f32.mrb[0].mxu0
        %v1582 = vadd.f32 0.0, %v1581
        %v1583 = vpop.f32.mrb[0].mxu0
        %1584 = vdwg.mxu0
        %v1585 = vadd.f32 %v1509, %v1582
        %v1586 = vxor.u32 %v1585, 2147483648
        %v1587 = vmul.f32 %v1586, 1.442695
        %v1588 = vpow.pop %v1587
        %v1589 = vadd.f32 %v1588, 1.0
        %v1590 = vrcp.pop %v1589
        %v1591 = vmul.f32 1.0, %v1590
        %v1592 = vtanh.pop %v1585
        %v1593 = vmul.f32 %v1591, %v1507
        %1595 = vrot.lane.b32.xlu0 %v1592, 64
        %v1596 = vpop.permute.xlu0 %1595
        %v1598 = vmul.f32 %v1591, %v1596
        %1600 = vrot.lane.b32.xlu0 %v1598, 32
        %v1601 = vpop.permute.xlu0 %1600
        %v1603 = vadd.f32 %v1593, %v1601
        %v1604 = vtanh.pop %v1603
        %1606 = vrot.lane.b32.xlu0 %v1604, 64
        %v1607 = vpop.permute.xlu0 %1606
        %v1609 = vmul.f32 %v1591, %v1607
        %s1610 = sadd.s32 %s110, 4
        %v1611 = vstv %s1610
        %vm1612 = vcmp.gt.s32.totalorder %v213, %v1611
        %v1613 = vsel %vm1612, 1, 0
        %1614 = vset.pattern.permute.xlu0 0
        %1615 = vperm.xlu0 %1614, %v1613
        %v1616 = vpop.permute.xlu0 %1615
        %vm1617 = vcmp.eq.s32.totalorder %v1616, 1
        %v1618 = vsel %vm1617, %v1609, %v1506
        %v1619 = vsel %vm1617, %v1603, %v1507
        %s1620 = scalar_lea.vmem [#allocation2], 10
        %v1621 = vld [vmem:[%s1620] sm:$0x3]
        %1623 = vrot.lane.b32.xlu0 %v1618, 32
        %v1624 = vpop.permute.xlu0 %1623
        %v1625 = vsel %vm1057, %v1624, 0
        %1627 = vmatprep.subr.mxu0 0.0
        %1628 = vmatpush1.msra.mxu0 %v209
        %1629 = vmatprep.subr.mxu0 0.0
        %1630 = vmatpush1.msra.mxu0 %v210
        %1631 = vmatprep.subr.mxu0 0.0
        %1632 = vmatpush1.msra.mxu0 %v211
        %1633 = vmatprep.subr.mxu0 0.0
        %1634 = vmatpush1.msra.mxu0 %v212
        %1635 = vmatprep.subr.mxu0 0.0
        %1636 = vmatpush1.msra.mxu0 0.0
        %1637 = vmatprep.subr.mxu0 0.0
        %1638 = vmatpush1.msra.mxu0 0.0
        %1639 = vmatprep.subr.mxu0 0.0
        %1640 = vmatpush1.msra.mxu0 0.0
        %1641 = vmatprep.subr.mxu0 0.0
        %1642 = vmatpush1.msra.mxu0 0.0
        %1643 = vmatprep.subr.mxu0 0.0
        %1644 = vmatpush1.msra.mxu0 0.0
        %1645 = vmatprep.subr.mxu0 0.0
        %1646 = vmatpush1.msra.mxu0 0.0
        %1647 = vmatprep.subr.mxu0 0.0
        %1648 = vmatpush1.msra.mxu0 0.0
        %1649 = vmatprep.subr.mxu0 0.0
        %1650 = vmatpush1.msra.mxu0 0.0
        %1651 = vmatprep.subr.mxu0 0.0
        %1652 = vmatpush1.msra.mxu0 0.0
        %1653 = vmatprep.subr.mxu0 0.0
        %1654 = vmatpush1.msra.mxu0 0.0
        %1655 = vmatprep.subr.mxu0 0.0
        %1656 = vmatpush1.msra.mxu0 0.0
        %1657 = vmatprep.subr.mxu0 0.0
        %1658 = vmatpush1.msra.mxu0 0.0
        %1659 = vmatprep.subr.mxu0 0.0
        %1660 = vmatpush1.msra.mxu0 0.0
        %1661 = vmatprep.subr.mxu0 0.0
        %1662 = vmatpush1.msra.mxu0 0.0
        %1663 = vmatprep.subr.mxu0 0.0
        %1664 = vmatpush1.msra.mxu0 0.0
        %1665 = vmatprep.subr.mxu0 0.0
        %1666 = vmatpush1.msra.mxu0 0.0
        %1667 = vmatprep.subr.mxu0 0.0
        %1668 = vmatpush1.msra.mxu0 0.0
        %1669 = vmatprep.subr.mxu0 0.0
        %1670 = vmatpush1.msra.mxu0 0.0
        %1671 = vmatprep.subr.mxu0 0.0
        %1672 = vmatpush1.msra.mxu0 0.0
        %1673 = vmatprep.subr.mxu0 0.0
        %1674 = vmatpush1.msra.mxu0 0.0
        %1675 = vmatprep.subr.mxu0 0.0
        %1676 = vmatpush1.msra.mxu0 0.0
        %1677 = vmatprep.subr.mxu0 0.0
        %1678 = vmatpush1.msra.mxu0 0.0
        %1679 = vmatprep.subr.mxu0 0.0
        %1680 = vmatpush1.msra.mxu0 0.0
        %1681 = vmatprep.subr.mxu0 0.0
        %1682 = vmatpush1.msra.mxu0 0.0
        %1683 = vmatprep.subr.mxu0 0.0
        %1684 = vmatpush1.msra.mxu0 0.0
        %1685 = vmatprep.subr.mxu0 0.0
        %1686 = vmatpush1.msra.mxu0 0.0
        %1687 = vmatprep.subr.mxu0 0.0
        %1688 = vmatpush1.msra.mxu0 0.0
        %1689 = vmatprep.subr.mxu0 0.0
        %1690 = vmatpush1.msra.mxu0 0.0
        %1691 = vmatprep.mubr.f32.mxu0 0.0
        %1692 = vmatmul.mubr.f32.gmra.mrb[0].mxu0 %v1625
        %v1693 = vpop.f32.mrb[0].mxu0
        %v1694 = vadd.f32 0.0, %v1693
        %v1695 = vpop.f32.mrb[0].mxu0
        %1696 = vdwg.mxu0
        %v1697 = vadd.f32 %v1621, %v1694
        %v1698 = vxor.u32 %v1697, 2147483648
        %v1699 = vmul.f32 %v1698, 1.442695
        %v1700 = vpow.pop %v1699
        %v1701 = vadd.f32 %v1700, 1.0
        %v1702 = vrcp.pop %v1701
        %v1703 = vmul.f32 1.0, %v1702
        %v1704 = vtanh.pop %v1697
        %v1705 = vmul.f32 %v1703, %v1619
        %1707 = vrot.lane.b32.xlu0 %v1704, 64
        %v1708 = vpop.permute.xlu0 %1707
        %v1710 = vmul.f32 %v1703, %v1708
        %1712 = vrot.lane.b32.xlu0 %v1710, 32
        %v1713 = vpop.permute.xlu0 %1712
        %v1715 = vadd.f32 %v1705, %v1713
        %v1716 = vtanh.pop %v1715
        %1718 = vrot.lane.b32.xlu0 %v1716, 64
        %v1719 = vpop.permute.xlu0 %1718
        %v1721 = vmul.f32 %v1703, %v1719
        %s1722 = sadd.s32 %s110, 5
        %v1723 = vstv %s1722
        %vm1724 = vcmp.gt.s32.totalorder %v213, %v1723
        %v1725 = vsel %vm1724, 1, 0
        %1726 = vset.pattern.permute.xlu0 0
        %1727 = vperm.xlu0 %1726, %v1725
        %v1728 = vpop.permute.xlu0 %1727
        %vm1729 = vcmp.eq.s32.totalorder %v1728, 1
        %v1730 = vsel %vm1729, %v1721, %v1618
        %v1731 = vsel %vm1729, %v1715, %v1619
        %s1732 = scalar_lea.vmem [#allocation2], 12
        %v1733 = vld [vmem:[%s1732] sm:$0x3]
        %1735 = vrot.lane.b32.xlu0 %v1730, 32
        %v1736 = vpop.permute.xlu0 %1735
        %v1737 = vsel %vm1057, %v1736, 0
        %1739 = vmatprep.subr.mxu0 0.0
        %1740 = vmatpush1.msra.mxu0 %v209
        %1741 = vmatprep.subr.mxu0 0.0
        %1742 = vmatpush1.msra.mxu0 %v210
        %1743 = vmatprep.subr.mxu0 0.0
        %1744 = vmatpush1.msra.mxu0 %v211
        %1745 = vmatprep.subr.mxu0 0.0
        %1746 = vmatpush1.msra.mxu0 %v212
        %1747 = vmatprep.subr.mxu0 0.0
        %1748 = vmatpush1.msra.mxu0 0.0
        %1749 = vmatprep.subr.mxu0 0.0
        %1750 = vmatpush1.msra.mxu0 0.0
        %1751 = vmatprep.subr.mxu0 0.0
        %1752 = vmatpush1.msra.mxu0 0.0
        %1753 = vmatprep.subr.mxu0 0.0
        %1754 = vmatpush1.msra.mxu0 0.0
        %1755 = vmatprep.subr.mxu0 0.0
        %1756 = vmatpush1.msra.mxu0 0.0
        %1757 = vmatprep.subr.mxu0 0.0
        %1758 = vmatpush1.msra.mxu0 0.0
        %1759 = vmatprep.subr.mxu0 0.0
        %1760 = vmatpush1.msra.mxu0 0.0
        %1761 = vmatprep.subr.mxu0 0.0
        %1762 = vmatpush1.msra.mxu0 0.0
        %1763 = vmatprep.subr.mxu0 0.0
        %1764 = vmatpush1.msra.mxu0 0.0
        %1765 = vmatprep.subr.mxu0 0.0
        %1766 = vmatpush1.msra.mxu0 0.0
        %1767 = vmatprep.subr.mxu0 0.0
        %1768 = vmatpush1.msra.mxu0 0.0
        %1769 = vmatprep.subr.mxu0 0.0
        %1770 = vmatpush1.msra.mxu0 0.0
        %1771 = vmatprep.subr.mxu0 0.0
        %1772 = vmatpush1.msra.mxu0 0.0
        %1773 = vmatprep.subr.mxu0 0.0
        %1774 = vmatpush1.msra.mxu0 0.0
        %1775 = vmatprep.subr.mxu0 0.0
        %1776 = vmatpush1.msra.mxu0 0.0
        %1777 = vmatprep.subr.mxu0 0.0
        %1778 = vmatpush1.msra.mxu0 0.0
        %1779 = vmatprep.subr.mxu0 0.0
        %1780 = vmatpush1.msra.mxu0 0.0
        %1781 = vmatprep.subr.mxu0 0.0
        %1782 = vmatpush1.msra.mxu0 0.0
        %1783 = vmatprep.subr.mxu0 0.0
        %1784 = vmatpush1.msra.mxu0 0.0
        %1785 = vmatprep.subr.mxu0 0.0
        %1786 = vmatpush1.msra.mxu0 0.0
        %1787 = vmatprep.subr.mxu0 0.0
        %1788 = vmatpush1.msra.mxu0 0.0
        %1789 = vmatprep.subr.mxu0 0.0
        %1790 = vmatpush1.msra.mxu0 0.0
        %1791 = vmatprep.subr.mxu0 0.0
        %1792 = vmatpush1.msra.mxu0 0.0
        %1793 = vmatprep.subr.mxu0 0.0
        %1794 = vmatpush1.msra.mxu0 0.0
        %1795 = vmatprep.subr.mxu0 0.0
        %1796 = vmatpush1.msra.mxu0 0.0
        %1797 = vmatprep.subr.mxu0 0.0
        %1798 = vmatpush1.msra.mxu0 0.0
        %1799 = vmatprep.subr.mxu0 0.0
        %1800 = vmatpush1.msra.mxu0 0.0
        %1801 = vmatprep.subr.mxu0 0.0
        %1802 = vmatpush1.msra.mxu0 0.0
        %1803 = vmatprep.mubr.f32.mxu0 0.0
        %1804 = vmatmul.mubr.f32.gmra.mrb[0].mxu0 %v1737
        %v1805 = vpop.f32.mrb[0].mxu0
        %v1806 = vadd.f32 0.0, %v1805
        %v1807 = vpop.f32.mrb[0].mxu0
        %1808 = vdwg.mxu0
        %v1809 = vadd.f32 %v1733, %v1806
        %v1810 = vxor.u32 %v1809, 2147483648
        %v1811 = vmul.f32 %v1810, 1.442695
        %v1812 = vpow.pop %v1811
        %v1813 = vadd.f32 %v1812, 1.0
        %v1814 = vrcp.pop %v1813
        %v1815 = vmul.f32 1.0, %v1814
        %v1816 = vtanh.pop %v1809
        %v1817 = vmul.f32 %v1815, %v1731
        %1819 = vrot.lane.b32.xlu0 %v1816, 64
        %v1820 = vpop.permute.xlu0 %1819
        %v1822 = vmul.f32 %v1815, %v1820
        %1824 = vrot.lane.b32.xlu0 %v1822, 32
        %v1825 = vpop.permute.xlu0 %1824
        %v1827 = vadd.f32 %v1817, %v1825
        %v1828 = vtanh.pop %v1827
        %1830 = vrot.lane.b32.xlu0 %v1828, 64
        %v1831 = vpop.permute.xlu0 %1830
        %v1833 = vmul.f32 %v1815, %v1831
        %s1834 = sadd.s32 %s110, 6
        %v1835 = vstv %s1834
        %vm1836 = vcmp.gt.s32.totalorder %v213, %v1835
        %v1837 = vsel %vm1836, 1, 0
        %1838 = vset.pattern.permute.xlu0 0
        %1839 = vperm.xlu0 %1838, %v1837
        %v1840 = vpop.permute.xlu0 %1839
        %vm1841 = vcmp.eq.s32.totalorder %v1840, 1
        %v1842 = vsel %vm1841, %v1833, %v1730
        %v1843 = vsel %vm1841, %v1827, %v1731
        %s1844 = scalar_lea.vmem [#allocation2], 14
        %v1845 = vld [vmem:[%s1844] sm:$0x3]
        %1847 = vrot.lane.b32.xlu0 %v1842, 32
        %v1848 = vpop.permute.xlu0 %1847
        %v1849 = vsel %vm1057, %v1848, 0
        %1851 = vmatprep.subr.mxu0 0.0
        %1852 = vmatpush1.msra.mxu0 %v209
        %1853 = vmatprep.subr.mxu0 0.0
        %1854 = vmatpush1.msra.mxu0 %v210
        %1855 = vmatprep.subr.mxu0 0.0
        %1856 = vmatpush1.msra.mxu0 %v211
        %1857 = vmatprep.subr.mxu0 0.0
        %1858 = vmatpush1.msra.mxu0 %v212
        %1859 = vmatprep.subr.mxu0 0.0
        %1860 = vmatpush1.msra.mxu0 0.0
        %1861 = vmatprep.subr.mxu0 0.0
        %1862 = vmatpush1.msra.mxu0 0.0
        %1863 = vmatprep.subr.mxu0 0.0
        %1864 = vmatpush1.msra.mxu0 0.0
        %1865 = vmatprep.subr.mxu0 0.0
        %1866 = vmatpush1.msra.mxu0 0.0
        %1867 = vmatprep.subr.mxu0 0.0
        %1868 = vmatpush1.msra.mxu0 0.0
        %1869 = vmatprep.subr.mxu0 0.0
        %1870 = vmatpush1.msra.mxu0 0.0
        %1871 = vmatprep.subr.mxu0 0.0
        %1872 = vmatpush1.msra.mxu0 0.0
        %1873 = vmatprep.subr.mxu0 0.0
        %1874 = vmatpush1.msra.mxu0 0.0
        %1875 = vmatprep.subr.mxu0 0.0
        %1876 = vmatpush1.msra.mxu0 0.0
        %1877 = vmatprep.subr.mxu0 0.0
        %1878 = vmatpush1.msra.mxu0 0.0
        %1879 = vmatprep.subr.mxu0 0.0
        %1880 = vmatpush1.msra.mxu0 0.0
        %1881 = vmatprep.subr.mxu0 0.0
        %1882 = vmatpush1.msra.mxu0 0.0
        %1883 = vmatprep.subr.mxu0 0.0
        %1884 = vmatpush1.msra.mxu0 0.0
        %1885 = vmatprep.subr.mxu0 0.0
        %1886 = vmatpush1.msra.mxu0 0.0
        %1887 = vmatprep.subr.mxu0 0.0
        %1888 = vmatpush1.msra.mxu0 0.0
        %1889 = vmatprep.subr.mxu0 0.0
        %1890 = vmatpush1.msra.mxu0 0.0
        %1891 = vmatprep.subr.mxu0 0.0
        %1892 = vmatpush1.msra.mxu0 0.0
        %1893 = vmatprep.subr.mxu0 0.0
        %1894 = vmatpush1.msra.mxu0 0.0
        %1895 = vmatprep.subr.mxu0 0.0
        %1896 = vmatpush1.msra.mxu0 0.0
        %1897 = vmatprep.subr.mxu0 0.0
        %1898 = vmatpush1.msra.mxu0 0.0
        %1899 = vmatprep.subr.mxu0 0.0
        %1900 = vmatpush1.msra.mxu0 0.0
        %1901 = vmatprep.subr.mxu0 0.0
        %1902 = vmatpush1.msra.mxu0 0.0
        %1903 = vmatprep.subr.mxu0 0.0
        %1904 = vmatpush1.msra.mxu0 0.0
        %1905 = vmatprep.subr.mxu0 0.0
        %1906 = vmatpush1.msra.mxu0 0.0
        %1907 = vmatprep.subr.mxu0 0.0
        %1908 = vmatpush1.msra.mxu0 0.0
        %1909 = vmatprep.subr.mxu0 0.0
        %1910 = vmatpush1.msra.mxu0 0.0
        %1911 = vmatprep.subr.mxu0 0.0
        %1912 = vmatpush1.msra.mxu0 0.0
        %1913 = vmatprep.subr.mxu0 0.0
        %1914 = vmatpush1.msra.mxu0 0.0
        %1915 = vmatprep.mubr.f32.mxu0 0.0
        %1916 = vmatmul.mubr.f32.gmra.mrb[0].mxu0 %v1849
        %v1917 = vpop.f32.mrb[0].mxu0
        %v1918 = vadd.f32 0.0, %v1917
        %v1919 = vpop.f32.mrb[0].mxu0
        %1920 = vdwg.mxu0
        %v1921 = vadd.f32 %v1845, %v1918
        %v1922 = vxor.u32 %v1921, 2147483648
        %v1923 = vmul.f32 %v1922, 1.442695
        %v1924 = vpow.pop %v1923
        %v1925 = vadd.f32 %v1924, 1.0
        %v1926 = vrcp.pop %v1925
        %v1927 = vmul.f32 1.0, %v1926
        %v1928 = vtanh.pop %v1921
        %v1929 = vmul.f32 %v1927, %v1843
        %1931 = vrot.lane.b32.xlu0 %v1928, 64
        %v1932 = vpop.permute.xlu0 %1931
        %v1934 = vmul.f32 %v1927, %v1932
        %1936 = vrot.lane.b32.xlu0 %v1934, 32
        %v1937 = vpop.permute.xlu0 %1936
        %v1939 = vadd.f32 %v1929, %v1937
        %v1940 = vtanh.pop %v1939
        %1942 = vrot.lane.b32.xlu0 %v1940, 64
        %v1943 = vpop.permute.xlu0 %1942
        %v1945 = vmul.f32 %v1927, %v1943
        %s1946 = sadd.s32 %s110, 7
        %v1947 = vstv %s1946
        %vm1948 = vcmp.gt.s32.totalorder %v213, %v1947
        %v1949 = vsel %vm1948, 1, 0
        %1950 = vset.pattern.permute.xlu0 0
        %1951 = vperm.xlu0 %1950, %v1949
        %v1952 = vpop.permute.xlu0 %1951
        %vm1953 = vcmp.eq.s32.totalorder %v1952, 1
        %v1954 = vsel %vm1953, %v1945, %v1842
        %v1955 = vsel %vm1953, %v1939, %v1843
        %1957 = vrot.lane.b32.xlu0 %v1954, 32
        %v1958 = vpop.permute.xlu0 %1957
        %vm1960 = vcmask 254976
        %1961 = vst.msk [vmem:[#allocation3] sm:$0x3] %vm1960, %v1958
        %1963 = vrot.lane.b32.xlu0 %v1955, 96
        %v1964 = vpop.permute.xlu0 %1963
        %1966 = vst.msk [vmem:[#allocation4] sm:$0x3] %vm1960, %v1964
      $region56: #{tpu_custom_call.1} parent=40 // pred_fallthru
        _
    $region41: #{tpu_custom_call.1} parent=1 // pred_fallthru
      _
    // Predicated region
    $region57: #{tpu_custom_call.1} parent=1 // pred_check
      %p1967 = pneg %p99
    $region58: #{tpu_custom_call.1} parent=1 // pred_check_branch
      %1969 = sbr.rel (%p1967) target = $region60
    $region59: #{tpu_custom_call.1} parent=1 // pred_region
      %v1970 = vld [vmem:[#allocation3] sm:$0x3]
      %vm1971 = vcmask 254976
      %1972 = vst.msk [vmem:[#allocation13] sm:$0x3] %vm1971, %v1970
    $region60: #{tpu_custom_call.1} parent=1 // pred_fallthru
      _
    // Predicated region
    $region61: #{tpu_custom_call.1} parent=1 // pred_check
      _
    $region62: #{tpu_custom_call.1} parent=1 // pred_check_branch
      %1974 = sbr.rel (0) target = $region64
    $region63: #{tpu_custom_call.1} parent=1 // pred_region
      %s1976 = ssub.s32 32, 32
      %1977 = vsyncadd [#allocation9], %s1976
      %s1979 = sshll.u32 [#allocation13], 4
      %s1980 = int_to_ptr.vmem [resolvable:$true] %s1979
      %1982 = dma.vmem_to_hbm [thread:$0]  %s1980, 32, %s6, [#allocation9]
    $region64: #{tpu_custom_call.1} parent=1 // pred_fallthru
      _
    // Predicated region
    $region65: #{tpu_custom_call.1} parent=1 // pred_check
      _
    $region66: #{tpu_custom_call.1} parent=1 // pred_check_branch
      %1984 = sbr.rel (0) target = $region68
    $region67: #{tpu_custom_call.1} parent=1 // pred_region
      %1985 = dma.done [#allocation9], 32
    $region68: #{tpu_custom_call.1} parent=1 // pred_fallthru
      _
    %1986 = vsyncpa [#allocation8], 1
    %1987 = vsyncpa [#allocation11], 1
    %1988 = vsyncpa [#allocation9], 1

</llo_original>
